<compile_context>
chip_gen: v7x
topology: tpu7x:2x2x1
jax: 0.10.0
libtpu: 0.0.40
codegen_flags: <defaults>
</compile_context>

<pallas_src>
import functools

import jax
import jax.numpy as jnp
from jax.experimental import pallas as pl
from jax.experimental.pallas import tpu as pltpu

_VMEM = pl.BlockSpec(memory_space=pltpu.MemorySpace.VMEM)
_KSIZE = 5    # ConvTranspose2d kernel size (hardcoded in the PyTorch module)
_STRIDE = 2   # ConvTranspose2d stride      (hardcoded in the PyTorch module)


# ---------------------------------------------------------------------------
# Pallas kernels
# ---------------------------------------------------------------------------
def _encoder_kernel(x_ref, *refs, num_layers, H, W):
    """Full encoder for one batch element: [Conv2d(3x3,p=1,no bias)+ReLU]*N.

    x_ref:   (H+2, W+2, C0)   spatially pre-padded NHWC input (true channels)
    refs:    num_layers per-tap weights (9, Cin_i, Cout_i), then the output
             ref (H, W, C_last), then num_layers-1 padded-activation scratches.
    The 3x3 taps are built in VMEM (no HBM im2col); each layer is 9
    accumulating MXU dots into an f32 accumulator with a fused ReLU.
    """
    w_refs = refs[:num_layers]
    out_ref = refs[num_layers]
    pad_refs = refs[num_layers + 1:]

    def conv3x3_relu(src_ref, w_ref):
        cin = src_ref.shape[-1]
        cout = w_ref.shape[-1]
        acc = jnp.zeros((H * W, cout), jnp.float32)
        for kh in range(3):
            for kw in range(3):
                xt = src_ref[kh:kh + H, kw:kw + W, :].reshape(H * W, cin)
                acc = acc + jnp.dot(xt, w_ref[kh * 3 + kw],
                                    preferred_element_type=jnp.float32)
        return jnp.maximum(acc, 0.0)

    src = x_ref
    for layer in range(num_layers):
        a = conv3x3_relu(src, w_refs[layer])
        if layer == num_layers - 1:
            out_ref[...] = a.reshape(H, W, -1)
        else:
            # Spatially re-pad the activation inside VMEM for the next layer.
            pad_refs[layer][...] = jnp.zeros_like(pad_refs[layer])
            pad_refs[layer][1:1 + H, 1:1 + W, :] = a.reshape(H, W, -1)
            src = pad_refs[layer]


def _head_decoder_kernel(h_ref, whd_ref, bhd_ref, eps_ref, wfc_ref, bfc_ref,
                         wct1_ref, bct1_ref, wct2_ref, mulv_ref, ct2_ref, *,
                         lat):
    """Fused: [mu|log_var] matmul -> reparametrize -> fc -> ConvT1 (1x1 input,
    pure matmul) + ReLU -> ConvT2 tap matmul (block-diag over input pixels)."""
    h = h_ref[...]
    mulv = jnp.dot(h, whd_ref[...],
                   preferred_element_type=jnp.float32) + bhd_ref[...]
    mu = mulv[:, :lat]
    log_var = mulv[:, lat:]
    # reparametrize: z = mu + exp(0.5*log_var) * eps
    z = mu + jnp.exp(0.5 * log_var) * eps_ref[...]
    zfc = jnp.dot(z, wfc_ref[...],
                  preferred_element_type=jnp.float32) + bfc_ref[...]
    # ConvTranspose2d #1 acts on a 1x1 spatial input -> a single matmul + bias.
    a1 = jnp.dot(zfc, wct1_ref[...],
                 preferred_element_type=jnp.float32) + bct1_ref[...]
    a1 = jnp.maximum(a1, 0.0)                                   # ReLU
    # ConvTranspose2d #2 tap matmul; overlap-add happens in the XLA epilogue.
    ct2_ref[...] = jnp.dot(a1, wct2_ref[...],
                           preferred_element_type=jnp.float32)
    mulv_ref[...] = mulv


# ---------------------------------------------------------------------------
# Pallas wrappers
# ---------------------------------------------------------------------------
def encoder_pallas(xpad, enc_w, H, W):
    """One pallas_call for the whole encoder, gridded over the batch."""
    B = xpad.shape[0]
    num_layers = len(enc_w)
    c_last = enc_w[-1].shape[-1]

    in_specs = [pl.BlockSpec((None,) + xpad.shape[1:],
                             lambda b: (b, 0, 0, 0))]
    for w in enc_w:
        in_specs.append(pl.BlockSpec(w.shape, lambda b: (0, 0, 0)))

    scratch = [pltpu.VMEM((H + 2, W + 2, w.shape[-1]), jnp.float32)
               for w in enc_w[:-1]]

    return pl.pallas_call(
        functools.partial(_encoder_kernel, num_layers=num_layers, H=H, W=W),
        out_shape=jax.ShapeDtypeStruct((B, H, W, c_last), jnp.float32),
        grid=(B,),
        in_specs=in_specs,
        out_specs=pl.BlockSpec((None, H, W, c_last), lambda b: (b, 0, 0, 0)),
        scratch_shapes=scratch,
        compiler_params=pltpu.CompilerParams(
            dimension_semantics=("parallel",)),
    )(xpad, *enc_w)


def head_decoder_pallas(h, prep, eps):
    B = h.shape[0]
    lat = prep["b_head"].shape[-1] // 2
    n_ct2 = prep["w_ct2_blk"].shape[-1]
    return pl.pallas_call(
        functools.partial(_head_decoder_kernel, lat=lat),
        out_shape=(jax.ShapeDtypeStruct((B, 2 * lat), jnp.float32),
                   jax.ShapeDtypeStruct((B, n_ct2), jnp.float32)),
        in_specs=[_VMEM] * 9,
        out_specs=(_VMEM, _VMEM),
    )(h, prep["w_head"], prep["b_head"], eps, prep["w_fc"], prep["b_fc"],
      prep["w_ct1"], prep["b_ct1"], prep["w_ct2_blk"])


def _col2im_stride2(contrib):
    """Overlap-add for ConvTranspose2d(k=5, stride=2, padding=0).

    contrib: (B, Hi, Wi, K, K, C) per-input-pixel output patches.
    Single-pass stride-2 parity decomposition: 4 output sub-grids, each a
    fused sum of <=9 zero-padded shifted slices (no 25-pass scatter-add).
    """
    B, Hi, Wi, K, _, C = contrib.shape
    s = _STRIDE
    Ho, Wo = s * (Hi - 1) + K, s * (Wi - 1) + K
    Hp, Wp = (Ho + s - 1) // s, (Wo + s - 1) // s
    quads = []
    for py in range(s):
        row = []
        for px in range(s):
            acc = jnp.zeros((B, Hp, Wp, C), contrib.dtype)
            for ky in range(py, K, s):
                for kx in range(px, K, s):
                    dy, dx = (ky - py) // s, (kx - px) // s
                    acc = acc + jnp.pad(
                        contrib[:, :, :, ky, kx, :],
                        ((0, 0), (dy, Hp - Hi - dy),
                         (dx, Wp - Wi - dx), (0, 0)))
            row.append(acc)
        quads.append(jnp.stack(row, axis=3))          # (B, Hp, Wp, s, C)
    full = jnp.stack(quads, axis=2)                   # (B, Hp, s, Wp, s, C)
    return full.reshape(B, s * Hp, s * Wp, C)[:, :Ho, :Wo, :]


# ---------------------------------------------------------------------------
# Parameters (deterministic synthetic init; shapes follow the PyTorch module)
# ---------------------------------------------------------------------------
def init_params(key, num_feats, hidden_sizes_encoder, out_size):
    ks = iter(jax.random.split(key, 32))
    n = lambda shape: 0.1 * jax.random.normal(next(ks), shape, jnp.float32)

    enc_channels = [num_feats] + hidden_sizes_encoder + [32]
    dec_channels = hidden_sizes_encoder + [out_size]
    d_in, d_lat = hidden_sizes_encoder[-2], hidden_sizes_encoder[-1]

    return {
        # Conv2d weights in PyTorch layout (Cout, Cin, 3, 3), bias=False
        "enc_conv_w": [n((enc_channels[i + 1], enc_channels[i], 3, 3))
                       for i in range(len(hidden_sizes_encoder))],
        # Linear weights stored as (in, out); mu/log_var in-features are in the
        # PyTorch NCHW Flatten() order.
        "w_mu": n((d_in, d_lat)), "b_mu": n((d_lat,)),
        "w_lv": n((d_in, d_lat)), "b_lv": n((d_lat,)),
        "w_fc": n((d_lat, dec_channels[0])), "b_fc": n((dec_channels[0],)),
        # ConvTranspose2d weights in PyTorch layout (Cin, Cout, 5, 5)
        "dec_w": [n((dec_channels[i], dec_channels[i + 1], 5, 5))
                  for i in range(len(hidden_sizes_encoder))],
        "dec_b": [n((dec_channels[i + 1],))
                  for i in range(len(hidden_sizes_encoder))],
    }


def prepare_params(params, H, W):
    """One-time weight re-layout.  No 128-lane channel padding anywhere."""
    f32 = jnp.float32
    prep = {}

    # encoder convs: (Cout, Cin, 3, 3) -> per-tap (9, Cin, Cout)
    prep["enc_w"] = [
        jnp.transpose(w, (2, 3, 1, 0)).reshape(9, w.shape[1],
                                               w.shape[0]).astype(f32)
        for w in params["enc_conv_w"]]

    # [mu | log_var] fused along N (one matmul), with the NCHW Flatten()
    # permutation folded into the weight rows (kernel consumes NHWC-flatten h).
    c2 = params["enc_conv_w"][-1].shape[0]

    def fold_flatten(w):
        lat_ = w.shape[1]
        return jnp.transpose(w.reshape(c2, H, W, lat_),
                             (1, 2, 0, 3)).reshape(H * W * c2, lat_)

    prep["w_head"] = jnp.concatenate(
        [fold_flatten(params["w_mu"]), fold_flatten(params["w_lv"])],
        axis=1).astype(f32)
    prep["b_head"] = jnp.concatenate(
        [params["b_mu"], params["b_lv"]]).reshape(1, -1).astype(f32)

    # decoder fc
    prep["w_fc"] = params["w_fc"].astype(f32)
    prep["b_fc"] = params["b_fc"].reshape(1, -1).astype(f32)

    # TODO(synk): the fused decoder below assumes exactly two ConvTranspose2d
    # layers (as in the demo config); deeper stacks would need a generic
    # per-layer matmul + col2im path.
    assert len(params["dec_w"]) == 2

    # ConvTranspose2d #1 acts on a 1x1 input (Unflatten -> (B, C, 1, 1)), so it
    # is a pure matmul: (Cin, Cout, 5, 5) -> (Cin, 5*5*Cout); bias tiled.
    w1 = params["dec_w"][0]
    k = w1.shape[-1]
    prep["w_ct1"] = jnp.transpose(w1, (0, 2, 3, 1)).reshape(
        w1.shape[0], k * k * w1.shape[1]).astype(f32)
    prep["b_ct1"] = jnp.tile(params["dec_b"][0], k * k).reshape(1, -1).astype(f32)

    # ConvTranspose2d #2: its k x k input lives in the head kernel's lanes as
    # (iy, ix, c); block-diagonalising the (Cin, k*k*Cout) tap matrix over the
    # k*k input pixels turns it into one more in-kernel matmul whose output is
    # the per-pixel patch slab (overlap-add is the XLA parity epilogue).
    w2 = params["dec_w"][1]
    w2m = jnp.transpose(w2, (0, 2, 3, 1)).reshape(w2.shape[0],
                                                  k * k * w2.shape[1])
    n_pix = k * k  # ConvT1 output spatial = k x k (its input is 1 x 1)
    prep["w_ct2_blk"] = jnp.einsum(
        "pq,cn->pcqn", jnp.eye(n_pix, dtype=f32), w2m.astype(f32)).reshape(
            n_pix * w2.shape[0], n_pix * k * k * w2.shape[1])
    prep["b_ct2"] = params["dec_b"][1].astype(f32)
    return prep


# ---------------------------------------------------------------------------
# Forward pass (mirrors vae.forward -> (decoded, mu, log_var))
# ---------------------------------------------------------------------------
def vae_forward(x_nchw, prep, eps):
    B, _, H, W = x_nchw.shape

    # NCHW -> NHWC + 1-pixel spatial zero pad (conv padding=1); channels keep
    # their true sizes (taps are built in-kernel, no HBM im2col).
    xpad = jnp.pad(jnp.transpose(x_nchw, (0, 2, 3, 1)),
                   ((0, 0), (1, 1), (1, 1), (0, 0)))

    enc = encoder_pallas(xpad, prep["enc_w"], H, W)        # (B, H, W, C2)

    # Flatten(): the NCHW .view(B, -1) permutation is folded into w_head.
    h = enc.reshape(B, -1)

    # mu / log_var + reparametrize + fc + ConvT1 + ConvT2 tap matmul, fused.
    # TODO(synk): torch.randn inside reparametrize() is replaced by the
    # deterministic eps input.
    mulv, ct2 = head_decoder_pallas(h, prep, eps)
    lat = mulv.shape[1] // 2
    mu, log_var = mulv[:, :lat], mulv[:, lat:]

    # decoder epilogue: single-pass parity col2im + bias + final ReLU.
    # TODO(synk): `Unflatten` is undefined in the PyTorch source; assumed to
    # reshape (B, C) -> (B, C, 1, 1).
    c_out = prep["b_ct2"].shape[0]
    contrib = ct2.reshape(B, _KSIZE, _KSIZE, _KSIZE, _KSIZE, c_out)
    y = _col2im_stride2(contrib) + prep["b_ct2"].reshape(1, 1, 1, -1)
    y = jnp.maximum(y, 0.0)                                 # final ReLU
    decoded = jnp.transpose(y, (0, 3, 1, 2))                # NCHW
    return decoded, mu, log_var


if __name__ == "__main__":
    # Shapes chosen so the module is self-consistent:
    # flatten size = hidden_sizes_encoder[-1] * H * W = 4*8*8 = 256
    #              = hidden_sizes_encoder[-2] (mu / log_var in-features).
    B, num_feats, H, W = 2, 4, 8, 8
    hidden_sizes_encoder = [256, 4]
    out_size = 3
    # (the module's `hidden_sizes_decoder` ctor arg is unused by its forward)

    key = jax.random.PRNGKey(0)
    k_param, k_x, k_eps = jax.random.split(key, 3)
    params = init_params(k_param, num_feats, hidden_sizes_encoder, out_size)
    prep = prepare_params(params, H, W)

    x = jax.random.normal(k_x, (B, num_feats, H, W), jnp.float32)
    # deterministic stand-in for torch.randn in reparametrize()
    eps = jax.random.normal(k_eps, (B, hidden_sizes_encoder[-1]), jnp.float32)

    fwd = jax.jit(vae_forward)
    decoded, mu, log_var = fwd(x, prep, eps)
    jax.block_until_ready((decoded, mu, log_var))

    assert decoded.shape == (B, out_size, 13, 13)
    assert mu.shape == (B, hidden_sizes_encoder[-1])
    assert log_var.shape == (B, hidden_sizes_encoder[-1])
    print("KERNEL_OK")
</pallas_src>

<mosaic_0001>
module attributes {stable_mosaic.version = 11 : i64} {
  func.func @_encoder_kernel(%arg0: i32, %arg1: memref<1x10x10x4xf32, #tpu.memory_space<vmem>>, %arg2: memref<9x4x256xf32, #tpu.memory_space<vmem>>, %arg3: memref<9x256x4xf32, #tpu.memory_space<vmem>>, %arg4: memref<1x8x8x4xf32, #tpu.memory_space<vmem>>, %arg5: memref<10x10x256xf32, #tpu.memory_space<vmem>>) attributes {dimension_semantics = [#tpu.dimension_semantics<parallel>], iteration_bounds = array<i64: 2>, scalar_prefetch = 0 : i64, scratch_operands = 1 : i64, tpu.core_type = #tpu.core_type<tc>, window_params = [{transform_indices = @transform_0, window_bounds = array<i64: 1, 10, 10, 4>}, {pipeline_mode = #tpu.pipeline_mode<synchronous>, transform_indices = @transform_1, window_bounds = array<i64: 9, 4, 256>}, {pipeline_mode = #tpu.pipeline_mode<synchronous>, transform_indices = @transform_2, window_bounds = array<i64: 9, 256, 4>}, {transform_indices = @transform_3, window_bounds = array<i64: 1, 8, 8, 4>}]} {
    %cst = arith.constant 0.000000e+00 : f32
    %0 = vector.broadcast %cst : f32 to vector<64x256xf32>
    %c0 = arith.constant 0 : index
    %c0_0 = arith.constant 0 : index
    %c0_1 = arith.constant 0 : index
    %c0_2 = arith.constant 0 : index
    %1 = vector.load %arg1[%c0, %c0_0, %c0_1, %c0_2] : memref<1x10x10x4xf32, #tpu.memory_space<vmem>>, vector<1x8x8x4xf32>
    %2 = vector.shape_cast %1 : vector<1x8x8x4xf32> to vector<8x8x4xf32>
    %3 = vector.shape_cast %2 : vector<8x8x4xf32> to vector<64x4xf32>
    %c0_3 = arith.constant 0 : index
    %c0_4 = arith.constant 0 : index
    %c0_5 = arith.constant 0 : index
    %4 = vector.load %arg2[%c0_3, %c0_4, %c0_5] : memref<9x4x256xf32, #tpu.memory_space<vmem>>, vector<1x4x256xf32>
    %5 = vector.shape_cast %4 : vector<1x4x256xf32> to vector<4x256xf32>
    %cst_6 = arith.constant dense<0.000000e+00> : vector<64x256xf32>
    %6 = tpu.matmul %3, %5, %cst_6 {dimension_numbers = #tpu.dot_dimension_numbers<[1], [0], [0], [1], [0, 0, 1, 1], [], []>} : vector<64x4xf32>, vector<4x256xf32>, vector<64x256xf32> -> vector<64x256xf32>
    %7 = arith.addf %0, %6 : vector<64x256xf32>
    %c0_7 = arith.constant 0 : index
    %c0_8 = arith.constant 0 : index
    %c1 = arith.constant 1 : index
    %c0_9 = arith.constant 0 : index
    %8 = vector.load %arg1[%c0_7, %c0_8, %c1, %c0_9] : memref<1x10x10x4xf32, #tpu.memory_space<vmem>>, vector<1x8x8x4xf32>
    %9 = vector.shape_cast %8 : vector<1x8x8x4xf32> to vector<8x8x4xf32>
    %10 = vector.shape_cast %9 : vector<8x8x4xf32> to vector<64x4xf32>
    %c1_10 = arith.constant 1 : index
    %c0_11 = arith.constant 0 : index
    %c0_12 = arith.constant 0 : index
    %11 = vector.load %arg2[%c1_10, %c0_11, %c0_12] : memref<9x4x256xf32, #tpu.memory_space<vmem>>, vector<1x4x256xf32>
    %12 = vector.shape_cast %11 : vector<1x4x256xf32> to vector<4x256xf32>
    %cst_13 = arith.constant dense<0.000000e+00> : vector<64x256xf32>
    %13 = tpu.matmul %10, %12, %cst_13 {dimension_numbers = #tpu.dot_dimension_numbers<[1], [0], [0], [1], [0, 0, 1, 1], [], []>} : vector<64x4xf32>, vector<4x256xf32>, vector<64x256xf32> -> vector<64x256xf32>
    %14 = arith.addf %7, %13 : vector<64x256xf32>
    %c0_14 = arith.constant 0 : index
    %c0_15 = arith.constant 0 : index
    %c2 = arith.constant 2 : index
    %c0_16 = arith.constant 0 : index
    %15 = vector.load %arg1[%c0_14, %c0_15, %c2, %c0_16] : memref<1x10x10x4xf32, #tpu.memory_space<vmem>>, vector<1x8x8x4xf32>
    %16 = vector.shape_cast %15 : vector<1x8x8x4xf32> to vector<8x8x4xf32>
    %17 = vector.shape_cast %16 : vector<8x8x4xf32> to vector<64x4xf32>
    %c2_17 = arith.constant 2 : index
    %c0_18 = arith.constant 0 : index
    %c0_19 = arith.constant 0 : index
    %18 = vector.load %arg2[%c2_17, %c0_18, %c0_19] : memref<9x4x256xf32, #tpu.memory_space<vmem>>, vector<1x4x256xf32>
    %19 = vector.shape_cast %18 : vector<1x4x256xf32> to vector<4x256xf32>
    %cst_20 = arith.constant dense<0.000000e+00> : vector<64x256xf32>
    %20 = tpu.matmul %17, %19, %cst_20 {dimension_numbers = #tpu.dot_dimension_numbers<[1], [0], [0], [1], [0, 0, 1, 1], [], []>} : vector<64x4xf32>, vector<4x256xf32>, vector<64x256xf32> -> vector<64x256xf32>
    %21 = arith.addf %14, %20 : vector<64x256xf32>
    %c0_21 = arith.constant 0 : index
    %c1_22 = arith.constant 1 : index
    %c0_23 = arith.constant 0 : index
    %c0_24 = arith.constant 0 : index
    %22 = vector.load %arg1[%c0_21, %c1_22, %c0_23, %c0_24] : memref<1x10x10x4xf32, #tpu.memory_space<vmem>>, vector<1x8x8x4xf32>
    %23 = vector.shape_cast %22 : vector<1x8x8x4xf32> to vector<8x8x4xf32>
    %24 = vector.shape_cast %23 : vector<8x8x4xf32> to vector<64x4xf32>
    %c3 = arith.constant 3 : index
    %c0_25 = arith.constant 0 : index
    %c0_26 = arith.constant 0 : index
    %25 = vector.load %arg2[%c3, %c0_25, %c0_26] : memref<9x4x256xf32, #tpu.memory_space<vmem>>, vector<1x4x256xf32>
    %26 = vector.shape_cast %25 : vector<1x4x256xf32> to vector<4x256xf32>
    %cst_27 = arith.constant dense<0.000000e+00> : vector<64x256xf32>
    %27 = tpu.matmul %24, %26, %cst_27 {dimension_numbers = #tpu.dot_dimension_numbers<[1], [0], [0], [1], [0, 0, 1, 1], [], []>} : vector<64x4xf32>, vector<4x256xf32>, vector<64x256xf32> -> vector<64x256xf32>
    %28 = arith.addf %21, %27 : vector<64x256xf32>
    %c0_28 = arith.constant 0 : index
    %c1_29 = arith.constant 1 : index
    %c1_30 = arith.constant 1 : index
    %c0_31 = arith.constant 0 : index
    %29 = vector.load %arg1[%c0_28, %c1_29, %c1_30, %c0_31] : memref<1x10x10x4xf32, #tpu.memory_space<vmem>>, vector<1x8x8x4xf32>
    %30 = vector.shape_cast %29 : vector<1x8x8x4xf32> to vector<8x8x4xf32>
    %31 = vector.shape_cast %30 : vector<8x8x4xf32> to vector<64x4xf32>
    %c4 = arith.constant 4 : index
    %c0_32 = arith.constant 0 : index
    %c0_33 = arith.constant 0 : index
    %32 = vector.load %arg2[%c4, %c0_32, %c0_33] : memref<9x4x256xf32, #tpu.memory_space<vmem>>, vector<1x4x256xf32>
    %33 = vector.shape_cast %32 : vector<1x4x256xf32> to vector<4x256xf32>
    %cst_34 = arith.constant dense<0.000000e+00> : vector<64x256xf32>
    %34 = tpu.matmul %31, %33, %cst_34 {dimension_numbers = #tpu.dot_dimension_numbers<[1], [0], [0], [1], [0, 0, 1, 1], [], []>} : vector<64x4xf32>, vector<4x256xf32>, vector<64x256xf32> -> vector<64x256xf32>
    %35 = arith.addf %28, %34 : vector<64x256xf32>
    %c0_35 = arith.constant 0 : index
    %c1_36 = arith.constant 1 : index
    %c2_37 = arith.constant 2 : index
    %c0_38 = arith.constant 0 : index
    %36 = vector.load %arg1[%c0_35, %c1_36, %c2_37, %c0_38] : memref<1x10x10x4xf32, #tpu.memory_space<vmem>>, vector<1x8x8x4xf32>
    %37 = vector.shape_cast %36 : vector<1x8x8x4xf32> to vector<8x8x4xf32>
    %38 = vector.shape_cast %37 : vector<8x8x4xf32> to vector<64x4xf32>
    %c5 = arith.constant 5 : index
    %c0_39 = arith.constant 0 : index
    %c0_40 = arith.constant 0 : index
    %39 = vector.load %arg2[%c5, %c0_39, %c0_40] : memref<9x4x256xf32, #tpu.memory_space<vmem>>, vector<1x4x256xf32>
    %40 = vector.shape_cast %39 : vector<1x4x256xf32> to vector<4x256xf32>
    %cst_41 = arith.constant dense<0.000000e+00> : vector<64x256xf32>
    %41 = tpu.matmul %38, %40, %cst_41 {dimension_numbers = #tpu.dot_dimension_numbers<[1], [0], [0], [1], [0, 0, 1, 1], [], []>} : vector<64x4xf32>, vector<4x256xf32>, vector<64x256xf32> -> vector<64x256xf32>
    %42 = arith.addf %35, %41 : vector<64x256xf32>
    %c0_42 = arith.constant 0 : index
    %c2_43 = arith.constant 2 : index
    %c0_44 = arith.constant 0 : index
    %c0_45 = arith.constant 0 : index
    %43 = vector.load %arg1[%c0_42, %c2_43, %c0_44, %c0_45] : memref<1x10x10x4xf32, #tpu.memory_space<vmem>>, vector<1x8x8x4xf32>
    %44 = vector.shape_cast %43 : vector<1x8x8x4xf32> to vector<8x8x4xf32>
    %45 = vector.shape_cast %44 : vector<8x8x4xf32> to vector<64x4xf32>
    %c6 = arith.constant 6 : index
    %c0_46 = arith.constant 0 : index
    %c0_47 = arith.constant 0 : index
    %46 = vector.load %arg2[%c6, %c0_46, %c0_47] : memref<9x4x256xf32, #tpu.memory_space<vmem>>, vector<1x4x256xf32>
    %47 = vector.shape_cast %46 : vector<1x4x256xf32> to vector<4x256xf32>
    %cst_48 = arith.constant dense<0.000000e+00> : vector<64x256xf32>
    %48 = tpu.matmul %45, %47, %cst_48 {dimension_numbers = #tpu.dot_dimension_numbers<[1], [0], [0], [1], [0, 0, 1, 1], [], []>} : vector<64x4xf32>, vector<4x256xf32>, vector<64x256xf32> -> vector<64x256xf32>
    %49 = arith.addf %42, %48 : vector<64x256xf32>
    %c0_49 = arith.constant 0 : index
    %c2_50 = arith.constant 2 : index
    %c1_51 = arith.constant 1 : index
    %c0_52 = arith.constant 0 : index
    %50 = vector.load %arg1[%c0_49, %c2_50, %c1_51, %c0_52] : memref<1x10x10x4xf32, #tpu.memory_space<vmem>>, vector<1x8x8x4xf32>
    %51 = vector.shape_cast %50 : vector<1x8x8x4xf32> to vector<8x8x4xf32>
    %52 = vector.shape_cast %51 : vector<8x8x4xf32> to vector<64x4xf32>
    %c7 = arith.constant 7 : index
    %c0_53 = arith.constant 0 : index
    %c0_54 = arith.constant 0 : index
    %53 = vector.load %arg2[%c7, %c0_53, %c0_54] : memref<9x4x256xf32, #tpu.memory_space<vmem>>, vector<1x4x256xf32>
    %54 = vector.shape_cast %53 : vector<1x4x256xf32> to vector<4x256xf32>
    %cst_55 = arith.constant dense<0.000000e+00> : vector<64x256xf32>
    %55 = tpu.matmul %52, %54, %cst_55 {dimension_numbers = #tpu.dot_dimension_numbers<[1], [0], [0], [1], [0, 0, 1, 1], [], []>} : vector<64x4xf32>, vector<4x256xf32>, vector<64x256xf32> -> vector<64x256xf32>
    %56 = arith.addf %49, %55 : vector<64x256xf32>
    %c0_56 = arith.constant 0 : index
    %c2_57 = arith.constant 2 : index
    %c2_58 = arith.constant 2 : index
    %c0_59 = arith.constant 0 : index
    %57 = vector.load %arg1[%c0_56, %c2_57, %c2_58, %c0_59] : memref<1x10x10x4xf32, #tpu.memory_space<vmem>>, vector<1x8x8x4xf32>
    %58 = vector.shape_cast %57 : vector<1x8x8x4xf32> to vector<8x8x4xf32>
    %59 = vector.shape_cast %58 : vector<8x8x4xf32> to vector<64x4xf32>
    %c8 = arith.constant 8 : index
    %c0_60 = arith.constant 0 : index
    %c0_61 = arith.constant 0 : index
    %60 = vector.load %arg2[%c8, %c0_60, %c0_61] : memref<9x4x256xf32, #tpu.memory_space<vmem>>, vector<1x4x256xf32>
    %61 = vector.shape_cast %60 : vector<1x4x256xf32> to vector<4x256xf32>
    %cst_62 = arith.constant dense<0.000000e+00> : vector<64x256xf32>
    %62 = tpu.matmul %59, %61, %cst_62 {dimension_numbers = #tpu.dot_dimension_numbers<[1], [0], [0], [1], [0, 0, 1, 1], [], []>} : vector<64x4xf32>, vector<4x256xf32>, vector<64x256xf32> -> vector<64x256xf32>
    %63 = arith.addf %56, %62 : vector<64x256xf32>
    %cst_63 = arith.constant 0.000000e+00 : f32
    %64 = vector.broadcast %cst_63 : f32 to vector<64x256xf32>
    %65 = arith.maximumf %63, %64 : vector<64x256xf32>
    %cst_64 = arith.constant 0.000000e+00 : f32
    %66 = vector.broadcast %cst_64 : f32 to vector<10x10x256xf32>
    %c0_65 = arith.constant 0 : index
    %c0_66 = arith.constant 0 : index
    %c0_67 = arith.constant 0 : index
    %67 = vector.load %arg5[%c0_65, %c0_66, %c0_67] : memref<10x10x256xf32, #tpu.memory_space<vmem>>, vector<10x10x256xf32>
    tpu.vector_store %arg5[%c0_65, %c0_66, %c0_67], %66 {strides = array<i32>} : memref<10x10x256xf32, #tpu.memory_space<vmem>>, vector<10x10x256xf32>,
    %68 = vector.shape_cast %65 : vector<64x256xf32> to vector<8x8x256xf32>
    %c1_68 = arith.constant 1 : index
    %c1_69 = arith.constant 1 : index
    %c0_70 = arith.constant 0 : index
    %69 = vector.load %arg5[%c1_68, %c1_69, %c0_70] : memref<10x10x256xf32, #tpu.memory_space<vmem>>, vector<8x8x256xf32>
    tpu.vector_store %arg5[%c1_68, %c1_69, %c0_70], %68 {strides = array<i32>} : memref<10x10x256xf32, #tpu.memory_space<vmem>>, vector<8x8x256xf32>,
    %cst_71 = arith.constant 0.000000e+00 : f32
    %70 = vector.broadcast %cst_71 : f32 to vector<64x4xf32>
    %c0_72 = arith.constant 0 : index
    %c0_73 = arith.constant 0 : index
    %c0_74 = arith.constant 0 : index
    %71 = vector.load %arg5[%c0_72, %c0_73, %c0_74] : memref<10x10x256xf32, #tpu.memory_space<vmem>>, vector<8x8x256xf32>
    %72 = vector.shape_cast %71 : vector<8x8x256xf32> to vector<64x256xf32>
    %c0_75 = arith.constant 0 : index
    %c0_76 = arith.constant 0 : index
    %c0_77 = arith.constant 0 : index
    %73 = vector.load %arg3[%c0_75, %c0_76, %c0_77] : memref<9x256x4xf32, #tpu.memory_space<vmem>>, vector<1x256x4xf32>
    %74 = vector.shape_cast %73 : vector<1x256x4xf32> to vector<256x4xf32>
    %cst_78 = arith.constant dense<0.000000e+00> : vector<64x4xf32>
    %75 = tpu.matmul %72, %74, %cst_78 {dimension_numbers = #tpu.dot_dimension_numbers<[1], [0], [0], [1], [0, 0, 1, 1], [], []>} : vector<64x256xf32>, vector<256x4xf32>, vector<64x4xf32> -> vector<64x4xf32>
    %76 = arith.addf %70, %75 : vector<64x4xf32>
    %c0_79 = arith.constant 0 : index
    %c1_80 = arith.constant 1 : index
    %c0_81 = arith.constant 0 : index
    %77 = vector.load %arg5[%c0_79, %c1_80, %c0_81] : memref<10x10x256xf32, #tpu.memory_space<vmem>>, vector<8x8x256xf32>
    %78 = vector.shape_cast %77 : vector<8x8x256xf32> to vector<64x256xf32>
    %c1_82 = arith.constant 1 : index
    %c0_83 = arith.constant 0 : index
    %c0_84 = arith.constant 0 : index
    %79 = vector.load %arg3[%c1_82, %c0_83, %c0_84] : memref<9x256x4xf32, #tpu.memory_space<vmem>>, vector<1x256x4xf32>
    %80 = vector.shape_cast %79 : vector<1x256x4xf32> to vector<256x4xf32>
    %cst_85 = arith.constant dense<0.000000e+00> : vector<64x4xf32>
    %81 = tpu.matmul %78, %80, %cst_85 {dimension_numbers = #tpu.dot_dimension_numbers<[1], [0], [0], [1], [0, 0, 1, 1], [], []>} : vector<64x256xf32>, vector<256x4xf32>, vector<64x4xf32> -> vector<64x4xf32>
    %82 = arith.addf %76, %81 : vector<64x4xf32>
    %c0_86 = arith.constant 0 : index
    %c2_87 = arith.constant 2 : index
    %c0_88 = arith.constant 0 : index
    %83 = vector.load %arg5[%c0_86, %c2_87, %c0_88] : memref<10x10x256xf32, #tpu.memory_space<vmem>>, vector<8x8x256xf32>
    %84 = vector.shape_cast %83 : vector<8x8x256xf32> to vector<64x256xf32>
    %c2_89 = arith.constant 2 : index
    %c0_90 = arith.constant 0 : index
    %c0_91 = arith.constant 0 : index
    %85 = vector.load %arg3[%c2_89, %c0_90, %c0_91] : memref<9x256x4xf32, #tpu.memory_space<vmem>>, vector<1x256x4xf32>
    %86 = vector.shape_cast %85 : vector<1x256x4xf32> to vector<256x4xf32>
    %cst_92 = arith.constant dense<0.000000e+00> : vector<64x4xf32>
    %87 = tpu.matmul %84, %86, %cst_92 {dimension_numbers = #tpu.dot_dimension_numbers<[1], [0], [0], [1], [0, 0, 1, 1], [], []>} : vector<64x256xf32>, vector<256x4xf32>, vector<64x4xf32> -> vector<64x4xf32>
    %88 = arith.addf %82, %87 : vector<64x4xf32>
    %c1_93 = arith.constant 1 : index
    %c0_94 = arith.constant 0 : index
    %c0_95 = arith.constant 0 : index
    %89 = vector.load %arg5[%c1_93, %c0_94, %c0_95] : memref<10x10x256xf32, #tpu.memory_space<vmem>>, vector<8x8x256xf32>
    %90 = vector.shape_cast %89 : vector<8x8x256xf32> to vector<64x256xf32>
    %c3_96 = arith.constant 3 : index
    %c0_97 = arith.constant 0 : index
    %c0_98 = arith.constant 0 : index
    %91 = vector.load %arg3[%c3_96, %c0_97, %c0_98] : memref<9x256x4xf32, #tpu.memory_space<vmem>>, vector<1x256x4xf32>
    %92 = vector.shape_cast %91 : vector<1x256x4xf32> to vector<256x4xf32>
    %cst_99 = arith.constant dense<0.000000e+00> : vector<64x4xf32>
    %93 = tpu.matmul %90, %92, %cst_99 {dimension_numbers = #tpu.dot_dimension_numbers<[1], [0], [0], [1], [0, 0, 1, 1], [], []>} : vector<64x256xf32>, vector<256x4xf32>, vector<64x4xf32> -> vector<64x4xf32>
    %94 = arith.addf %88, %93 : vector<64x4xf32>
    %c1_100 = arith.constant 1 : index
    %c1_101 = arith.constant 1 : index
    %c0_102 = arith.constant 0 : index
    %95 = vector.load %arg5[%c1_100, %c1_101, %c0_102] : memref<10x10x256xf32, #tpu.memory_space<vmem>>, vector<8x8x256xf32>
    %96 = vector.shape_cast %95 : vector<8x8x256xf32> to vector<64x256xf32>
    %c4_103 = arith.constant 4 : index
    %c0_104 = arith.constant 0 : index
    %c0_105 = arith.constant 0 : index
    %97 = vector.load %arg3[%c4_103, %c0_104, %c0_105] : memref<9x256x4xf32, #tpu.memory_space<vmem>>, vector<1x256x4xf32>
    %98 = vector.shape_cast %97 : vector<1x256x4xf32> to vector<256x4xf32>
    %cst_106 = arith.constant dense<0.000000e+00> : vector<64x4xf32>
    %99 = tpu.matmul %96, %98, %cst_106 {dimension_numbers = #tpu.dot_dimension_numbers<[1], [0], [0], [1], [0, 0, 1, 1], [], []>} : vector<64x256xf32>, vector<256x4xf32>, vector<64x4xf32> -> vector<64x4xf32>
    %100 = arith.addf %94, %99 : vector<64x4xf32>
    %c1_107 = arith.constant 1 : index
    %c2_108 = arith.constant 2 : index
    %c0_109 = arith.constant 0 : index
    %101 = vector.load %arg5[%c1_107, %c2_108, %c0_109] : memref<10x10x256xf32, #tpu.memory_space<vmem>>, vector<8x8x256xf32>
    %102 = vector.shape_cast %101 : vector<8x8x256xf32> to vector<64x256xf32>
    %c5_110 = arith.constant 5 : index
    %c0_111 = arith.constant 0 : index
    %c0_112 = arith.constant 0 : index
    %103 = vector.load %arg3[%c5_110, %c0_111, %c0_112] : memref<9x256x4xf32, #tpu.memory_space<vmem>>, vector<1x256x4xf32>
    %104 = vector.shape_cast %103 : vector<1x256x4xf32> to vector<256x4xf32>
    %cst_113 = arith.constant dense<0.000000e+00> : vector<64x4xf32>
    %105 = tpu.matmul %102, %104, %cst_113 {dimension_numbers = #tpu.dot_dimension_numbers<[1], [0], [0], [1], [0, 0, 1, 1], [], []>} : vector<64x256xf32>, vector<256x4xf32>, vector<64x4xf32> -> vector<64x4xf32>
    %106 = arith.addf %100, %105 : vector<64x4xf32>
    %c2_114 = arith.constant 2 : index
    %c0_115 = arith.constant 0 : index
    %c0_116 = arith.constant 0 : index
    %107 = vector.load %arg5[%c2_114, %c0_115, %c0_116] : memref<10x10x256xf32, #tpu.memory_space<vmem>>, vector<8x8x256xf32>
    %108 = vector.shape_cast %107 : vector<8x8x256xf32> to vector<64x256xf32>
    %c6_117 = arith.constant 6 : index
    %c0_118 = arith.constant 0 : index
    %c0_119 = arith.constant 0 : index
    %109 = vector.load %arg3[%c6_117, %c0_118, %c0_119] : memref<9x256x4xf32, #tpu.memory_space<vmem>>, vector<1x256x4xf32>
    %110 = vector.shape_cast %109 : vector<1x256x4xf32> to vector<256x4xf32>
    %cst_120 = arith.constant dense<0.000000e+00> : vector<64x4xf32>
    %111 = tpu.matmul %108, %110, %cst_120 {dimension_numbers = #tpu.dot_dimension_numbers<[1], [0], [0], [1], [0, 0, 1, 1], [], []>} : vector<64x256xf32>, vector<256x4xf32>, vector<64x4xf32> -> vector<64x4xf32>
    %112 = arith.addf %106, %111 : vector<64x4xf32>
    %c2_121 = arith.constant 2 : index
    %c1_122 = arith.constant 1 : index
    %c0_123 = arith.constant 0 : index
    %113 = vector.load %arg5[%c2_121, %c1_122, %c0_123] : memref<10x10x256xf32, #tpu.memory_space<vmem>>, vector<8x8x256xf32>
    %114 = vector.shape_cast %113 : vector<8x8x256xf32> to vector<64x256xf32>
    %c7_124 = arith.constant 7 : index
    %c0_125 = arith.constant 0 : index
    %c0_126 = arith.constant 0 : index
    %115 = vector.load %arg3[%c7_124, %c0_125, %c0_126] : memref<9x256x4xf32, #tpu.memory_space<vmem>>, vector<1x256x4xf32>
    %116 = vector.shape_cast %115 : vector<1x256x4xf32> to vector<256x4xf32>
    %cst_127 = arith.constant dense<0.000000e+00> : vector<64x4xf32>
    %117 = tpu.matmul %114, %116, %cst_127 {dimension_numbers = #tpu.dot_dimension_numbers<[1], [0], [0], [1], [0, 0, 1, 1], [], []>} : vector<64x256xf32>, vector<256x4xf32>, vector<64x4xf32> -> vector<64x4xf32>
    %118 = arith.addf %112, %117 : vector<64x4xf32>
    %c2_128 = arith.constant 2 : index
    %c2_129 = arith.constant 2 : index
    %c0_130 = arith.constant 0 : index
    %119 = vector.load %arg5[%c2_128, %c2_129, %c0_130] : memref<10x10x256xf32, #tpu.memory_space<vmem>>, vector<8x8x256xf32>
    %120 = vector.shape_cast %119 : vector<8x8x256xf32> to vector<64x256xf32>
    %c8_131 = arith.constant 8 : index
    %c0_132 = arith.constant 0 : index
    %c0_133 = arith.constant 0 : index
    %121 = vector.load %arg3[%c8_131, %c0_132, %c0_133] : memref<9x256x4xf32, #tpu.memory_space<vmem>>, vector<1x256x4xf32>
    %122 = vector.shape_cast %121 : vector<1x256x4xf32> to vector<256x4xf32>
    %cst_134 = arith.constant dense<0.000000e+00> : vector<64x4xf32>
    %123 = tpu.matmul %120, %122, %cst_134 {dimension_numbers = #tpu.dot_dimension_numbers<[1], [0], [0], [1], [0, 0, 1, 1], [], []>} : vector<64x256xf32>, vector<256x4xf32>, vector<64x4xf32> -> vector<64x4xf32>
    %124 = arith.addf %118, %123 : vector<64x4xf32>
    %cst_135 = arith.constant 0.000000e+00 : f32
    %125 = vector.broadcast %cst_135 : f32 to vector<64x4xf32>
    %126 = arith.maximumf %124, %125 : vector<64x4xf32>
    %127 = vector.shape_cast %126 : vector<64x4xf32> to vector<8x8x4xf32>
    %c0_136 = arith.constant 0 : index
    %c0_137 = arith.constant 0 : index
    %c0_138 = arith.constant 0 : index
    %c0_139 = arith.constant 0 : index
    %128 = vector.load %arg4[%c0_136, %c0_137, %c0_138, %c0_139] : memref<1x8x8x4xf32, #tpu.memory_space<vmem>>, vector<1x8x8x4xf32>
    %129 = vector.shape_cast %128 : vector<1x8x8x4xf32> to vector<8x8x4xf32>
    %130 = vector.shape_cast %127 : vector<8x8x4xf32> to vector<1x8x8x4xf32>
    tpu.vector_store %arg4[%c0_136, %c0_137, %c0_138, %c0_139], %130 {strides = array<i32>} : memref<1x8x8x4xf32, #tpu.memory_space<vmem>>, vector<1x8x8x4xf32>,
    return
  }
  func.func @transform_0(%arg0: i32) -> (i32, i32, i32, i32) {
    %c0_i32 = arith.constant 0 : i32
    %c0_i32_0 = arith.constant 0 : i32
    %c0_i32_1 = arith.constant 0 : i32
    %c0_i32_2 = arith.constant 0 : i32
    return %arg0, %c0_i32, %c0_i32_0, %c0_i32_1 : i32, i32, i32, i32
  }
  func.func @transform_1(%arg0: i32) -> (i32, i32, i32) {
    %c0_i32 = arith.constant 0 : i32
    %c0_i32_0 = arith.constant 0 : i32
    %c0_i32_1 = arith.constant 0 : i32
    %c0_i32_2 = arith.constant 0 : i32
    return %c0_i32, %c0_i32_0, %c0_i32_1 : i32, i32, i32
  }
  func.func @transform_2(%arg0: i32) -> (i32, i32, i32) {
    %c0_i32 = arith.constant 0 : i32
    %c0_i32_0 = arith.constant 0 : i32
    %c0_i32_1 = arith.constant 0 : i32
    %c0_i32_2 = arith.constant 0 : i32
    return %c0_i32, %c0_i32_0, %c0_i32_1 : i32, i32, i32
  }
  func.func @transform_3(%arg0: i32) -> (i32, i32, i32, i32) {
    %c0_i32 = arith.constant 0 : i32
    %c0_i32_0 = arith.constant 0 : i32
    %c0_i32_1 = arith.constant 0 : i32
    %c0_i32_2 = arith.constant 0 : i32
    return %arg0, %c0_i32, %c0_i32_0, %c0_i32_1 : i32, i32, i32, i32
  }
}

module attributes {stable_mosaic.version = 11 : i64} {
  func.func @_head_decoder_kernel(%arg0: memref<2x256xf32, #tpu.memory_space<vmem>>, %arg1: memref<256x8xf32, #tpu.memory_space<vmem>>, %arg2: memref<1x8xf32, #tpu.memory_space<vmem>>, %arg3: memref<2x4xf32, #tpu.memory_space<vmem>>, %arg4: memref<4x256xf32, #tpu.memory_space<vmem>>, %arg5: memref<1x256xf32, #tpu.memory_space<vmem>>, %arg6: memref<256x100xf32, #tpu.memory_space<vmem>>, %arg7: memref<1x100xf32, #tpu.memory_space<vmem>>, %arg8: memref<100x1875xf32, #tpu.memory_space<vmem>>, %arg9: memref<2x8xf32, #tpu.memory_space<vmem>>, %arg10: memref<2x1875xf32, #tpu.memory_space<vmem>>) attributes {dimension_semantics = [], scalar_prefetch = 0 : i64, scratch_operands = 0 : i64, tpu.core_type = #tpu.core_type<tc>} {
    %c0 = arith.constant 0 : index
    %c0_0 = arith.constant 0 : index
    %0 = vector.load %arg0[%c0, %c0_0] : memref<2x256xf32, #tpu.memory_space<vmem>>, vector<2x256xf32>
    %c0_1 = arith.constant 0 : index
    %c0_2 = arith.constant 0 : index
    %1 = vector.load %arg1[%c0_1, %c0_2] : memref<256x8xf32, #tpu.memory_space<vmem>>, vector<256x8xf32>
    %cst = arith.constant dense<0.000000e+00> : vector<2x8xf32>
    %2 = tpu.matmul %0, %1, %cst {dimension_numbers = #tpu.dot_dimension_numbers<[1], [0], [0], [1], [0, 0, 1, 1], [], []>} : vector<2x256xf32>, vector<256x8xf32>, vector<2x8xf32> -> vector<2x8xf32>
    %c0_3 = arith.constant 0 : index
    %c0_4 = arith.constant 0 : index
    %3 = vector.load %arg2[%c0_3, %c0_4] : memref<1x8xf32, #tpu.memory_space<vmem>>, vector<1x8xf32>
    %4 = vector.broadcast %3 : vector<1x8xf32> to vector<2x8xf32>
    %5 = arith.addf %2, %4 : vector<2x8xf32>
    %6 = vector.extract_strided_slice %5 {offsets = [0, 0], sizes = [2, 4], strides = [1, 1]} : vector<2x8xf32> to vector<2x4xf32>
    %7 = vector.extract_strided_slice %5 {offsets = [0, 4], sizes = [2, 4], strides = [1, 1]} : vector<2x8xf32> to vector<2x4xf32>
    %cst_5 = arith.constant 5.000000e-01 : f32
    %8 = vector.broadcast %cst_5 : f32 to vector<2x4xf32>
    %9 = arith.mulf %8, %7 : vector<2x4xf32>
    %10 = math.exp %9 : vector<2x4xf32>
    %c0_6 = arith.constant 0 : index
    %c0_7 = arith.constant 0 : index
    %11 = vector.load %arg3[%c0_6, %c0_7] : memref<2x4xf32, #tpu.memory_space<vmem>>, vector<2x4xf32>
    %12 = arith.mulf %10, %11 : vector<2x4xf32>
    %13 = arith.addf %6, %12 : vector<2x4xf32>
    %c0_8 = arith.constant 0 : index
    %c0_9 = arith.constant 0 : index
    %14 = vector.load %arg4[%c0_8, %c0_9] : memref<4x256xf32, #tpu.memory_space<vmem>>, vector<4x256xf32>
    %cst_10 = arith.constant dense<0.000000e+00> : vector<2x256xf32>
    %15 = tpu.matmul %13, %14, %cst_10 {dimension_numbers = #tpu.dot_dimension_numbers<[1], [0], [0], [1], [0, 0, 1, 1], [], []>} : vector<2x4xf32>, vector<4x256xf32>, vector<2x256xf32> -> vector<2x256xf32>
    %c0_11 = arith.constant 0 : index
    %c0_12 = arith.constant 0 : index
    %16 = vector.load %arg5[%c0_11, %c0_12] : memref<1x256xf32, #tpu.memory_space<vmem>>, vector<1x256xf32>
    %17 = vector.broadcast %16 : vector<1x256xf32> to vector<2x256xf32>
    %18 = arith.addf %15, %17 : vector<2x256xf32>
    %c0_13 = arith.constant 0 : index
    %c0_14 = arith.constant 0 : index
    %19 = vector.load %arg6[%c0_13, %c0_14] : memref<256x100xf32, #tpu.memory_space<vmem>>, vector<256x100xf32>
    %cst_15 = arith.constant dense<0.000000e+00> : vector<2x100xf32>
    %20 = tpu.matmul %18, %19, %cst_15 {dimension_numbers = #tpu.dot_dimension_numbers<[1], [0], [0], [1], [0, 0, 1, 1], [], []>} : vector<2x256xf32>, vector<256x100xf32>, vector<2x100xf32> -> vector<2x100xf32>
    %c0_16 = arith.constant 0 : index
    %c0_17 = arith.constant 0 : index
    %21 = vector.load %arg7[%c0_16, %c0_17] : memref<1x100xf32, #tpu.memory_space<vmem>>, vector<1x100xf32>
    %22 = vector.broadcast %21 : vector<1x100xf32> to vector<2x100xf32>
    %23 = arith.addf %20, %22 : vector<2x100xf32>
    %cst_18 = arith.constant 0.000000e+00 : f32
    %24 = vector.broadcast %cst_18 : f32 to vector<2x100xf32>
    %25 = arith.maximumf %23, %24 : vector<2x100xf32>
    %c0_19 = arith.constant 0 : index
    %c0_20 = arith.constant 0 : index
    %26 = vector.load %arg8[%c0_19, %c0_20] : memref<100x1875xf32, #tpu.memory_space<vmem>>, vector<100x1875xf32>
    %cst_21 = arith.constant dense<0.000000e+00> : vector<2x1875xf32>
    %27 = tpu.matmul %25, %26, %cst_21 {dimension_numbers = #tpu.dot_dimension_numbers<[1], [0], [0], [1], [0, 0, 1, 1], [], []>} : vector<2x100xf32>, vector<100x1875xf32>, vector<2x1875xf32> -> vector<2x1875xf32>
    %c0_22 = arith.constant 0 : index
    %c0_23 = arith.constant 0 : index
    %28 = vector.load %arg10[%c0_22, %c0_23] : memref<2x1875xf32, #tpu.memory_space<vmem>>, vector<2x1875xf32>
    tpu.vector_store %arg10[%c0_22, %c0_23], %27 {strides = array<i32>} : memref<2x1875xf32, #tpu.memory_space<vmem>>, vector<2x1875xf32>,
    %c0_24 = arith.constant 0 : index
    %c0_25 = arith.constant 0 : index
    %29 = vector.load %arg9[%c0_24, %c0_25] : memref<2x8xf32, #tpu.memory_space<vmem>>, vector<2x8xf32>
    tpu.vector_store %arg9[%c0_24, %c0_25], %5 {strides = array<i32>} : memref<2x8xf32, #tpu.memory_space<vmem>>, vector<2x8xf32>,
    return
  }
}

</mosaic_0001>

<llo_original>
// kernel: vae_forward.3
$region0: #{vae_forward.3}
  #allocation0 [shape = 'u32[]', space=smem, size = 0x4, offset = 0x4, fixed_abs, tag = 'smem constant byte address 0x4 - core index']
  #allocation1 [shape = 'u32[144,128]{1,0:T(1,128)}', space=vmem, size = 0x12000, scoped, tag = 'internal scratch']
  %s0 = inlined_call_operand.vmem [shape: f32[2,256], index: 0, kind: input, shape index: {}]
  %s1 = inlined_call_operand.vmem [shape: f32[256,8], index: 1, kind: input, shape index: {}]
  %s2 = inlined_call_operand.vmem [shape: f32[1,8], index: 2, kind: input, shape index: {}]
  %s3 = inlined_call_operand.vmem [shape: f32[2,4], index: 3, kind: input, shape index: {}]
  %s4 = inlined_call_operand.vmem [shape: f32[4,256], index: 4, kind: input, shape index: {}]
  %s5 = inlined_call_operand.vmem [shape: f32[1,256], index: 5, kind: input, shape index: {}]
  %s6 = inlined_call_operand.vmem [shape: f32[256,100], index: 6, kind: input, shape index: {}]
  %s7 = inlined_call_operand.vmem [shape: f32[1,100], index: 7, kind: input, shape index: {}]
  %s8 = inlined_call_operand.vmem [shape: f32[100,1875], index: 8, kind: input, shape index: {}]
  %s9 = inlined_call_operand.vmem [shape: f32[2,8], index: 9, kind: output, shape index: {0}]
  %s10 = inlined_call_operand.vmem [shape: f32[2,1875], index: 10, kind: output, shape index: {1}]
  %11 = xla_tuple %s9, %s10
  %s12 = sld [smem:[#allocation0]]
  $region54: #{vae_forward.3} parent=0
    _
  %s14 = ssub.s32 1, %s12
  %s15 = scalar_select 0, %s14, %s12
  // Predicated region
  $region2: #{vae_forward.3} parent=0 // pred_check
    _
  $region3: #{vae_forward.3} parent=0 // pred_check_branch
    %17 = sbr.rel (0) target = $region5
  $region4: #{vae_forward.3} parent=0 // pred_region
    _
  $region5: #{vae_forward.3} parent=0 // pred_fallthru
    _
  // Predicated region
  $region6: #{vae_forward.3} parent=0 // pred_check
    _
  $region7: #{vae_forward.3} parent=0 // pred_check_branch
    %19 = sbr.rel (0) target = $region9
  $region8: #{vae_forward.3} parent=0 // pred_region
    _
  $region9: #{vae_forward.3} parent=0 // pred_fallthru
    _
  // Predicated region
  $region10: #{vae_forward.3} parent=0 // pred_check
    _
  $region11: #{vae_forward.3} parent=0 // pred_check_branch
    %21 = sbr.rel (0) target = $region13
  $region12: #{vae_forward.3} parent=0 // pred_region
    _
  $region13: #{vae_forward.3} parent=0 // pred_fallthru
    _
  // Predicated region
  $region14: #{vae_forward.3} parent=0 // pred_check
    _
  $region15: #{vae_forward.3} parent=0 // pred_check_branch
    %23 = sbr.rel (0) target = $region17
  $region16: #{vae_forward.3} parent=0 // pred_region
    _
  $region17: #{vae_forward.3} parent=0 // pred_fallthru
    _
  // Predicated region
  $region18: #{vae_forward.3} parent=0 // pred_check
    _
  $region19: #{vae_forward.3} parent=0 // pred_check_branch
    %25 = sbr.rel (0) target = $region21
  $region20: #{vae_forward.3} parent=0 // pred_region
    _
  $region21: #{vae_forward.3} parent=0 // pred_fallthru
    _
  // Predicated region
  $region22: #{vae_forward.3} parent=0 // pred_check
    _
  $region23: #{vae_forward.3} parent=0 // pred_check_branch
    %27 = sbr.rel (0) target = $region25
  $region24: #{vae_forward.3} parent=0 // pred_region
    _
  $region25: #{vae_forward.3} parent=0 // pred_fallthru
    _
  // Predicated region
  $region26: #{vae_forward.3} parent=0 // pred_check
    _
  $region27: #{vae_forward.3} parent=0 // pred_check_branch
    %29 = sbr.rel (0) target = $region29
  $region28: #{vae_forward.3} parent=0 // pred_region
    _
  $region29: #{vae_forward.3} parent=0 // pred_fallthru
    _
  // Predicated region
  $region30: #{vae_forward.3} parent=0 // pred_check
    _
  $region31: #{vae_forward.3} parent=0 // pred_check_branch
    %31 = sbr.rel (0) target = $region33
  $region32: #{vae_forward.3} parent=0 // pred_region
    _
  $region33: #{vae_forward.3} parent=0 // pred_fallthru
    _
  // Predicated region
  $region34: #{vae_forward.3} parent=0 // pred_check
    _
  $region35: #{vae_forward.3} parent=0 // pred_check_branch
    %33 = sbr.rel (0) target = $region37
  $region36: #{vae_forward.3} parent=0 // pred_region
    _
  $region37: #{vae_forward.3} parent=0 // pred_fallthru
    _
  %v34 = vld [vmem:[%s0] sm:$0xf]
  %v35 = vld [vmem:[%s1] sm:$0xff]
  %v36 = vld [vmem:[%s1 + $0x8] sm:$0xff]
  %v37 = vld [vmem:[%s1 + $0x10] sm:$0xff]
  %v38 = vld [vmem:[%s1 + $0x18] sm:$0xff]
  %v39 = vld [vmem:[%s1 + $0x20] sm:$0xff]
  %v40 = vld [vmem:[%s1 + $0x28] sm:$0xff]
  %v41 = vld [vmem:[%s1 + $0x30] sm:$0xff]
  %v42 = vld [vmem:[%s1 + $0x38] sm:$0xff]
  %v43 = vld [vmem:[%s1 + $0x40] sm:$0xff]
  %v44 = vld [vmem:[%s1 + $0x48] sm:$0xff]
  %v45 = vld [vmem:[%s1 + $0x50] sm:$0xff]
  %v46 = vld [vmem:[%s1 + $0x58] sm:$0xff]
  %v47 = vld [vmem:[%s1 + $0x60] sm:$0xff]
  %v48 = vld [vmem:[%s1 + $0x68] sm:$0xff]
  %v49 = vld [vmem:[%s1 + $0x70] sm:$0xff]
  %v50 = vld [vmem:[%s1 + $0x78] sm:$0xff]
  %v51 = vld [vmem:[%s1 + $0x80] sm:$0xff]
  %v52 = vld [vmem:[%s1 + $0x88] sm:$0xff]
  %v53 = vld [vmem:[%s1 + $0x90] sm:$0xff]
  %v54 = vld [vmem:[%s1 + $0x98] sm:$0xff]
  %v55 = vld [vmem:[%s1 + $0xa0] sm:$0xff]
  %v56 = vld [vmem:[%s1 + $0xa8] sm:$0xff]
  %v57 = vld [vmem:[%s1 + $0xb0] sm:$0xff]
  %v58 = vld [vmem:[%s1 + $0xb8] sm:$0xff]
  %v59 = vld [vmem:[%s1 + $0xc0] sm:$0xff]
  %v60 = vld [vmem:[%s1 + $0xc8] sm:$0xff]
  %v61 = vld [vmem:[%s1 + $0xd0] sm:$0xff]
  %v62 = vld [vmem:[%s1 + $0xd8] sm:$0xff]
  %v63 = vld [vmem:[%s1 + $0xe0] sm:$0xff]
  %v64 = vld [vmem:[%s1 + $0xe8] sm:$0xff]
  %v65 = vld [vmem:[%s1 + $0xf0] sm:$0xff]
  %v66 = vld [vmem:[%s1 + $0xf8] sm:$0xff]
  %v67 = vld [vmem:[%s2] sm:$0x1]
  %v69 = vlaneseq
  %v70 = vshrl.u32 %v69, 7
  %v71 = vsub.s32 0, %v70
  %v72 = vrot.slane %v67, %v71
  %v76 = vunpack.c.l.s4 1983009808
  %v77 = vunpack.c.0.s8 %v76
  %v78 = vlaneseq
  %v79 = vshrl.u32 %v78, 7
  %v80 = vsub.s32 %v77, %v79
  %v81 = vrot.slane %v34, %v80
  %v82 = vcombine.high %v81, %v81
  %85 = vmatprep.subr.mxu0 0.0
  %86 = vmatpush1.msra.mxu0 %v35
  %87 = vmatprep.subr.mxu0 0.0
  %88 = vmatpush1.msra.mxu0 %v36
  %89 = vmatprep.subr.mxu0 0.0
  %90 = vmatpush1.msra.mxu0 %v37
  %91 = vmatprep.subr.mxu0 0.0
  %92 = vmatpush1.msra.mxu0 %v38
  %93 = vmatprep.subr.mxu0 0.0
  %94 = vmatpush1.msra.mxu0 %v39
  %95 = vmatprep.subr.mxu0 0.0
  %96 = vmatpush1.msra.mxu0 %v40
  %97 = vmatprep.subr.mxu0 0.0
  %98 = vmatpush1.msra.mxu0 %v41
  %99 = vmatprep.subr.mxu0 0.0
  %100 = vmatpush1.msra.mxu0 %v42
  %101 = vmatprep.subr.mxu0 0.0
  %102 = vmatpush1.msra.mxu0 %v43
  %103 = vmatprep.subr.mxu0 0.0
  %104 = vmatpush1.msra.mxu0 %v44
  %105 = vmatprep.subr.mxu0 0.0
  %106 = vmatpush1.msra.mxu0 %v45
  %107 = vmatprep.subr.mxu0 0.0
  %108 = vmatpush1.msra.mxu0 %v46
  %109 = vmatprep.subr.mxu0 0.0
  %110 = vmatpush1.msra.mxu0 %v47
  %111 = vmatprep.subr.mxu0 0.0
  %112 = vmatpush1.msra.mxu0 %v48
  %113 = vmatprep.subr.mxu0 0.0
  %114 = vmatpush1.msra.mxu0 %v49
  %115 = vmatprep.subr.mxu0 0.0
  %116 = vmatpush1.msra.mxu0 %v50
  %117 = vmatprep.subr.mxu0 0.0
  %118 = vmatpush1.msra.mxu0 %v51
  %119 = vmatprep.subr.mxu0 0.0
  %120 = vmatpush1.msra.mxu0 %v52
  %121 = vmatprep.subr.mxu0 0.0
  %122 = vmatpush1.msra.mxu0 %v53
  %123 = vmatprep.subr.mxu0 0.0
  %124 = vmatpush1.msra.mxu0 %v54
  %125 = vmatprep.subr.mxu0 0.0
  %126 = vmatpush1.msra.mxu0 %v55
  %127 = vmatprep.subr.mxu0 0.0
  %128 = vmatpush1.msra.mxu0 %v56
  %129 = vmatprep.subr.mxu0 0.0
  %130 = vmatpush1.msra.mxu0 %v57
  %131 = vmatprep.subr.mxu0 0.0
  %132 = vmatpush1.msra.mxu0 %v58
  %133 = vmatprep.subr.mxu0 0.0
  %134 = vmatpush1.msra.mxu0 %v59
  %135 = vmatprep.subr.mxu0 0.0
  %136 = vmatpush1.msra.mxu0 %v60
  %137 = vmatprep.subr.mxu0 0.0
  %138 = vmatpush1.msra.mxu0 %v61
  %139 = vmatprep.subr.mxu0 0.0
  %140 = vmatpush1.msra.mxu0 %v62
  %141 = vmatprep.subr.mxu0 0.0
  %142 = vmatpush1.msra.mxu0 %v63
  %143 = vmatprep.subr.mxu0 0.0
  %144 = vmatpush1.msra.mxu0 %v64
  %145 = vmatprep.subr.mxu0 0.0
  %146 = vmatpush1.msra.mxu0 %v65
  %147 = vmatprep.subr.mxu0 0.0
  %148 = vmatpush1.msra.mxu0 %v66
  %149 = vmatprep.mubr.f32.mxu0 %v82
  %150 = vmatmul.mubr.f32.gmra.mrb[0].mxu0 %v81
  %v151 = vpop.f32.mrb[0].mxu0
  %v152 = vadd.f32 %v72, %v151
  %v153 = vpop.f32.mrb[0].mxu0
  %154 = vdwg.mxu0
  %v155 = vmul.f32 %v152, 0.5
  %v156 = vmul.f32 %v155, 1.442695
  %v157 = vpow.pop %v156
  %v158 = vld [vmem:[%s3] sm:$0x3]
  %160 = vrot.lane.b32.xlu0 %v158, 4
  %v161 = vpop.permute.xlu0 %160
  %v163 = vmul.f32 %v157, %v161
  %165 = vrot.lane.b32.xlu0 %v163, 124
  %v166 = vpop.permute.xlu0 %165
  %v168 = vadd.f32 %v152, %v166
  %v169 = vld [vmem:[%s4] sm:$0xff]
  %v170 = vld [vmem:[%s5] sm:$0x3]
  %v172 = vlaneseq
  %v173 = vshrl.u32 %v172, 7
  %v174 = vsub.s32 0, %v173
  %v175 = vrot.slane %v170, %v174
  %v176 = vlaneseq
  %v177 = vshrl.u32 %v176, 7
  %v178 = vsub.s32 1, %v177
  %v179 = vrot.slane %v170, %v178
  %v183 = vcombine.high %v169, %v169
  %vm184 = vcmask 31744
  %v186 = vsel %vm184, %v168, 0
  %vm188 = vcmask 1043456
  %v189 = vsel %vm188, %v169, 0
  %v191 = vsel %vm188, %v183, 0
  %193 = vmatprep.subr.mxu0 %v191
  %194 = vmatpush1.msra.mxu0 %v189
  %195 = vmatprep.subr.mxu0 0.0
  %196 = vmatpush1.msra.mxu0 0.0
  %197 = vmatprep.subr.mxu0 0.0
  %198 = vmatpush1.msra.mxu0 0.0
  %199 = vmatprep.subr.mxu0 0.0
  %200 = vmatpush1.msra.mxu0 0.0
  %201 = vmatprep.subr.mxu0 0.0
  %202 = vmatpush1.msra.mxu0 0.0
  %203 = vmatprep.subr.mxu0 0.0
  %204 = vmatpush1.msra.mxu0 0.0
  %205 = vmatprep.subr.mxu0 0.0
  %206 = vmatpush1.msra.mxu0 0.0
  %207 = vmatprep.subr.mxu0 0.0
  %208 = vmatpush1.msra.mxu0 0.0
  %209 = vmatprep.subr.mxu0 0.0
  %210 = vmatpush1.msra.mxu0 0.0
  %211 = vmatprep.subr.mxu0 0.0
  %212 = vmatpush1.msra.mxu0 0.0
  %213 = vmatprep.subr.mxu0 0.0
  %214 = vmatpush1.msra.mxu0 0.0
  %215 = vmatprep.subr.mxu0 0.0
  %216 = vmatpush1.msra.mxu0 0.0
  %217 = vmatprep.subr.mxu0 0.0
  %218 = vmatpush1.msra.mxu0 0.0
  %219 = vmatprep.subr.mxu0 0.0
  %220 = vmatpush1.msra.mxu0 0.0
  %221 = vmatprep.subr.mxu0 0.0
  %222 = vmatpush1.msra.mxu0 0.0
  %223 = vmatprep.subr.mxu0 0.0
  %224 = vmatpush1.msra.mxu0 0.0
  %225 = vmatprep.subr.mxu0 0.0
  %226 = vmatpush1.msra.mxu0 0.0
  %227 = vmatprep.subr.mxu0 0.0
  %228 = vmatpush1.msra.mxu0 0.0
  %229 = vmatprep.subr.mxu0 0.0
  %230 = vmatpush1.msra.mxu0 0.0
  %231 = vmatprep.subr.mxu0 0.0
  %232 = vmatpush1.msra.mxu0 0.0
  %233 = vmatprep.subr.mxu0 0.0
  %234 = vmatpush1.msra.mxu0 0.0
  %235 = vmatprep.subr.mxu0 0.0
  %236 = vmatpush1.msra.mxu0 0.0
  %237 = vmatprep.subr.mxu0 0.0
  %238 = vmatpush1.msra.mxu0 0.0
  %239 = vmatprep.subr.mxu0 0.0
  %240 = vmatpush1.msra.mxu0 0.0
  %241 = vmatprep.subr.mxu0 0.0
  %242 = vmatpush1.msra.mxu0 0.0
  %243 = vmatprep.subr.mxu0 0.0
  %244 = vmatpush1.msra.mxu0 0.0
  %245 = vmatprep.subr.mxu0 0.0
  %246 = vmatpush1.msra.mxu0 0.0
  %247 = vmatprep.subr.mxu0 0.0
  %248 = vmatpush1.msra.mxu0 0.0
  %249 = vmatprep.subr.mxu0 0.0
  %250 = vmatpush1.msra.mxu0 0.0
  %251 = vmatprep.subr.mxu0 0.0
  %252 = vmatpush1.msra.mxu0 0.0
  %253 = vmatprep.subr.mxu0 0.0
  %254 = vmatpush1.msra.mxu0 0.0
  %255 = vmatprep.subr.mxu0 0.0
  %256 = vmatpush1.msra.mxu0 0.0
  %257 = vmatprep.mubr.f32.mxu0 0.0
  %258 = vmatmul.mubr.f32.gmra.mrb[0].mxu0 %v186
  %v259 = vpop.f32.mrb[0].mxu0
  %v260 = vadd.f32 %v175, %v259
  %v261 = vpop.f32.mrb[0].mxu0
  %v262 = vadd.f32 %v179, %v261
  %263 = vdwg.mxu0
  %v264 = vld [vmem:[%s6] sm:$0xff]
  %v265 = vld [vmem:[%s6 + $0x8] sm:$0xff]
  %v266 = vld [vmem:[%s6 + $0x10] sm:$0xff]
  %v267 = vld [vmem:[%s6 + $0x18] sm:$0xff]
  %v268 = vld [vmem:[%s6 + $0x20] sm:$0xff]
  %v269 = vld [vmem:[%s6 + $0x28] sm:$0xff]
  %v270 = vld [vmem:[%s6 + $0x30] sm:$0xff]
  %v271 = vld [vmem:[%s6 + $0x38] sm:$0xff]
  %v272 = vld [vmem:[%s6 + $0x40] sm:$0xff]
  %v273 = vld [vmem:[%s6 + $0x48] sm:$0xff]
  %v274 = vld [vmem:[%s6 + $0x50] sm:$0xff]
  %v275 = vld [vmem:[%s6 + $0x58] sm:$0xff]
  %v276 = vld [vmem:[%s6 + $0x60] sm:$0xff]
  %v277 = vld [vmem:[%s6 + $0x68] sm:$0xff]
  %v278 = vld [vmem:[%s6 + $0x70] sm:$0xff]
  %v279 = vld [vmem:[%s6 + $0x78] sm:$0xff]
  %v280 = vld [vmem:[%s6 + $0x80] sm:$0xff]
  %v281 = vld [vmem:[%s6 + $0x88] sm:$0xff]
  %v282 = vld [vmem:[%s6 + $0x90] sm:$0xff]
  %v283 = vld [vmem:[%s6 + $0x98] sm:$0xff]
  %v284 = vld [vmem:[%s6 + $0xa0] sm:$0xff]
  %v285 = vld [vmem:[%s6 + $0xa8] sm:$0xff]
  %v286 = vld [vmem:[%s6 + $0xb0] sm:$0xff]
  %v287 = vld [vmem:[%s6 + $0xb8] sm:$0xff]
  %v288 = vld [vmem:[%s6 + $0xc0] sm:$0xff]
  %v289 = vld [vmem:[%s6 + $0xc8] sm:$0xff]
  %v290 = vld [vmem:[%s6 + $0xd0] sm:$0xff]
  %v291 = vld [vmem:[%s6 + $0xd8] sm:$0xff]
  %v292 = vld [vmem:[%s6 + $0xe0] sm:$0xff]
  %v293 = vld [vmem:[%s6 + $0xe8] sm:$0xff]
  %v294 = vld [vmem:[%s6 + $0xf0] sm:$0xff]
  %v295 = vld [vmem:[%s6 + $0xf8] sm:$0xff]
  %v296 = vld [vmem:[%s7] sm:$0x1]
  %v298 = vlaneseq
  %v299 = vshrl.u32 %v298, 7
  %v300 = vsub.s32 0, %v299
  %v301 = vrot.slane %v296, %v300
  %303 = vmatprep.subr.mxu0 0.0
  %304 = vmatpush1.msra.mxu0 %v264
  %305 = vmatprep.subr.mxu0 0.0
  %306 = vmatpush1.msra.mxu0 %v265
  %307 = vmatprep.subr.mxu0 0.0
  %308 = vmatpush1.msra.mxu0 %v266
  %309 = vmatprep.subr.mxu0 0.0
  %310 = vmatpush1.msra.mxu0 %v267
  %311 = vmatprep.subr.mxu0 0.0
  %312 = vmatpush1.msra.mxu0 %v268
  %313 = vmatprep.subr.mxu0 0.0
  %314 = vmatpush1.msra.mxu0 %v269
  %315 = vmatprep.subr.mxu0 0.0
  %316 = vmatpush1.msra.mxu0 %v270
  %317 = vmatprep.subr.mxu0 0.0
  %318 = vmatpush1.msra.mxu0 %v271
  %319 = vmatprep.subr.mxu0 0.0
  %320 = vmatpush1.msra.mxu0 %v272
  %321 = vmatprep.subr.mxu0 0.0
  %322 = vmatpush1.msra.mxu0 %v273
  %323 = vmatprep.subr.mxu0 0.0
  %324 = vmatpush1.msra.mxu0 %v274
  %325 = vmatprep.subr.mxu0 0.0
  %326 = vmatpush1.msra.mxu0 %v275
  %327 = vmatprep.subr.mxu0 0.0
  %328 = vmatpush1.msra.mxu0 %v276
  %329 = vmatprep.subr.mxu0 0.0
  %330 = vmatpush1.msra.mxu0 %v277
  %331 = vmatprep.subr.mxu0 0.0
  %332 = vmatpush1.msra.mxu0 %v278
  %333 = vmatprep.subr.mxu0 0.0
  %334 = vmatpush1.msra.mxu0 %v279
  %335 = vmatprep.subr.mxu0 0.0
  %336 = vmatpush1.msra.mxu0 %v280
  %337 = vmatprep.subr.mxu0 0.0
  %338 = vmatpush1.msra.mxu0 %v281
  %339 = vmatprep.subr.mxu0 0.0
  %340 = vmatpush1.msra.mxu0 %v282
  %341 = vmatprep.subr.mxu0 0.0
  %342 = vmatpush1.msra.mxu0 %v283
  %343 = vmatprep.subr.mxu0 0.0
  %344 = vmatpush1.msra.mxu0 %v284
  %345 = vmatprep.subr.mxu0 0.0
  %346 = vmatpush1.msra.mxu0 %v285
  %347 = vmatprep.subr.mxu0 0.0
  %348 = vmatpush1.msra.mxu0 %v286
  %349 = vmatprep.subr.mxu0 0.0
  %350 = vmatpush1.msra.mxu0 %v287
  %351 = vmatprep.subr.mxu0 0.0
  %352 = vmatpush1.msra.mxu0 %v288
  %353 = vmatprep.subr.mxu0 0.0
  %354 = vmatpush1.msra.mxu0 %v289
  %355 = vmatprep.subr.mxu0 0.0
  %356 = vmatpush1.msra.mxu0 %v290
  %357 = vmatprep.subr.mxu0 0.0
  %358 = vmatpush1.msra.mxu0 %v291
  %359 = vmatprep.subr.mxu0 0.0
  %360 = vmatpush1.msra.mxu0 %v292
  %361 = vmatprep.subr.mxu0 0.0
  %362 = vmatpush1.msra.mxu0 %v293
  %363 = vmatprep.subr.mxu0 0.0
  %364 = vmatpush1.msra.mxu0 %v294
  %365 = vmatprep.subr.mxu0 0.0
  %366 = vmatpush1.msra.mxu0 %v295
  %367 = vmatprep.mubr.f32.mxu0 %v262
  %368 = vmatmul.mubr.f32.gmra.mrb[0].mxu0 %v260
  %v369 = vpop.f32.mrb[0].mxu0
  %v370 = vadd.f32 %v301, %v369
  %v371 = vpop.f32.mrb[0].mxu0
  %372 = vdwg.mxu0
  %v373 = vmax.f32 %v370, 0.0
  %v374 = vld [vmem:[%s8] sm:$0xff]
  %v375 = vld [vmem:[%s8 + $0x8] sm:$0xff]
  %v376 = vld [vmem:[%s8 + $0x10] sm:$0xff]
  %v377 = vld [vmem:[%s8 + $0x18] sm:$0xff]
  %v378 = vld [vmem:[%s8 + $0x20] sm:$0xff]
  %v379 = vld [vmem:[%s8 + $0x28] sm:$0xff]
  %v380 = vld [vmem:[%s8 + $0x30] sm:$0xff]
  %v381 = vld [vmem:[%s8 + $0x38] sm:$0xff]
  %v382 = vld [vmem:[%s8 + $0x40] sm:$0xff]
  %v383 = vld [vmem:[%s8 + $0x48] sm:$0xff]
  %v384 = vld [vmem:[%s8 + $0x50] sm:$0xff]
  %v385 = vld [vmem:[%s8 + $0x58] sm:$0xff]
  %v386 = vld [vmem:[%s8 + $0x60] sm:$0xff]
  %v387 = vld [vmem:[%s8 + $0x68] sm:$0xff]
  %v388 = vld [vmem:[%s8 + $0x70] sm:$0xff]
  %v389 = vld [vmem:[%s8 + $0x78] sm:$0xff]
  %v390 = vld [vmem:[%s8 + $0x80] sm:$0xff]
  %v391 = vld [vmem:[%s8 + $0x88] sm:$0xff]
  %v392 = vld [vmem:[%s8 + $0x90] sm:$0xff]
  %v393 = vld [vmem:[%s8 + $0x98] sm:$0xff]
  %v394 = vld [vmem:[%s8 + $0xa0] sm:$0xff]
  %v395 = vld [vmem:[%s8 + $0xa8] sm:$0xff]
  %v396 = vld [vmem:[%s8 + $0xb0] sm:$0xff]
  %v397 = vld [vmem:[%s8 + $0xb8] sm:$0xff]
  %v398 = vld [vmem:[%s8 + $0xc0] sm:$0xff]
  %v399 = vld [vmem:[%s8 + $0xc8] sm:$0xff]
  %v400 = vld [vmem:[%s8 + $0xd0] sm:$0xff]
  %v401 = vld [vmem:[%s8 + $0xd8] sm:$0xff]
  %v402 = vld [vmem:[%s8 + $0xe0] sm:$0xff]
  %v403 = vld [vmem:[%s8 + $0xe8] sm:$0xff]
  %v404 = vld [vmem:[%s8 + $0xf0] sm:$0xff]
  %v405 = vld [vmem:[%s8 + $0xf8] sm:$0xff]
  %v406 = vld [vmem:[%s8 + $0x100] sm:$0xff]
  %v407 = vld [vmem:[%s8 + $0x108] sm:$0xff]
  %v408 = vld [vmem:[%s8 + $0x110] sm:$0xff]
  %v409 = vld [vmem:[%s8 + $0x118] sm:$0xff]
  %v410 = vld [vmem:[%s8 + $0x120] sm:$0xff]
  %v411 = vld [vmem:[%s8 + $0x128] sm:$0xff]
  %v412 = vld [vmem:[%s8 + $0x130] sm:$0xff]
  %v413 = vld [vmem:[%s8 + $0x138] sm:$0xff]
  %v414 = vld [vmem:[%s8 + $0x140] sm:$0xff]
  %v415 = vld [vmem:[%s8 + $0x148] sm:$0xff]
  %v416 = vld [vmem:[%s8 + $0x150] sm:$0xff]
  %v417 = vld [vmem:[%s8 + $0x158] sm:$0xff]
  %v418 = vld [vmem:[%s8 + $0x160] sm:$0xff]
  %v419 = vld [vmem:[%s8 + $0x168] sm:$0xff]
  %v420 = vld [vmem:[%s8 + $0x170] sm:$0xff]
  %v421 = vld [vmem:[%s8 + $0x178] sm:$0xff]
  %v422 = vld [vmem:[%s8 + $0x180] sm:$0xff]
  %v423 = vld [vmem:[%s8 + $0x188] sm:$0xff]
  %v424 = vld [vmem:[%s8 + $0x190] sm:$0xff]
  %v425 = vld [vmem:[%s8 + $0x198] sm:$0xff]
  %v426 = vld [vmem:[%s8 + $0x1a0] sm:$0xff]
  %v427 = vld [vmem:[%s8 + $0x1a8] sm:$0xff]
  %v428 = vld [vmem:[%s8 + $0x1b0] sm:$0xff]
  %v429 = vld [vmem:[%s8 + $0x1b8] sm:$0xff]
  %v430 = vld [vmem:[%s8 + $0x1c0] sm:$0xff]
  %v431 = vld [vmem:[%s8 + $0x1c8] sm:$0xff]
  %v432 = vld [vmem:[%s8 + $0x1d0] sm:$0xff]
  %v433 = vld [vmem:[%s8 + $0x1d8] sm:$0xff]
  %v434 = vld [vmem:[%s8 + $0x1e0] sm:$0xff]
  %v435 = vld [vmem:[%s8 + $0x1e8] sm:$0xff]
  %v436 = vld [vmem:[%s8 + $0x1f0] sm:$0xff]
  %v437 = vld [vmem:[%s8 + $0x1f8] sm:$0xff]
  %v438 = vld [vmem:[%s8 + $0x200] sm:$0xff]
  %v439 = vld [vmem:[%s8 + $0x208] sm:$0xff]
  %v440 = vld [vmem:[%s8 + $0x210] sm:$0xff]
  %v441 = vld [vmem:[%s8 + $0x218] sm:$0xff]
  %v442 = vld [vmem:[%s8 + $0x220] sm:$0xff]
  %v443 = vld [vmem:[%s8 + $0x228] sm:$0xff]
  %v444 = vld [vmem:[%s8 + $0x230] sm:$0xff]
  %v445 = vld [vmem:[%s8 + $0x238] sm:$0xff]
  %v446 = vld [vmem:[%s8 + $0x240] sm:$0xff]
  %v447 = vld [vmem:[%s8 + $0x248] sm:$0xff]
  %v448 = vld [vmem:[%s8 + $0x250] sm:$0xff]
  %v449 = vld [vmem:[%s8 + $0x258] sm:$0xff]
  %v450 = vld [vmem:[%s8 + $0x260] sm:$0xff]
  %v451 = vld [vmem:[%s8 + $0x268] sm:$0xff]
  %v452 = vld [vmem:[%s8 + $0x270] sm:$0xff]
  %v453 = vld [vmem:[%s8 + $0x278] sm:$0xff]
  %v454 = vld [vmem:[%s8 + $0x280] sm:$0xff]
  %v455 = vld [vmem:[%s8 + $0x288] sm:$0xff]
  %v456 = vld [vmem:[%s8 + $0x290] sm:$0xff]
  %v457 = vld [vmem:[%s8 + $0x298] sm:$0xff]
  %v458 = vld [vmem:[%s8 + $0x2a0] sm:$0xff]
  %v459 = vld [vmem:[%s8 + $0x2a8] sm:$0xff]
  %v460 = vld [vmem:[%s8 + $0x2b0] sm:$0xff]
  %v461 = vld [vmem:[%s8 + $0x2b8] sm:$0xff]
  %v462 = vld [vmem:[%s8 + $0x2c0] sm:$0xff]
  %v463 = vld [vmem:[%s8 + $0x2c8] sm:$0xff]
  %v464 = vld [vmem:[%s8 + $0x2d0] sm:$0xff]
  %v465 = vld [vmem:[%s8 + $0x2d8] sm:$0xff]
  %v466 = vld [vmem:[%s8 + $0x2e0] sm:$0xff]
  %v467 = vld [vmem:[%s8 + $0x2e8] sm:$0xff]
  %v468 = vld [vmem:[%s8 + $0x2f0] sm:$0xff]
  %v469 = vld [vmem:[%s8 + $0x2f8] sm:$0xff]
  %v470 = vld [vmem:[%s8 + $0x300] sm:$0xff]
  %v471 = vld [vmem:[%s8 + $0x308] sm:$0xff]
  %v472 = vld [vmem:[%s8 + $0x310] sm:$0xff]
  %v473 = vld [vmem:[%s8 + $0x318] sm:$0xff]
  %v474 = vld [vmem:[%s8 + $0x320] sm:$0xff]
  %v475 = vld [vmem:[%s8 + $0x328] sm:$0xff]
  %v476 = vld [vmem:[%s8 + $0x330] sm:$0xff]
  %v477 = vld [vmem:[%s8 + $0x338] sm:$0xff]
  %v478 = vld [vmem:[%s8 + $0x340] sm:$0xff]
  %v479 = vld [vmem:[%s8 + $0x348] sm:$0xff]
  %v480 = vld [vmem:[%s8 + $0x350] sm:$0xff]
  %v481 = vld [vmem:[%s8 + $0x358] sm:$0xff]
  %v482 = vld [vmem:[%s8 + $0x360] sm:$0xff]
  %v483 = vld [vmem:[%s8 + $0x368] sm:$0xff]
  %v484 = vld [vmem:[%s8 + $0x370] sm:$0xff]
  %v485 = vld [vmem:[%s8 + $0x378] sm:$0xff]
  %v486 = vld [vmem:[%s8 + $0x380] sm:$0xff]
  %v487 = vld [vmem:[%s8 + $0x388] sm:$0xff]
  %v488 = vld [vmem:[%s8 + $0x390] sm:$0xff]
  %v489 = vld [vmem:[%s8 + $0x398] sm:$0xff]
  %v490 = vld [vmem:[%s8 + $0x3a0] sm:$0xff]
  %v491 = vld [vmem:[%s8 + $0x3a8] sm:$0xff]
  %v492 = vld [vmem:[%s8 + $0x3b0] sm:$0xff]
  %v493 = vld [vmem:[%s8 + $0x3b8] sm:$0xff]
  %v494 = vld [vmem:[%s8 + $0x3c0] sm:$0xff]
  %v495 = vld [vmem:[%s8 + $0x3c8] sm:$0xff]
  %v496 = vld [vmem:[%s8 + $0x3d0] sm:$0xff]
  %v497 = vld [vmem:[%s8 + $0x3d8] sm:$0xff]
  %v498 = vld [vmem:[%s8 + $0x3e0] sm:$0xff]
  %v499 = vld [vmem:[%s8 + $0x3e8] sm:$0xff]
  %v500 = vld [vmem:[%s8 + $0x3f0] sm:$0xff]
  %v501 = vld [vmem:[%s8 + $0x3f8] sm:$0xff]
  %v502 = vld [vmem:[%s8 + $0x400] sm:$0xff]
  %v503 = vld [vmem:[%s8 + $0x408] sm:$0xff]
  %v504 = vld [vmem:[%s8 + $0x410] sm:$0xff]
  %v505 = vld [vmem:[%s8 + $0x418] sm:$0xff]
  %v506 = vld [vmem:[%s8 + $0x420] sm:$0xff]
  %v507 = vld [vmem:[%s8 + $0x428] sm:$0xff]
  %v508 = vld [vmem:[%s8 + $0x430] sm:$0xff]
  %v509 = vld [vmem:[%s8 + $0x438] sm:$0xff]
  %v510 = vld [vmem:[%s8 + $0x440] sm:$0xff]
  %v511 = vld [vmem:[%s8 + $0x448] sm:$0xff]
  %v512 = vld [vmem:[%s8 + $0x450] sm:$0xff]
  %v513 = vld [vmem:[%s8 + $0x458] sm:$0xff]
  %v514 = vld [vmem:[%s8 + $0x460] sm:$0xff]
  %v515 = vld [vmem:[%s8 + $0x468] sm:$0xff]
  %v516 = vld [vmem:[%s8 + $0x470] sm:$0xff]
  %v517 = vld [vmem:[%s8 + $0x478] sm:$0xff]
  %v518 = vld [vmem:[%s8 + $0x480] sm:$0xff]
  %v519 = vld [vmem:[%s8 + $0x488] sm:$0xff]
  %v520 = vld [vmem:[%s8 + $0x490] sm:$0xff]
  %v521 = vld [vmem:[%s8 + $0x498] sm:$0xff]
  %v522 = vld [vmem:[%s8 + $0x4a0] sm:$0xff]
  %v523 = vld [vmem:[%s8 + $0x4a8] sm:$0xff]
  %v524 = vld [vmem:[%s8 + $0x4b0] sm:$0xff]
  %v525 = vld [vmem:[%s8 + $0x4b8] sm:$0xff]
  %v526 = vld [vmem:[%s8 + $0x4c0] sm:$0xff]
  %v527 = vld [vmem:[%s8 + $0x4c8] sm:$0xff]
  %v528 = vld [vmem:[%s8 + $0x4d0] sm:$0xff]
  %v529 = vld [vmem:[%s8 + $0x4d8] sm:$0xff]
  %v530 = vld [vmem:[%s8 + $0x4e0] sm:$0xff]
  %v531 = vld [vmem:[%s8 + $0x4e8] sm:$0xff]
  %v532 = vld [vmem:[%s8 + $0x4f0] sm:$0xff]
  %v533 = vld [vmem:[%s8 + $0x4f8] sm:$0xff]
  %v534 = vld [vmem:[%s8 + $0x500] sm:$0xff]
  %v535 = vld [vmem:[%s8 + $0x508] sm:$0xff]
  %v536 = vld [vmem:[%s8 + $0x510] sm:$0xff]
  %v537 = vld [vmem:[%s8 + $0x518] sm:$0xff]
  %v538 = vld [vmem:[%s8 + $0x520] sm:$0xff]
  %v539 = vld [vmem:[%s8 + $0x528] sm:$0xff]
  %v540 = vld [vmem:[%s8 + $0x530] sm:$0xff]
  %v541 = vld [vmem:[%s8 + $0x538] sm:$0xff]
  %v542 = vld [vmem:[%s8 + $0x540] sm:$0xff]
  %v543 = vld [vmem:[%s8 + $0x548] sm:$0xff]
  %v544 = vld [vmem:[%s8 + $0x550] sm:$0xff]
  %v545 = vld [vmem:[%s8 + $0x558] sm:$0xff]
  %v546 = vld [vmem:[%s8 + $0x560] sm:$0xff]
  %v547 = vld [vmem:[%s8 + $0x568] sm:$0xff]
  %v548 = vld [vmem:[%s8 + $0x570] sm:$0xff]
  %v549 = vld [vmem:[%s8 + $0x578] sm:$0xff]
  %v550 = vld [vmem:[%s8 + $0x580] sm:$0xff]
  %v551 = vld [vmem:[%s8 + $0x588] sm:$0xff]
  %v552 = vld [vmem:[%s8 + $0x590] sm:$0xff]
  %v553 = vld [vmem:[%s8 + $0x598] sm:$0xff]
  %v554 = vld [vmem:[%s8 + $0x5a0] sm:$0xf]
  %v555 = vld [vmem:[%s8 + $0x5a8] sm:$0xf]
  %v556 = vld [vmem:[%s8 + $0x5b0] sm:$0xf]
  %v557 = vld [vmem:[%s8 + $0x5b8] sm:$0xf]
  %v558 = vld [vmem:[%s8 + $0x5c0] sm:$0xf]
  %v559 = vld [vmem:[%s8 + $0x5c8] sm:$0xf]
  %v560 = vld [vmem:[%s8 + $0x5d0] sm:$0xf]
  %v561 = vld [vmem:[%s8 + $0x5d8] sm:$0xf]
  %v562 = vld [vmem:[%s8 + $0x5e0] sm:$0xf]
  %v563 = vld [vmem:[%s8 + $0x5e8] sm:$0xf]
  %v564 = vld [vmem:[%s8 + $0x5f0] sm:$0xf]
  %v565 = vld [vmem:[%s8 + $0x5f8] sm:$0xf]
  %v566 = vld [vmem:[%s8 + $0x600] sm:$0xf]
  %v567 = vld [vmem:[%s8 + $0x608] sm:$0xf]
  %v568 = vld [vmem:[%s8 + $0x610] sm:$0xf]
  %vm569 = vcmask 818176
  %v571 = vsel %vm569, %v373, 0
  %v574 = vsel %vm188, %v554, 0
  %v577 = vsel %vm188, %v555, 0
  %v580 = vsel %vm188, %v556, 0
  %v583 = vsel %vm188, %v557, 0
  %v586 = vsel %vm188, %v558, 0
  %v589 = vsel %vm188, %v559, 0
  %v592 = vsel %vm188, %v560, 0
  %v595 = vsel %vm188, %v561, 0
  %v598 = vsel %vm188, %v562, 0
  %v601 = vsel %vm188, %v563, 0
  %v604 = vsel %vm188, %v564, 0
  %v607 = vsel %vm188, %v565, 0
  %v610 = vsel %vm188, %v566, 0
  %v613 = vsel %vm188, %v567, 0
  %v616 = vsel %vm188, %v568, 0
  %618 = vmatprep.subr.mxu0 %v375
  %619 = vmatpush1.msra.mxu0 %v374
  %620 = vmatprep.subr.mxu0 %v390
  %621 = vmatpush1.msra.mxu0 %v389
  %622 = vmatprep.subr.mxu0 %v405
  %623 = vmatpush1.msra.mxu0 %v404
  %624 = vmatprep.subr.mxu0 %v420
  %625 = vmatpush1.msra.mxu0 %v419
  %626 = vmatprep.subr.mxu0 %v435
  %627 = vmatpush1.msra.mxu0 %v434
  %628 = vmatprep.subr.mxu0 %v450
  %629 = vmatpush1.msra.mxu0 %v449
  %630 = vmatprep.subr.mxu0 %v465
  %631 = vmatpush1.msra.mxu0 %v464
  %632 = vmatprep.subr.mxu0 %v480
  %633 = vmatpush1.msra.mxu0 %v479
  %634 = vmatprep.subr.mxu0 %v495
  %635 = vmatpush1.msra.mxu0 %v494
  %636 = vmatprep.subr.mxu0 %v510
  %637 = vmatpush1.msra.mxu0 %v509
  %638 = vmatprep.subr.mxu0 %v525
  %639 = vmatpush1.msra.mxu0 %v524
  %640 = vmatprep.subr.mxu0 %v540
  %641 = vmatpush1.msra.mxu0 %v539
  %642 = vmatprep.subr.mxu0 %v577
  %643 = vmatpush1.msra.mxu0 %v574
  %644 = vmatprep.subr.mxu0 0.0
  %645 = vmatpush1.msra.mxu0 0.0
  %646 = vmatprep.subr.mxu0 0.0
  %647 = vmatpush1.msra.mxu0 0.0
  %648 = vmatprep.subr.mxu0 0.0
  %649 = vmatpush1.msra.mxu0 0.0
  %650 = vmatprep.subr.mxu0 0.0
  %651 = vmatpush1.msra.mxu0 0.0
  %652 = vmatprep.subr.mxu0 0.0
  %653 = vmatpush1.msra.mxu0 0.0
  %654 = vmatprep.subr.mxu0 0.0
  %655 = vmatpush1.msra.mxu0 0.0
  %656 = vmatprep.subr.mxu0 0.0
  %657 = vmatpush1.msra.mxu0 0.0
  %658 = vmatprep.subr.mxu0 0.0
  %659 = vmatpush1.msra.mxu0 0.0
  %660 = vmatprep.subr.mxu0 0.0
  %661 = vmatpush1.msra.mxu0 0.0
  %662 = vmatprep.subr.mxu0 0.0
  %663 = vmatpush1.msra.mxu0 0.0
  %664 = vmatprep.subr.mxu0 0.0
  %665 = vmatpush1.msra.mxu0 0.0
  %666 = vmatprep.subr.mxu0 0.0
  %667 = vmatpush1.msra.mxu0 0.0
  %668 = vmatprep.subr.mxu0 0.0
  %669 = vmatpush1.msra.mxu0 0.0
  %670 = vmatprep.subr.mxu0 0.0
  %671 = vmatpush1.msra.mxu0 0.0
  %672 = vmatprep.subr.mxu0 0.0
  %673 = vmatpush1.msra.mxu0 0.0
  %674 = vmatprep.subr.mxu0 0.0
  %675 = vmatpush1.msra.mxu0 0.0
  %676 = vmatprep.subr.mxu0 0.0
  %677 = vmatpush1.msra.mxu0 0.0
  %678 = vmatprep.subr.mxu0 0.0
  %679 = vmatpush1.msra.mxu0 0.0
  %680 = vmatprep.subr.mxu0 0.0
  %681 = vmatpush1.msra.mxu0 0.0
  %682 = vmatprep.mubr.f32.mxu0 0.0
  %683 = vmatmul.mubr.f32.gmra.mrb[0].mxu0 %v571
  %v684 = vpop.f32.mrb[0].mxu0
  %v685 = vadd.f32 0.0, %v684
  %v686 = vpop.f32.mrb[0].mxu0
  %v687 = vadd.f32 0.0, %v686
  %688 = vdwg.mxu0
  %689 = vmatprep.subr.mxu0 %v377
  %690 = vmatpush1.msra.mxu0 %v376
  %691 = vmatprep.subr.mxu0 %v392
  %692 = vmatpush1.msra.mxu0 %v391
  %693 = vmatprep.subr.mxu0 %v407
  %694 = vmatpush1.msra.mxu0 %v406
  %695 = vmatprep.subr.mxu0 %v422
  %696 = vmatpush1.msra.mxu0 %v421
  %697 = vmatprep.subr.mxu0 %v437
  %698 = vmatpush1.msra.mxu0 %v436
  %699 = vmatprep.subr.mxu0 %v452
  %700 = vmatpush1.msra.mxu0 %v451
  %701 = vmatprep.subr.mxu0 %v467
  %702 = vmatpush1.msra.mxu0 %v466
  %703 = vmatprep.subr.mxu0 %v482
  %704 = vmatpush1.msra.mxu0 %v481
  %705 = vmatprep.subr.mxu0 %v497
  %706 = vmatpush1.msra.mxu0 %v496
  %707 = vmatprep.subr.mxu0 %v512
  %708 = vmatpush1.msra.mxu0 %v511
  %709 = vmatprep.subr.mxu0 %v527
  %710 = vmatpush1.msra.mxu0 %v526
  %711 = vmatprep.subr.mxu0 %v542
  %712 = vmatpush1.msra.mxu0 %v541
  %713 = vmatprep.subr.mxu0 %v583
  %714 = vmatpush1.msra.mxu0 %v580
  %715 = vmatprep.subr.mxu0 0.0
  %716 = vmatpush1.msra.mxu0 0.0
  %717 = vmatprep.subr.mxu0 0.0
  %718 = vmatpush1.msra.mxu0 0.0
  %719 = vmatprep.subr.mxu0 0.0
  %720 = vmatpush1.msra.mxu0 0.0
  %721 = vmatprep.subr.mxu0 0.0
  %722 = vmatpush1.msra.mxu0 0.0
  %723 = vmatprep.subr.mxu0 0.0
  %724 = vmatpush1.msra.mxu0 0.0
  %725 = vmatprep.subr.mxu0 0.0
  %726 = vmatpush1.msra.mxu0 0.0
  %727 = vmatprep.subr.mxu0 0.0
  %728 = vmatpush1.msra.mxu0 0.0
  %729 = vmatprep.subr.mxu0 0.0
  %730 = vmatpush1.msra.mxu0 0.0
  %731 = vmatprep.subr.mxu0 0.0
  %732 = vmatpush1.msra.mxu0 0.0
  %733 = vmatprep.subr.mxu0 0.0
  %734 = vmatpush1.msra.mxu0 0.0
  %735 = vmatprep.subr.mxu0 0.0
  %736 = vmatpush1.msra.mxu0 0.0
  %737 = vmatprep.subr.mxu0 0.0
  %738 = vmatpush1.msra.mxu0 0.0
  %739 = vmatprep.subr.mxu0 0.0
  %740 = vmatpush1.msra.mxu0 0.0
  %741 = vmatprep.subr.mxu0 0.0
  %742 = vmatpush1.msra.mxu0 0.0
  %743 = vmatprep.subr.mxu0 0.0
  %744 = vmatpush1.msra.mxu0 0.0
  %745 = vmatprep.subr.mxu0 0.0
  %746 = vmatpush1.msra.mxu0 0.0
  %747 = vmatprep.subr.mxu0 0.0
  %748 = vmatpush1.msra.mxu0 0.0
  %749 = vmatprep.subr.mxu0 0.0
  %750 = vmatpush1.msra.mxu0 0.0
  %751 = vmatprep.subr.mxu0 0.0
  %752 = vmatpush1.msra.mxu0 0.0
  %753 = vmatprep.mubr.f32.mxu0 0.0
  %754 = vmatmul.mubr.f32.gmra.mrb[0].mxu0 %v571
  %v755 = vpop.f32.mrb[0].mxu0
  %v756 = vadd.f32 0.0, %v755
  %v757 = vpop.f32.mrb[0].mxu0
  %v758 = vadd.f32 0.0, %v757
  %759 = vdwg.mxu0
  %760 = vmatprep.subr.mxu0 %v379
  %761 = vmatpush1.msra.mxu0 %v378
  %762 = vmatprep.subr.mxu0 %v394
  %763 = vmatpush1.msra.mxu0 %v393
  %764 = vmatprep.subr.mxu0 %v409
  %765 = vmatpush1.msra.mxu0 %v408
  %766 = vmatprep.subr.mxu0 %v424
  %767 = vmatpush1.msra.mxu0 %v423
  %768 = vmatprep.subr.mxu0 %v439
  %769 = vmatpush1.msra.mxu0 %v438
  %770 = vmatprep.subr.mxu0 %v454
  %771 = vmatpush1.msra.mxu0 %v453
  %772 = vmatprep.subr.mxu0 %v469
  %773 = vmatpush1.msra.mxu0 %v468
  %774 = vmatprep.subr.mxu0 %v484
  %775 = vmatpush1.msra.mxu0 %v483
  %776 = vmatprep.subr.mxu0 %v499
  %777 = vmatpush1.msra.mxu0 %v498
  %778 = vmatprep.subr.mxu0 %v514
  %779 = vmatpush1.msra.mxu0 %v513
  %780 = vmatprep.subr.mxu0 %v529
  %781 = vmatpush1.msra.mxu0 %v528
  %782 = vmatprep.subr.mxu0 %v544
  %783 = vmatpush1.msra.mxu0 %v543
  %784 = vmatprep.subr.mxu0 %v589
  %785 = vmatpush1.msra.mxu0 %v586
  %786 = vmatprep.subr.mxu0 0.0
  %787 = vmatpush1.msra.mxu0 0.0
  %788 = vmatprep.subr.mxu0 0.0
  %789 = vmatpush1.msra.mxu0 0.0
  %790 = vmatprep.subr.mxu0 0.0
  %791 = vmatpush1.msra.mxu0 0.0
  %792 = vmatprep.subr.mxu0 0.0
  %793 = vmatpush1.msra.mxu0 0.0
  %794 = vmatprep.subr.mxu0 0.0
  %795 = vmatpush1.msra.mxu0 0.0
  %796 = vmatprep.subr.mxu0 0.0
  %797 = vmatpush1.msra.mxu0 0.0
  %798 = vmatprep.subr.mxu0 0.0
  %799 = vmatpush1.msra.mxu0 0.0
  %800 = vmatprep.subr.mxu0 0.0
  %801 = vmatpush1.msra.mxu0 0.0
  %802 = vmatprep.subr.mxu0 0.0
  %803 = vmatpush1.msra.mxu0 0.0
  %804 = vmatprep.subr.mxu0 0.0
  %805 = vmatpush1.msra.mxu0 0.0
  %806 = vmatprep.subr.mxu0 0.0
  %807 = vmatpush1.msra.mxu0 0.0
  %808 = vmatprep.subr.mxu0 0.0
  %809 = vmatpush1.msra.mxu0 0.0
  %810 = vmatprep.subr.mxu0 0.0
  %811 = vmatpush1.msra.mxu0 0.0
  %812 = vmatprep.subr.mxu0 0.0
  %813 = vmatpush1.msra.mxu0 0.0
  %814 = vmatprep.subr.mxu0 0.0
  %815 = vmatpush1.msra.mxu0 0.0
  %816 = vmatprep.subr.mxu0 0.0
  %817 = vmatpush1.msra.mxu0 0.0
  %818 = vmatprep.subr.mxu0 0.0
  %819 = vmatpush1.msra.mxu0 0.0
  %820 = vmatprep.subr.mxu0 0.0
  %821 = vmatpush1.msra.mxu0 0.0
  %822 = vmatprep.subr.mxu0 0.0
  %823 = vmatpush1.msra.mxu0 0.0
  %824 = vmatprep.mubr.f32.mxu0 0.0
  %825 = vmatmul.mubr.f32.gmra.mrb[0].mxu0 %v571
  %v826 = vpop.f32.mrb[0].mxu0
  %v827 = vadd.f32 0.0, %v826
  %v828 = vpop.f32.mrb[0].mxu0
  %v829 = vadd.f32 0.0, %v828
  %830 = vdwg.mxu0
  %831 = vmatprep.subr.mxu0 %v381
  %832 = vmatpush1.msra.mxu0 %v380
  %833 = vmatprep.subr.mxu0 %v396
  %834 = vmatpush1.msra.mxu0 %v395
  %835 = vmatprep.subr.mxu0 %v411
  %836 = vmatpush1.msra.mxu0 %v410
  %837 = vmatprep.subr.mxu0 %v426
  %838 = vmatpush1.msra.mxu0 %v425
  %839 = vmatprep.subr.mxu0 %v441
  %840 = vmatpush1.msra.mxu0 %v440
  %841 = vmatprep.subr.mxu0 %v456
  %842 = vmatpush1.msra.mxu0 %v455
  %843 = vmatprep.subr.mxu0 %v471
  %844 = vmatpush1.msra.mxu0 %v470
  %845 = vmatprep.subr.mxu0 %v486
  %846 = vmatpush1.msra.mxu0 %v485
  %847 = vmatprep.subr.mxu0 %v501
  %848 = vmatpush1.msra.mxu0 %v500
  %849 = vmatprep.subr.mxu0 %v516
  %850 = vmatpush1.msra.mxu0 %v515
  %851 = vmatprep.subr.mxu0 %v531
  %852 = vmatpush1.msra.mxu0 %v530
  %853 = vmatprep.subr.mxu0 %v546
  %854 = vmatpush1.msra.mxu0 %v545
  %855 = vmatprep.subr.mxu0 %v595
  %856 = vmatpush1.msra.mxu0 %v592
  %857 = vmatprep.subr.mxu0 0.0
  %858 = vmatpush1.msra.mxu0 0.0
  %859 = vmatprep.subr.mxu0 0.0
  %860 = vmatpush1.msra.mxu0 0.0
  %861 = vmatprep.subr.mxu0 0.0
  %862 = vmatpush1.msra.mxu0 0.0
  %863 = vmatprep.subr.mxu0 0.0
  %864 = vmatpush1.msra.mxu0 0.0
  %865 = vmatprep.subr.mxu0 0.0
  %866 = vmatpush1.msra.mxu0 0.0
  %867 = vmatprep.subr.mxu0 0.0
  %868 = vmatpush1.msra.mxu0 0.0
  %869 = vmatprep.subr.mxu0 0.0
  %870 = vmatpush1.msra.mxu0 0.0
  %871 = vmatprep.subr.mxu0 0.0
  %872 = vmatpush1.msra.mxu0 0.0
  %873 = vmatprep.subr.mxu0 0.0
  %874 = vmatpush1.msra.mxu0 0.0
  %875 = vmatprep.subr.mxu0 0.0
  %876 = vmatpush1.msra.mxu0 0.0
  %877 = vmatprep.subr.mxu0 0.0
  %878 = vmatpush1.msra.mxu0 0.0
  %879 = vmatprep.subr.mxu0 0.0
  %880 = vmatpush1.msra.mxu0 0.0
  %881 = vmatprep.subr.mxu0 0.0
  %882 = vmatpush1.msra.mxu0 0.0
  %883 = vmatprep.subr.mxu0 0.0
  %884 = vmatpush1.msra.mxu0 0.0
  %885 = vmatprep.subr.mxu0 0.0
  %886 = vmatpush1.msra.mxu0 0.0
  %887 = vmatprep.subr.mxu0 0.0
  %888 = vmatpush1.msra.mxu0 0.0
  %889 = vmatprep.subr.mxu0 0.0
  %890 = vmatpush1.msra.mxu0 0.0
  %891 = vmatprep.subr.mxu0 0.0
  %892 = vmatpush1.msra.mxu0 0.0
  %893 = vmatprep.subr.mxu0 0.0
  %894 = vmatpush1.msra.mxu0 0.0
  %895 = vmatprep.mubr.f32.mxu0 0.0
  %896 = vmatmul.mubr.f32.gmra.mrb[0].mxu0 %v571
  %v897 = vpop.f32.mrb[0].mxu0
  %v898 = vadd.f32 0.0, %v897
  %v899 = vpop.f32.mrb[0].mxu0
  %v900 = vadd.f32 0.0, %v899
  %901 = vdwg.mxu0
  %902 = vmatprep.subr.mxu0 %v383
  %903 = vmatpush1.msra.mxu0 %v382
  %904 = vmatprep.subr.mxu0 %v398
  %905 = vmatpush1.msra.mxu0 %v397
  %906 = vmatprep.subr.mxu0 %v413
  %907 = vmatpush1.msra.mxu0 %v412
  %908 = vmatprep.subr.mxu0 %v428
  %909 = vmatpush1.msra.mxu0 %v427
  %910 = vmatprep.subr.mxu0 %v443
  %911 = vmatpush1.msra.mxu0 %v442
  %912 = vmatprep.subr.mxu0 %v458
  %913 = vmatpush1.msra.mxu0 %v457
  %914 = vmatprep.subr.mxu0 %v473
  %915 = vmatpush1.msra.mxu0 %v472
  %916 = vmatprep.subr.mxu0 %v488
  %917 = vmatpush1.msra.mxu0 %v487
  %918 = vmatprep.subr.mxu0 %v503
  %919 = vmatpush1.msra.mxu0 %v502
  %920 = vmatprep.subr.mxu0 %v518
  %921 = vmatpush1.msra.mxu0 %v517
  %922 = vmatprep.subr.mxu0 %v533
  %923 = vmatpush1.msra.mxu0 %v532
  %924 = vmatprep.subr.mxu0 %v548
  %925 = vmatpush1.msra.mxu0 %v547
  %926 = vmatprep.subr.mxu0 %v601
  %927 = vmatpush1.msra.mxu0 %v598
  %928 = vmatprep.subr.mxu0 0.0
  %929 = vmatpush1.msra.mxu0 0.0
  %930 = vmatprep.subr.mxu0 0.0
  %931 = vmatpush1.msra.mxu0 0.0
  %932 = vmatprep.subr.mxu0 0.0
  %933 = vmatpush1.msra.mxu0 0.0
  %934 = vmatprep.subr.mxu0 0.0
  %935 = vmatpush1.msra.mxu0 0.0
  %936 = vmatprep.subr.mxu0 0.0
  %937 = vmatpush1.msra.mxu0 0.0
  %938 = vmatprep.subr.mxu0 0.0
  %939 = vmatpush1.msra.mxu0 0.0
  %940 = vmatprep.subr.mxu0 0.0
  %941 = vmatpush1.msra.mxu0 0.0
  %942 = vmatprep.subr.mxu0 0.0
  %943 = vmatpush1.msra.mxu0 0.0
  %944 = vmatprep.subr.mxu0 0.0
  %945 = vmatpush1.msra.mxu0 0.0
  %946 = vmatprep.subr.mxu0 0.0
  %947 = vmatpush1.msra.mxu0 0.0
  %948 = vmatprep.subr.mxu0 0.0
  %949 = vmatpush1.msra.mxu0 0.0
  %950 = vmatprep.subr.mxu0 0.0
  %951 = vmatpush1.msra.mxu0 0.0
  %952 = vmatprep.subr.mxu0 0.0
  %953 = vmatpush1.msra.mxu0 0.0
  %954 = vmatprep.subr.mxu0 0.0
  %955 = vmatpush1.msra.mxu0 0.0
  %956 = vmatprep.subr.mxu0 0.0
  %957 = vmatpush1.msra.mxu0 0.0
  %958 = vmatprep.subr.mxu0 0.0
  %959 = vmatpush1.msra.mxu0 0.0
  %960 = vmatprep.subr.mxu0 0.0
  %961 = vmatpush1.msra.mxu0 0.0
  %962 = vmatprep.subr.mxu0 0.0
  %963 = vmatpush1.msra.mxu0 0.0
  %964 = vmatprep.subr.mxu0 0.0
  %965 = vmatpush1.msra.mxu0 0.0
  %966 = vmatprep.mubr.f32.mxu0 0.0
  %967 = vmatmul.mubr.f32.gmra.mrb[0].mxu0 %v571
  %v968 = vpop.f32.mrb[0].mxu0
  %v969 = vadd.f32 0.0, %v968
  %v970 = vpop.f32.mrb[0].mxu0
  %v971 = vadd.f32 0.0, %v970
  %972 = vdwg.mxu0
  %973 = vmatprep.subr.mxu0 %v385
  %974 = vmatpush1.msra.mxu0 %v384
  %975 = vmatprep.subr.mxu0 %v400
  %976 = vmatpush1.msra.mxu0 %v399
  %977 = vmatprep.subr.mxu0 %v415
  %978 = vmatpush1.msra.mxu0 %v414
  %979 = vmatprep.subr.mxu0 %v430
  %980 = vmatpush1.msra.mxu0 %v429
  %981 = vmatprep.subr.mxu0 %v445
  %982 = vmatpush1.msra.mxu0 %v444
  %983 = vmatprep.subr.mxu0 %v460
  %984 = vmatpush1.msra.mxu0 %v459
  %985 = vmatprep.subr.mxu0 %v475
  %986 = vmatpush1.msra.mxu0 %v474
  %987 = vmatprep.subr.mxu0 %v490
  %988 = vmatpush1.msra.mxu0 %v489
  %989 = vmatprep.subr.mxu0 %v505
  %990 = vmatpush1.msra.mxu0 %v504
  %991 = vmatprep.subr.mxu0 %v520
  %992 = vmatpush1.msra.mxu0 %v519
  %993 = vmatprep.subr.mxu0 %v535
  %994 = vmatpush1.msra.mxu0 %v534
  %995 = vmatprep.subr.mxu0 %v550
  %996 = vmatpush1.msra.mxu0 %v549
  %997 = vmatprep.subr.mxu0 %v607
  %998 = vmatpush1.msra.mxu0 %v604
  %999 = vmatprep.subr.mxu0 0.0
  %1000 = vmatpush1.msra.mxu0 0.0
  %1001 = vmatprep.subr.mxu0 0.0
  %1002 = vmatpush1.msra.mxu0 0.0
  %1003 = vmatprep.subr.mxu0 0.0
  %1004 = vmatpush1.msra.mxu0 0.0
  %1005 = vmatprep.subr.mxu0 0.0
  %1006 = vmatpush1.msra.mxu0 0.0
  %1007 = vmatprep.subr.mxu0 0.0
  %1008 = vmatpush1.msra.mxu0 0.0
  %1009 = vmatprep.subr.mxu0 0.0
  %1010 = vmatpush1.msra.mxu0 0.0
  %1011 = vmatprep.subr.mxu0 0.0
  %1012 = vmatpush1.msra.mxu0 0.0
  %1013 = vmatprep.subr.mxu0 0.0
  %1014 = vmatpush1.msra.mxu0 0.0
  %1015 = vmatprep.subr.mxu0 0.0
  %1016 = vmatpush1.msra.mxu0 0.0
  %1017 = vmatprep.subr.mxu0 0.0
  %1018 = vmatpush1.msra.mxu0 0.0
  %1019 = vmatprep.subr.mxu0 0.0
  %1020 = vmatpush1.msra.mxu0 0.0
  %1021 = vmatprep.subr.mxu0 0.0
  %1022 = vmatpush1.msra.mxu0 0.0
  %1023 = vmatprep.subr.mxu0 0.0
  %1024 = vmatpush1.msra.mxu0 0.0
  %1025 = vmatprep.subr.mxu0 0.0
  %1026 = vmatpush1.msra.mxu0 0.0
  %1027 = vmatprep.subr.mxu0 0.0
  %1028 = vmatpush1.msra.mxu0 0.0
  %1029 = vmatprep.subr.mxu0 0.0
  %1030 = vmatpush1.msra.mxu0 0.0
  %1031 = vmatprep.subr.mxu0 0.0
  %1032 = vmatpush1.msra.mxu0 0.0
  %1033 = vmatprep.subr.mxu0 0.0
  %1034 = vmatpush1.msra.mxu0 0.0
  %1035 = vmatprep.subr.mxu0 0.0
  %1036 = vmatpush1.msra.mxu0 0.0
  %1037 = vmatprep.mubr.f32.mxu0 0.0
  %1038 = vmatmul.mubr.f32.gmra.mrb[0].mxu0 %v571
  %v1039 = vpop.f32.mrb[0].mxu0
  %v1040 = vadd.f32 0.0, %v1039
  %v1041 = vpop.f32.mrb[0].mxu0
  %v1042 = vadd.f32 0.0, %v1041
  %1043 = vdwg.mxu0
  %1044 = vmatprep.subr.mxu0 %v387
  %1045 = vmatpush1.msra.mxu0 %v386
  %1046 = vmatprep.subr.mxu0 %v402
  %1047 = vmatpush1.msra.mxu0 %v401
  %1048 = vmatprep.subr.mxu0 %v417
  %1049 = vmatpush1.msra.mxu0 %v416
  %1050 = vmatprep.subr.mxu0 %v432
  %1051 = vmatpush1.msra.mxu0 %v431
  %1052 = vmatprep.subr.mxu0 %v447
  %1053 = vmatpush1.msra.mxu0 %v446
  %1054 = vmatprep.subr.mxu0 %v462
  %1055 = vmatpush1.msra.mxu0 %v461
  %1056 = vmatprep.subr.mxu0 %v477
  %1057 = vmatpush1.msra.mxu0 %v476
  %1058 = vmatprep.subr.mxu0 %v492
  %1059 = vmatpush1.msra.mxu0 %v491
  %1060 = vmatprep.subr.mxu0 %v507
  %1061 = vmatpush1.msra.mxu0 %v506
  %1062 = vmatprep.subr.mxu0 %v522
  %1063 = vmatpush1.msra.mxu0 %v521
  %1064 = vmatprep.subr.mxu0 %v537
  %1065 = vmatpush1.msra.mxu0 %v536
  %1066 = vmatprep.subr.mxu0 %v552
  %1067 = vmatpush1.msra.mxu0 %v551
  %1068 = vmatprep.subr.mxu0 %v613
  %1069 = vmatpush1.msra.mxu0 %v610
  %1070 = vmatprep.subr.mxu0 0.0
  %1071 = vmatpush1.msra.mxu0 0.0
  %1072 = vmatprep.subr.mxu0 0.0
  %1073 = vmatpush1.msra.mxu0 0.0
  %1074 = vmatprep.subr.mxu0 0.0
  %1075 = vmatpush1.msra.mxu0 0.0
  %1076 = vmatprep.subr.mxu0 0.0
  %1077 = vmatpush1.msra.mxu0 0.0
  %1078 = vmatprep.subr.mxu0 0.0
  %1079 = vmatpush1.msra.mxu0 0.0
  %1080 = vmatprep.subr.mxu0 0.0
  %1081 = vmatpush1.msra.mxu0 0.0
  %1082 = vmatprep.subr.mxu0 0.0
  %1083 = vmatpush1.msra.mxu0 0.0
  %1084 = vmatprep.subr.mxu0 0.0
  %1085 = vmatpush1.msra.mxu0 0.0
  %1086 = vmatprep.subr.mxu0 0.0
  %1087 = vmatpush1.msra.mxu0 0.0
  %1088 = vmatprep.subr.mxu0 0.0
  %1089 = vmatpush1.msra.mxu0 0.0
  %1090 = vmatprep.subr.mxu0 0.0
  %1091 = vmatpush1.msra.mxu0 0.0
  %1092 = vmatprep.subr.mxu0 0.0
  %1093 = vmatpush1.msra.mxu0 0.0
  %1094 = vmatprep.subr.mxu0 0.0
  %1095 = vmatpush1.msra.mxu0 0.0
  %1096 = vmatprep.subr.mxu0 0.0
  %1097 = vmatpush1.msra.mxu0 0.0
  %1098 = vmatprep.subr.mxu0 0.0
  %1099 = vmatpush1.msra.mxu0 0.0
  %1100 = vmatprep.subr.mxu0 0.0
  %1101 = vmatpush1.msra.mxu0 0.0
  %1102 = vmatprep.subr.mxu0 0.0
  %1103 = vmatpush1.msra.mxu0 0.0
  %1104 = vmatprep.subr.mxu0 0.0
  %1105 = vmatpush1.msra.mxu0 0.0
  %1106 = vmatprep.subr.mxu0 0.0
  %1107 = vmatpush1.msra.mxu0 0.0
  %1108 = vmatprep.mubr.f32.mxu0 0.0
  %1109 = vmatmul.mubr.f32.gmra.mrb[0].mxu0 %v571
  %v1110 = vpop.f32.mrb[0].mxu0
  %v1111 = vadd.f32 0.0, %v1110
  %v1112 = vpop.f32.mrb[0].mxu0
  %v1113 = vadd.f32 0.0, %v1112
  %1114 = vdwg.mxu0
  %1115 = vmatprep.subr.mxu0 0.0
  %1116 = vmatpush1.msra.mxu0 %v388
  %1117 = vmatprep.subr.mxu0 0.0
  %1118 = vmatpush1.msra.mxu0 %v403
  %1119 = vmatprep.subr.mxu0 0.0
  %1120 = vmatpush1.msra.mxu0 %v418
  %1121 = vmatprep.subr.mxu0 0.0
  %1122 = vmatpush1.msra.mxu0 %v433
  %1123 = vmatprep.subr.mxu0 0.0
  %1124 = vmatpush1.msra.mxu0 %v448
  %1125 = vmatprep.subr.mxu0 0.0
  %1126 = vmatpush1.msra.mxu0 %v463
  %1127 = vmatprep.subr.mxu0 0.0
  %1128 = vmatpush1.msra.mxu0 %v478
  %1129 = vmatprep.subr.mxu0 0.0
  %1130 = vmatpush1.msra.mxu0 %v493
  %1131 = vmatprep.subr.mxu0 0.0
  %1132 = vmatpush1.msra.mxu0 %v508
  %1133 = vmatprep.subr.mxu0 0.0
  %1134 = vmatpush1.msra.mxu0 %v523
  %1135 = vmatprep.subr.mxu0 0.0
  %1136 = vmatpush1.msra.mxu0 %v538
  %1137 = vmatprep.subr.mxu0 0.0
  %1138 = vmatpush1.msra.mxu0 %v553
  %1139 = vmatprep.subr.mxu0 0.0
  %1140 = vmatpush1.msra.mxu0 %v616
  %1141 = vmatprep.subr.mxu0 0.0
  %1142 = vmatpush1.msra.mxu0 0.0
  %1143 = vmatprep.subr.mxu0 0.0
  %1144 = vmatpush1.msra.mxu0 0.0
  %1145 = vmatprep.subr.mxu0 0.0
  %1146 = vmatpush1.msra.mxu0 0.0
  %1147 = vmatprep.subr.mxu0 0.0
  %1148 = vmatpush1.msra.mxu0 0.0
  %1149 = vmatprep.subr.mxu0 0.0
  %1150 = vmatpush1.msra.mxu0 0.0
  %1151 = vmatprep.subr.mxu0 0.0
  %1152 = vmatpush1.msra.mxu0 0.0
  %1153 = vmatprep.subr.mxu0 0.0
  %1154 = vmatpush1.msra.mxu0 0.0
  %1155 = vmatprep.subr.mxu0 0.0
  %1156 = vmatpush1.msra.mxu0 0.0
  %1157 = vmatprep.subr.mxu0 0.0
  %1158 = vmatpush1.msra.mxu0 0.0
  %1159 = vmatprep.subr.mxu0 0.0
  %1160 = vmatpush1.msra.mxu0 0.0
  %1161 = vmatprep.subr.mxu0 0.0
  %1162 = vmatpush1.msra.mxu0 0.0
  %1163 = vmatprep.subr.mxu0 0.0
  %1164 = vmatpush1.msra.mxu0 0.0
  %1165 = vmatprep.subr.mxu0 0.0
  %1166 = vmatpush1.msra.mxu0 0.0
  %1167 = vmatprep.subr.mxu0 0.0
  %1168 = vmatpush1.msra.mxu0 0.0
  %1169 = vmatprep.subr.mxu0 0.0
  %1170 = vmatpush1.msra.mxu0 0.0
  %1171 = vmatprep.subr.mxu0 0.0
  %1172 = vmatpush1.msra.mxu0 0.0
  %1173 = vmatprep.subr.mxu0 0.0
  %1174 = vmatpush1.msra.mxu0 0.0
  %1175 = vmatprep.subr.mxu0 0.0
  %1176 = vmatpush1.msra.mxu0 0.0
  %1177 = vmatprep.subr.mxu0 0.0
  %1178 = vmatpush1.msra.mxu0 0.0
  %1179 = vmatprep.mubr.f32.mxu0 0.0
  %1180 = vmatmul.mubr.f32.gmra.mrb[0].mxu0 %v571
  %v1181 = vpop.f32.mrb[0].mxu0
  %v1182 = vadd.f32 0.0, %v1181
  %v1183 = vpop.f32.mrb[0].mxu0
  %1184 = vdwg.mxu0
  %v1200 = vcombine.low %v685, %v687
  %v1201 = vcombine.low %v756, %v758
  %v1203 = vunpack.c.l.s4 1983009808
  %v1204 = vunpack.c.0.s8 %v1203
  %v1205 = vlaneseq
  %v1206 = vshrl.u32 %v1205, 7
  %v1207 = vsub.s32 %v1204, %v1206
  %v1208 = vrot.slane %v1200, %v1207
  %v1210 = vunpack.c.l.s4 1983009808
  %v1211 = vunpack.c.0.s8 %v1210
  %v1212 = vlaneseq
  %v1213 = vshrl.u32 %v1212, 7
  %v1214 = vsub.s32 %v1211, %v1213
  %v1215 = vrot.slane %v1201, %v1214
  %v1216 = vcombine.low %v1208, %v1215
  %v1217 = vcombine.low %v827, %v829
  %v1218 = vcombine.low %v898, %v900
  %v1220 = vunpack.c.l.s4 1983009808
  %v1221 = vunpack.c.0.s8 %v1220
  %v1222 = vlaneseq
  %v1223 = vshrl.u32 %v1222, 7
  %v1224 = vsub.s32 %v1221, %v1223
  %v1225 = vrot.slane %v1217, %v1224
  %v1227 = vunpack.c.l.s4 1983009808
  %v1228 = vunpack.c.0.s8 %v1227
  %v1229 = vlaneseq
  %v1230 = vshrl.u32 %v1229, 7
  %v1231 = vsub.s32 %v1228, %v1230
  %v1232 = vrot.slane %v1218, %v1231
  %v1233 = vcombine.low %v1225, %v1232
  %v1234 = vcombine.low %v969, %v971
  %v1235 = vcombine.low %v1040, %v1042
  %v1237 = vunpack.c.l.s4 1983009808
  %v1238 = vunpack.c.0.s8 %v1237
  %v1239 = vlaneseq
  %v1240 = vshrl.u32 %v1239, 7
  %v1241 = vsub.s32 %v1238, %v1240
  %v1242 = vrot.slane %v1234, %v1241
  %v1244 = vunpack.c.l.s4 1983009808
  %v1245 = vunpack.c.0.s8 %v1244
  %v1246 = vlaneseq
  %v1247 = vshrl.u32 %v1246, 7
  %v1248 = vsub.s32 %v1245, %v1247
  %v1249 = vrot.slane %v1235, %v1248
  %v1250 = vcombine.low %v1242, %v1249
  %v1251 = vcombine.low %v1111, %v1113
  %v1253 = vunpack.c.l.s4 1983009808
  %v1254 = vunpack.c.0.s8 %v1253
  %v1255 = vlaneseq
  %v1256 = vshrl.u32 %v1255, 7
  %v1257 = vsub.s32 %v1254, %v1256
  %v1258 = vrot.slane %v1251, %v1257
  %v1260 = vunpack.c.l.s4 1983009808
  %v1261 = vunpack.c.0.s8 %v1260
  %v1262 = vlaneseq
  %v1263 = vshrl.u32 %v1262, 7
  %v1264 = vsub.s32 %v1261, %v1263
  %v1265 = vrot.slane %v1182, %v1264
  %v1266 = vcombine.low %v1258, %v1265
  %1271 = vst [vmem:[%s10] sm:$0xff] %v1216
  %1272 = vst [vmem:[%s10 + $0x8] sm:$0xff] %v1233
  %1273 = vst [vmem:[%s10 + $0x10] sm:$0xff] %v1250
  %vm1274 = vcmask 1041408
  %vm1275 = vcmask 1043458
  %vm1276 = vmor %vm1275, %vm1274
  %vm1277 = vcmask 676868
  %vm1278 = vmor %vm1277, %vm1276
  %1279 = vst.msk [vmem:[%s10 + $0x18] sm:$0x3f] %vm1278, %v1266
  %vm1280 = vcmask 58368
  %1281 = vst.msk [vmem:[%s9] sm:$0x3] %vm1280, %v152
  // Predicated region
  $region38: #{vae_forward.3} parent=0 // pred_check
    _
  $region39: #{vae_forward.3} parent=0 // pred_check_branch
    %1283 = sbr.rel (0) target = $region41
  $region40: #{vae_forward.3} parent=0 // pred_region
    _
  $region41: #{vae_forward.3} parent=0 // pred_fallthru
    _
  // Predicated region
  $region42: #{vae_forward.3} parent=0 // pred_check
    _
  $region43: #{vae_forward.3} parent=0 // pred_check_branch
    %1285 = sbr.rel (0) target = $region45
  $region44: #{vae_forward.3} parent=0 // pred_region
    _
  $region45: #{vae_forward.3} parent=0 // pred_fallthru
    _
  // Predicated region
  $region46: #{vae_forward.3} parent=0 // pred_check
    _
  $region47: #{vae_forward.3} parent=0 // pred_check_branch
    %1287 = sbr.rel (0) target = $region49
  $region48: #{vae_forward.3} parent=0 // pred_region
    _
  $region49: #{vae_forward.3} parent=0 // pred_fallthru
    _
  // Predicated region
  $region50: #{vae_forward.3} parent=0 // pred_check
    _
  $region51: #{vae_forward.3} parent=0 // pred_check_branch
    %1289 = sbr.rel (0) target = $region53
  $region52: #{vae_forward.3} parent=0 // pred_region
    _
  $region53: #{vae_forward.3} parent=0 // pred_fallthru
    _

// kernel: vae_forward.2
$region0: #{vae_forward.2}
  #allocation0 [shape = 'u32[]', space=smem, size = 0x4, offset = 0x4, fixed_abs, tag = 'smem constant byte address 0x4 - core index']
  #allocation1 [shape = 'u32[144,128]{1,0:T(1,128)}', space=vmem, size = 0x12000, scoped, tag = 'internal scratch']
  #allocation2 [shape = 'f32[10,10,256]{2,1,0:T(8,128)}', space=vmem, size = 0x28000, scoped, tag = 'scratch operand']
  %s0 = inlined_call_operand.vmem [shape: f32[2,10,10,4], index: 0, kind: input, shape index: {}]
  %s1 = inlined_call_operand.vmem [shape: f32[9,4,256], index: 1, kind: input, shape index: {}]
  %s2 = inlined_call_operand.vmem [shape: f32[9,256,4], index: 2, kind: input, shape index: {}]
  %s3 = inlined_call_operand.vmem [shape: f32[2,8,8,4], index: 3, kind: output, shape index: {}]
  %s4 = sld [smem:[#allocation0]]
  $region45: #{vae_forward.2} parent=0
    _
  %s6 = ssub.s32 1, %s4
  %s7 = scalar_select 0, %s6, %s4
  loop: start=0, step=1, limit=4
  $region2: #{vae_forward.2} parent=0 // loop_pre_header
    _
  $region3: #{vae_forward.2} parent=0 // loop_header
    %s9 = sphi 0, %s13
    %p10 = scmp.ge.s32.totalorder %s9, 4
    %s19 = sphi 0, %s21
    %s22 = sphi 0, %s19
    %s23 = sphi 0, %s22
    %s39 = sphi 0, %s23
    %s43 = sphi 0, %s43
    %s45 = sphi 0, %s43
    %s46 = sphi 0, %s45
    %s60 = sphi 0, %s46
    %s64 = sphi 0, %s64
    %s66 = sphi 0, %s64
    %s67 = sphi 0, %s66
    %s81 = sphi 0, %s67
    %s87 = sphi 0, %s89
    %s90 = sphi 0, %s87
    %s91 = sphi 0, %s90
    %s107 = sphi 0, %s91
  $region4: #{vae_forward.2} parent=0 // loop_header_branch
    %12 = sbr.rel (%p10) target = $region8
  $region5: #{vae_forward.2} parent=0 // loop_body
    %s14 = ssub.s32 %s9, 1
    %s15 = ssub.s32 %s9, 2
    %s16 = sadd.s32 %s9, 1
    %s17 = ssub.s32 %s9, %s16
    %p18 = scmp.eq.s32.totalorder %s17, 0
    %s20 = sadd.s32 %s19, 1
    %s21 = scalar_select %p18, %s19, %s20
    %p24 = pneg %p18
    %p25 = scmp.eq.s32.totalorder %s9, 1
    %p26 = por %p24, %p25
    %p27 = scmp.ne.s32.totalorder %s19, %s22
    %p28 = scmp.eq.s32.totalorder %s9, 0
    %p29 = por %p27, %p28
    %p30 = scmp.ne.s32.totalorder %s19, %s22
    %p31 = scmp.eq.s32.totalorder %s14, 1
    %p32 = por %p30, %p31
    %p33 = scmp.ne.s32.totalorder %s22, %s23
    %p34 = scmp.eq.s32.totalorder %s14, 0
    %p35 = por %p33, %p34
    %p36 = scmp.ne.s32.totalorder %s22, %s23
    %p37 = scmp.eq.s32.totalorder %s15, 1
    %p38 = por %p36, %p37
    %p40 = scmp.ne.s32.totalorder %s23, %s39
    %p41 = scmp.eq.s32.totalorder %s15, 0
    %p42 = por %p40, %p41
    %s44 = sadd.s32 %s43, 1
    %p47 = scmp.eq.s32.totalorder %s9, 1
    %p48 = scmp.ne.s32.totalorder %s43, %s45
    %p49 = scmp.eq.s32.totalorder %s9, 0
    %p50 = por %p48, %p49
    %p51 = scmp.ne.s32.totalorder %s43, %s45
    %p52 = scmp.eq.s32.totalorder %s14, 1
    %p53 = por %p51, %p52
    %p54 = scmp.ne.s32.totalorder %s45, %s46
    %p55 = scmp.eq.s32.totalorder %s14, 0
    %p56 = por %p54, %p55
    %p57 = scmp.ne.s32.totalorder %s45, %s46
    %p58 = scmp.eq.s32.totalorder %s15, 1
    %p59 = por %p57, %p58
    %p61 = scmp.ne.s32.totalorder %s46, %s60
    %p62 = scmp.eq.s32.totalorder %s15, 0
    %p63 = por %p61, %p62
    %s65 = sadd.s32 %s64, 1
    %p68 = scmp.eq.s32.totalorder %s9, 1
    %p69 = scmp.ne.s32.totalorder %s64, %s66
    %p70 = scmp.eq.s32.totalorder %s9, 0
    %p71 = por %p69, %p70
    %p72 = scmp.ne.s32.totalorder %s64, %s66
    %p73 = scmp.eq.s32.totalorder %s14, 1
    %p74 = por %p72, %p73
    %p75 = scmp.ne.s32.totalorder %s66, %s67
    %p76 = scmp.eq.s32.totalorder %s14, 0
    %p77 = por %p75, %p76
    %p78 = scmp.ne.s32.totalorder %s66, %s67
    %p79 = scmp.eq.s32.totalorder %s15, 1
    %p80 = por %p78, %p79
    %p82 = scmp.ne.s32.totalorder %s67, %s81
    %p83 = scmp.eq.s32.totalorder %s15, 0
    %p84 = por %p82, %p83
    %s85 = ssub.s32 %s9, %s16
    %p86 = scmp.eq.s32.totalorder %s85, 0
    %s88 = sadd.s32 %s87, 1
    %s89 = scalar_select %p86, %s87, %s88
    %p92 = pneg %p86
    %p93 = scmp.eq.s32.totalorder %s9, 1
    %p94 = por %p92, %p93
    %p95 = scmp.ne.s32.totalorder %s87, %s90
    %p96 = scmp.eq.s32.totalorder %s9, 0
    %p97 = por %p95, %p96
    %p98 = scmp.ne.s32.totalorder %s87, %s90
    %p99 = scmp.eq.s32.totalorder %s14, 1
    %p100 = por %p98, %p99
    %p101 = scmp.ne.s32.totalorder %s90, %s91
    %p102 = scmp.eq.s32.totalorder %s14, 0
    %p103 = por %p101, %p102
    %p104 = scmp.ne.s32.totalorder %s90, %s91
    %p105 = scmp.eq.s32.totalorder %s15, 1
    %p106 = por %p104, %p105
    %p108 = scmp.ne.s32.totalorder %s91, %s107
    %p109 = scmp.eq.s32.totalorder %s15, 0
    %p110 = por %p108, %p109
    %p111 = scmp.le.s32.totalorder 1, %s9
    %p112 = scmp.lt.s32.totalorder %s9, 3
    %p113 = pnand %p111, %p112
    %p114 = pneg %p113
    // Predicated region
    $region9: #{vae_forward.2} parent=5 // pred_check
      _
    $region10: #{vae_forward.2} parent=5 // pred_check_branch
      %116 = sbr.rel (%p113) target = $region12
    $region11: #{vae_forward.2} parent=5 // pred_region
      %s117 = ssub.s32 %s9, 1
      // Predicated region
      $region13: #{vae_forward.2} parent=11 // pred_check
        %p118 = pneg %p56
      $region14: #{vae_forward.2} parent=11 // pred_check_branch
        %120 = sbr.rel (%p118) target = $region16
      $region15: #{vae_forward.2} parent=11 // pred_region
        _
      $region16: #{vae_forward.2} parent=11 // pred_fallthru
        _
      // Predicated region
      $region17: #{vae_forward.2} parent=11 // pred_check
        %p121 = pneg %p77
      $region18: #{vae_forward.2} parent=11 // pred_check_branch
        %123 = sbr.rel (%p121) target = $region20
      $region19: #{vae_forward.2} parent=11 // pred_region
        _
      $region20: #{vae_forward.2} parent=11 // pred_fallthru
        _
    $region12: #{vae_forward.2} parent=5 // pred_fallthru
      _
    %p124 = scmp.lt.s32.totalorder %s9, 2
    // Predicated region
    $region21: #{vae_forward.2} parent=5 // pred_check
      %p125 = pneg %p124
    $region22: #{vae_forward.2} parent=5 // pred_check_branch
      %127 = sbr.rel (%p125) target = $region24
    $region23: #{vae_forward.2} parent=5 // pred_region
      // Predicated region
      $region25: #{vae_forward.2} parent=23 // pred_check
        %p128 = pneg %p29
      $region26: #{vae_forward.2} parent=23 // pred_check_branch
        %130 = sbr.rel (%p128) target = $region28
      $region27: #{vae_forward.2} parent=23 // pred_region
        %p131 = scmp.lt.s32.totalorder %s9, 1
        %s132 = scalar_select %p131, %s9, 1
        %s133 = smul.addr %s132, 20
        %s134 = smul.addr %s133, 8
        %s135 = scalar_lea.vmem %s0, %s134
      $region28: #{vae_forward.2} parent=23 // pred_fallthru
        _
    $region24: #{vae_forward.2} parent=5 // pred_fallthru
      _
    %p136 = scmp.le.s32.totalorder 1, %s9
    %p137 = scmp.lt.s32.totalorder %s9, 3
    %p138 = pnand %p136, %p137
    %p139 = pneg %p138
    // Predicated region
    $region29: #{vae_forward.2} parent=5 // pred_check
      _
    $region30: #{vae_forward.2} parent=5 // pred_check_branch
      %141 = sbr.rel (%p138) target = $region32
    $region31: #{vae_forward.2} parent=5 // pred_region
      %s142 = ssub.s32 %s9, 1
      %p143 = scmp.lt.s32.totalorder %s14, 1
      %s144 = scalar_select %p143, %s14, 1
      %s145 = smul.addr %s144, 20
      %s146 = smul.addr %s145, 8
      %s147 = scalar_lea.vmem %s0, %s146
      %p148 = pneg %p35
      %p149 = pneg %p32
      %p150 = pneg %p56
      %p151 = pneg %p53
      %p152 = pneg %p77
      %p153 = pneg %p74
      %p154 = pneg %p103
      %p155 = pneg %p100
      %p156 = scmp.lt.s32.totalorder %s14, 1
      %s157 = scalar_select %p156, %s14, 1
      %s158 = smul.addr %s157, 8
      %s159 = smul.addr %s158, 8
      %s160 = scalar_lea.vmem %s3, %s159
      %p161 = scmp.lt.s32.totalorder %s14, 1
      %s162 = scalar_select %p161, %s14, 1
      %s163 = smul.addr %s162, 20
      %s164 = smul.addr %s163, 8
      %s165 = scalar_lea.vmem %s0, %s164
      %p166 = scmp.lt.s32.totalorder %s14, 1
      %s167 = scalar_select %p166, %s14, 1
      %s168 = smul.addr %s167, 8
      %s169 = smul.addr %s168, 8
      %s170 = scalar_lea.vmem %s3, %s169
      %v171 = vld [vmem:[%s165] sm:$0xff]
      %v172 = vld [vmem:[%s165 + $0x10] sm:$0xff]
      %v173 = vld [vmem:[%s165 + $0x20] sm:$0xff]
      %v174 = vld [vmem:[%s165 + $0x30] sm:$0xff]
      %v175 = vld [vmem:[%s165 + $0x40] sm:$0xff]
      %v176 = vld [vmem:[%s165 + $0x50] sm:$0xff]
      %v177 = vld [vmem:[%s165 + $0x60] sm:$0xff]
      %v178 = vld [vmem:[%s165 + $0x70] sm:$0xff]
      %v179 = vld [vmem:[%s1] sm:$0xff]
      %v180 = vld [vmem:[%s165 + $0x1] sm:$0xff]
      %v181 = vld [vmem:[%s165 + $0x11] sm:$0xff]
      %v182 = vld [vmem:[%s165 + $0x21] sm:$0xff]
      %v183 = vld [vmem:[%s165 + $0x31] sm:$0xff]
      %v184 = vld [vmem:[%s165 + $0x41] sm:$0xff]
      %v185 = vld [vmem:[%s165 + $0x51] sm:$0xff]
      %v186 = vld [vmem:[%s165 + $0x61] sm:$0xff]
      %v187 = vld [vmem:[%s165 + $0x71] sm:$0xff]
      %s188 = scalar_lea.vmem %s1, 8
      %v189 = vld [vmem:[%s188] sm:$0xff]
      %v191 = vcombine.high %v189, %v189
      %vm192 = vcmask 31744
      %v194 = vsel %vm192, %v180, 0
      %v197 = vsel %vm192, %v181, 0
      %v200 = vsel %vm192, %v182, 0
      %v203 = vsel %vm192, %v183, 0
      %v206 = vsel %vm192, %v184, 0
      %v209 = vsel %vm192, %v185, 0
      %v212 = vsel %vm192, %v186, 0
      %v215 = vsel %vm192, %v187, 0
      %vm217 = vcmask 1043456
      %v218 = vsel %vm217, %v189, 0
      %v220 = vsel %vm217, %v191, 0
      %222 = vmatprep.subr.mxu0 %v220
      %223 = vmatpush1.msra.mxu0 %v218
      %224 = vmatprep.subr.mxu0 0.0
      %225 = vmatpush1.msra.mxu0 0.0
      %226 = vmatprep.subr.mxu0 0.0
      %227 = vmatpush1.msra.mxu0 0.0
      %228 = vmatprep.subr.mxu0 0.0
      %229 = vmatpush1.msra.mxu0 0.0
      %230 = vmatprep.subr.mxu0 0.0
      %231 = vmatpush1.msra.mxu0 0.0
      %232 = vmatprep.subr.mxu0 0.0
      %233 = vmatpush1.msra.mxu0 0.0
      %234 = vmatprep.subr.mxu0 0.0
      %235 = vmatpush1.msra.mxu0 0.0
      %236 = vmatprep.subr.mxu0 0.0
      %237 = vmatpush1.msra.mxu0 0.0
      %238 = vmatprep.subr.mxu0 0.0
      %239 = vmatpush1.msra.mxu0 0.0
      %240 = vmatprep.subr.mxu0 0.0
      %241 = vmatpush1.msra.mxu0 0.0
      %242 = vmatprep.subr.mxu0 0.0
      %243 = vmatpush1.msra.mxu0 0.0
      %244 = vmatprep.subr.mxu0 0.0
      %245 = vmatpush1.msra.mxu0 0.0
      %246 = vmatprep.subr.mxu0 0.0
      %247 = vmatpush1.msra.mxu0 0.0
      %248 = vmatprep.subr.mxu0 0.0
      %249 = vmatpush1.msra.mxu0 0.0
      %250 = vmatprep.subr.mxu0 0.0
      %251 = vmatpush1.msra.mxu0 0.0
      %252 = vmatprep.subr.mxu0 0.0
      %253 = vmatpush1.msra.mxu0 0.0
      %254 = vmatprep.subr.mxu0 0.0
      %255 = vmatpush1.msra.mxu0 0.0
      %256 = vmatprep.subr.mxu0 0.0
      %257 = vmatpush1.msra.mxu0 0.0
      %258 = vmatprep.subr.mxu0 0.0
      %259 = vmatpush1.msra.mxu0 0.0
      %260 = vmatprep.subr.mxu0 0.0
      %261 = vmatpush1.msra.mxu0 0.0
      %262 = vmatprep.subr.mxu0 0.0
      %263 = vmatpush1.msra.mxu0 0.0
      %264 = vmatprep.subr.mxu0 0.0
      %265 = vmatpush1.msra.mxu0 0.0
      %266 = vmatprep.subr.mxu0 0.0
      %267 = vmatpush1.msra.mxu0 0.0
      %268 = vmatprep.subr.mxu0 0.0
      %269 = vmatpush1.msra.mxu0 0.0
      %270 = vmatprep.subr.mxu0 0.0
      %271 = vmatpush1.msra.mxu0 0.0
      %272 = vmatprep.subr.mxu0 0.0
      %273 = vmatpush1.msra.mxu0 0.0
      %274 = vmatprep.subr.mxu0 0.0
      %275 = vmatpush1.msra.mxu0 0.0
      %276 = vmatprep.subr.mxu0 0.0
      %277 = vmatpush1.msra.mxu0 0.0
      %278 = vmatprep.subr.mxu0 0.0
      %279 = vmatpush1.msra.mxu0 0.0
      %280 = vmatprep.subr.mxu0 0.0
      %281 = vmatpush1.msra.mxu0 0.0
      %282 = vmatprep.subr.mxu0 0.0
      %283 = vmatpush1.msra.mxu0 0.0
      %284 = vmatprep.subr.mxu0 0.0
      %285 = vmatpush1.msra.mxu0 0.0
      %286 = vmatprep.mubr.f32.mxu0 0.0
      %287 = vmatmul.mubr.f32.gmra.mrb[0].mxu0 %v194
      %v288 = vpop.f32.mrb[0].mxu0
      %v289 = vadd.f32 0.0, %v288
      %v290 = vpop.f32.mrb[0].mxu0
      %v291 = vadd.f32 0.0, %v290
      %292 = vmatprep.mubr.f32.mxu0 0.0
      %293 = vmatmul.mubr.f32.gmra.mrb[0].mxu0 %v197
      %v294 = vpop.f32.mrb[0].mxu0
      %v295 = vadd.f32 0.0, %v294
      %v296 = vpop.f32.mrb[0].mxu0
      %v297 = vadd.f32 0.0, %v296
      %298 = vmatprep.mubr.f32.mxu0 0.0
      %299 = vmatmul.mubr.f32.gmra.mrb[0].mxu0 %v200
      %v300 = vpop.f32.mrb[0].mxu0
      %v301 = vadd.f32 0.0, %v300
      %v302 = vpop.f32.mrb[0].mxu0
      %v303 = vadd.f32 0.0, %v302
      %304 = vmatprep.mubr.f32.mxu0 0.0
      %305 = vmatmul.mubr.f32.gmra.mrb[0].mxu0 %v203
      %v306 = vpop.f32.mrb[0].mxu0
      %v307 = vadd.f32 0.0, %v306
      %v308 = vpop.f32.mrb[0].mxu0
      %v309 = vadd.f32 0.0, %v308
      %310 = vmatprep.mubr.f32.mxu0 0.0
      %311 = vmatmul.mubr.f32.gmra.mrb[0].mxu0 %v206
      %v312 = vpop.f32.mrb[0].mxu0
      %v313 = vadd.f32 0.0, %v312
      %v314 = vpop.f32.mrb[0].mxu0
      %v315 = vadd.f32 0.0, %v314
      %316 = vmatprep.mubr.f32.mxu0 0.0
      %317 = vmatmul.mubr.f32.gmra.mrb[0].mxu0 %v209
      %v318 = vpop.f32.mrb[0].mxu0
      %v319 = vadd.f32 0.0, %v318
      %v320 = vpop.f32.mrb[0].mxu0
      %v321 = vadd.f32 0.0, %v320
      %322 = vmatprep.mubr.f32.mxu0 0.0
      %323 = vmatmul.mubr.f32.gmra.mrb[0].mxu0 %v212
      %v324 = vpop.f32.mrb[0].mxu0
      %v325 = vadd.f32 0.0, %v324
      %v326 = vpop.f32.mrb[0].mxu0
      %v327 = vadd.f32 0.0, %v326
      %328 = vmatprep.mubr.f32.mxu0 0.0
      %329 = vmatmul.mubr.f32.gmra.mrb[0].mxu0 %v215
      %v330 = vpop.f32.mrb[0].mxu0
      %v331 = vadd.f32 0.0, %v330
      %v332 = vpop.f32.mrb[0].mxu0
      %v333 = vadd.f32 0.0, %v332
      %334 = vdwg.mxu0
      %v336 = vcombine.high %v179, %v179
      %v338 = vsel %vm192, %v171, 0
      %v341 = vsel %vm192, %v172, 0
      %v344 = vsel %vm192, %v173, 0
      %v347 = vsel %vm192, %v174, 0
      %v350 = vsel %vm192, %v175, 0
      %v353 = vsel %vm192, %v176, 0
      %v356 = vsel %vm192, %v177, 0
      %v359 = vsel %vm192, %v178, 0
      %v361 = vsel %vm217, %v179, 0
      %v363 = vsel %vm217, %v336, 0
      %365 = vmatprep.subr.mxu0 %v363
      %366 = vmatpush1.msra.mxu0 %v361
      %367 = vmatprep.subr.mxu0 0.0
      %368 = vmatpush1.msra.mxu0 0.0
      %369 = vmatprep.subr.mxu0 0.0
      %370 = vmatpush1.msra.mxu0 0.0
      %371 = vmatprep.subr.mxu0 0.0
      %372 = vmatpush1.msra.mxu0 0.0
      %373 = vmatprep.subr.mxu0 0.0
      %374 = vmatpush1.msra.mxu0 0.0
      %375 = vmatprep.subr.mxu0 0.0
      %376 = vmatpush1.msra.mxu0 0.0
      %377 = vmatprep.subr.mxu0 0.0
      %378 = vmatpush1.msra.mxu0 0.0
      %379 = vmatprep.subr.mxu0 0.0
      %380 = vmatpush1.msra.mxu0 0.0
      %381 = vmatprep.subr.mxu0 0.0
      %382 = vmatpush1.msra.mxu0 0.0
      %383 = vmatprep.subr.mxu0 0.0
      %384 = vmatpush1.msra.mxu0 0.0
      %385 = vmatprep.subr.mxu0 0.0
      %386 = vmatpush1.msra.mxu0 0.0
      %387 = vmatprep.subr.mxu0 0.0
      %388 = vmatpush1.msra.mxu0 0.0
      %389 = vmatprep.subr.mxu0 0.0
      %390 = vmatpush1.msra.mxu0 0.0
      %391 = vmatprep.subr.mxu0 0.0
      %392 = vmatpush1.msra.mxu0 0.0
      %393 = vmatprep.subr.mxu0 0.0
      %394 = vmatpush1.msra.mxu0 0.0
      %395 = vmatprep.subr.mxu0 0.0
      %396 = vmatpush1.msra.mxu0 0.0
      %397 = vmatprep.subr.mxu0 0.0
      %398 = vmatpush1.msra.mxu0 0.0
      %399 = vmatprep.subr.mxu0 0.0
      %400 = vmatpush1.msra.mxu0 0.0
      %401 = vmatprep.subr.mxu0 0.0
      %402 = vmatpush1.msra.mxu0 0.0
      %403 = vmatprep.subr.mxu0 0.0
      %404 = vmatpush1.msra.mxu0 0.0
      %405 = vmatprep.subr.mxu0 0.0
      %406 = vmatpush1.msra.mxu0 0.0
      %407 = vmatprep.subr.mxu0 0.0
      %408 = vmatpush1.msra.mxu0 0.0
      %409 = vmatprep.subr.mxu0 0.0
      %410 = vmatpush1.msra.mxu0 0.0
      %411 = vmatprep.subr.mxu0 0.0
      %412 = vmatpush1.msra.mxu0 0.0
      %413 = vmatprep.subr.mxu0 0.0
      %414 = vmatpush1.msra.mxu0 0.0
      %415 = vmatprep.subr.mxu0 0.0
      %416 = vmatpush1.msra.mxu0 0.0
      %417 = vmatprep.subr.mxu0 0.0
      %418 = vmatpush1.msra.mxu0 0.0
      %419 = vmatprep.subr.mxu0 0.0
      %420 = vmatpush1.msra.mxu0 0.0
      %421 = vmatprep.subr.mxu0 0.0
      %422 = vmatpush1.msra.mxu0 0.0
      %423 = vmatprep.subr.mxu0 0.0
      %424 = vmatpush1.msra.mxu0 0.0
      %425 = vmatprep.subr.mxu0 0.0
      %426 = vmatpush1.msra.mxu0 0.0
      %427 = vmatprep.subr.mxu0 0.0
      %428 = vmatpush1.msra.mxu0 0.0
      %429 = vmatprep.mubr.f32.mxu0 0.0
      %430 = vmatmul.mubr.f32.gmra.mrb[0].mxu0 %v338
      %v431 = vpop.f32.mrb[0].mxu0
      %v432 = vadd.f32 %v289, %v431
      %v433 = vpop.f32.mrb[0].mxu0
      %v434 = vadd.f32 %v291, %v433
      %435 = vmatprep.mubr.f32.mxu0 0.0
      %436 = vmatmul.mubr.f32.gmra.mrb[0].mxu0 %v341
      %v437 = vpop.f32.mrb[0].mxu0
      %v438 = vadd.f32 %v295, %v437
      %v439 = vpop.f32.mrb[0].mxu0
      %v440 = vadd.f32 %v297, %v439
      %441 = vmatprep.mubr.f32.mxu0 0.0
      %442 = vmatmul.mubr.f32.gmra.mrb[0].mxu0 %v344
      %v443 = vpop.f32.mrb[0].mxu0
      %v444 = vadd.f32 %v301, %v443
      %v445 = vpop.f32.mrb[0].mxu0
      %v446 = vadd.f32 %v303, %v445
      %447 = vmatprep.mubr.f32.mxu0 0.0
      %448 = vmatmul.mubr.f32.gmra.mrb[0].mxu0 %v347
      %v449 = vpop.f32.mrb[0].mxu0
      %v450 = vadd.f32 %v307, %v449
      %v451 = vpop.f32.mrb[0].mxu0
      %v452 = vadd.f32 %v309, %v451
      %453 = vmatprep.mubr.f32.mxu0 0.0
      %454 = vmatmul.mubr.f32.gmra.mrb[0].mxu0 %v350
      %v455 = vpop.f32.mrb[0].mxu0
      %v456 = vadd.f32 %v313, %v455
      %v457 = vpop.f32.mrb[0].mxu0
      %v458 = vadd.f32 %v315, %v457
      %459 = vmatprep.mubr.f32.mxu0 0.0
      %460 = vmatmul.mubr.f32.gmra.mrb[0].mxu0 %v353
      %v461 = vpop.f32.mrb[0].mxu0
      %v462 = vadd.f32 %v319, %v461
      %v463 = vpop.f32.mrb[0].mxu0
      %v464 = vadd.f32 %v321, %v463
      %465 = vmatprep.mubr.f32.mxu0 0.0
      %466 = vmatmul.mubr.f32.gmra.mrb[0].mxu0 %v356
      %v467 = vpop.f32.mrb[0].mxu0
      %v468 = vadd.f32 %v325, %v467
      %v469 = vpop.f32.mrb[0].mxu0
      %v470 = vadd.f32 %v327, %v469
      %471 = vmatprep.mubr.f32.mxu0 0.0
      %472 = vmatmul.mubr.f32.gmra.mrb[0].mxu0 %v359
      %v473 = vpop.f32.mrb[0].mxu0
      %v474 = vadd.f32 %v331, %v473
      %v475 = vpop.f32.mrb[0].mxu0
      %v476 = vadd.f32 %v333, %v475
      %477 = vdwg.mxu0
      %v478 = vld [vmem:[%s165 + $0x2] sm:$0xff]
      %v479 = vld [vmem:[%s165 + $0x12] sm:$0xff]
      %v480 = vld [vmem:[%s165 + $0x22] sm:$0xff]
      %v481 = vld [vmem:[%s165 + $0x32] sm:$0xff]
      %v482 = vld [vmem:[%s165 + $0x42] sm:$0xff]
      %v483 = vld [vmem:[%s165 + $0x52] sm:$0xff]
      %v484 = vld [vmem:[%s165 + $0x62] sm:$0xff]
      %v485 = vld [vmem:[%s165 + $0x72] sm:$0xff]
      %s486 = scalar_lea.vmem %s1, 16
      %v487 = vld [vmem:[%s486] sm:$0xff]
      %v489 = vcombine.high %v487, %v487
      %v491 = vsel %vm192, %v478, 0
      %v494 = vsel %vm192, %v479, 0
      %v497 = vsel %vm192, %v480, 0
      %v500 = vsel %vm192, %v481, 0
      %v503 = vsel %vm192, %v482, 0
      %v506 = vsel %vm192, %v483, 0
      %v509 = vsel %vm192, %v484, 0
      %v512 = vsel %vm192, %v485, 0
      %v514 = vsel %vm217, %v487, 0
      %v516 = vsel %vm217, %v489, 0
      %518 = vmatprep.subr.mxu0 %v516
      %519 = vmatpush1.msra.mxu0 %v514
      %520 = vmatprep.subr.mxu0 0.0
      %521 = vmatpush1.msra.mxu0 0.0
      %522 = vmatprep.subr.mxu0 0.0
      %523 = vmatpush1.msra.mxu0 0.0
      %524 = vmatprep.subr.mxu0 0.0
      %525 = vmatpush1.msra.mxu0 0.0
      %526 = vmatprep.subr.mxu0 0.0
      %527 = vmatpush1.msra.mxu0 0.0
      %528 = vmatprep.subr.mxu0 0.0
      %529 = vmatpush1.msra.mxu0 0.0
      %530 = vmatprep.subr.mxu0 0.0
      %531 = vmatpush1.msra.mxu0 0.0
      %532 = vmatprep.subr.mxu0 0.0
      %533 = vmatpush1.msra.mxu0 0.0
      %534 = vmatprep.subr.mxu0 0.0
      %535 = vmatpush1.msra.mxu0 0.0
      %536 = vmatprep.subr.mxu0 0.0
      %537 = vmatpush1.msra.mxu0 0.0
      %538 = vmatprep.subr.mxu0 0.0
      %539 = vmatpush1.msra.mxu0 0.0
      %540 = vmatprep.subr.mxu0 0.0
      %541 = vmatpush1.msra.mxu0 0.0
      %542 = vmatprep.subr.mxu0 0.0
      %543 = vmatpush1.msra.mxu0 0.0
      %544 = vmatprep.subr.mxu0 0.0
      %545 = vmatpush1.msra.mxu0 0.0
      %546 = vmatprep.subr.mxu0 0.0
      %547 = vmatpush1.msra.mxu0 0.0
      %548 = vmatprep.subr.mxu0 0.0
      %549 = vmatpush1.msra.mxu0 0.0
      %550 = vmatprep.subr.mxu0 0.0
      %551 = vmatpush1.msra.mxu0 0.0
      %552 = vmatprep.subr.mxu0 0.0
      %553 = vmatpush1.msra.mxu0 0.0
      %554 = vmatprep.subr.mxu0 0.0
      %555 = vmatpush1.msra.mxu0 0.0
      %556 = vmatprep.subr.mxu0 0.0
      %557 = vmatpush1.msra.mxu0 0.0
      %558 = vmatprep.subr.mxu0 0.0
      %559 = vmatpush1.msra.mxu0 0.0
      %560 = vmatprep.subr.mxu0 0.0
      %561 = vmatpush1.msra.mxu0 0.0
      %562 = vmatprep.subr.mxu0 0.0
      %563 = vmatpush1.msra.mxu0 0.0
      %564 = vmatprep.subr.mxu0 0.0
      %565 = vmatpush1.msra.mxu0 0.0
      %566 = vmatprep.subr.mxu0 0.0
      %567 = vmatpush1.msra.mxu0 0.0
      %568 = vmatprep.subr.mxu0 0.0
      %569 = vmatpush1.msra.mxu0 0.0
      %570 = vmatprep.subr.mxu0 0.0
      %571 = vmatpush1.msra.mxu0 0.0
      %572 = vmatprep.subr.mxu0 0.0
      %573 = vmatpush1.msra.mxu0 0.0
      %574 = vmatprep.subr.mxu0 0.0
      %575 = vmatpush1.msra.mxu0 0.0
      %576 = vmatprep.subr.mxu0 0.0
      %577 = vmatpush1.msra.mxu0 0.0
      %578 = vmatprep.subr.mxu0 0.0
      %579 = vmatpush1.msra.mxu0 0.0
      %580 = vmatprep.subr.mxu0 0.0
      %581 = vmatpush1.msra.mxu0 0.0
      %582 = vmatprep.mubr.f32.mxu0 0.0
      %583 = vmatmul.mubr.f32.gmra.mrb[0].mxu0 %v491
      %v584 = vpop.f32.mrb[0].mxu0
      %v585 = vadd.f32 0.0, %v584
      %v586 = vpop.f32.mrb[0].mxu0
      %v587 = vadd.f32 0.0, %v586
      %588 = vmatprep.mubr.f32.mxu0 0.0
      %589 = vmatmul.mubr.f32.gmra.mrb[0].mxu0 %v494
      %v590 = vpop.f32.mrb[0].mxu0
      %v591 = vadd.f32 0.0, %v590
      %v592 = vpop.f32.mrb[0].mxu0
      %v593 = vadd.f32 0.0, %v592
      %594 = vmatprep.mubr.f32.mxu0 0.0
      %595 = vmatmul.mubr.f32.gmra.mrb[0].mxu0 %v497
      %v596 = vpop.f32.mrb[0].mxu0
      %v597 = vadd.f32 0.0, %v596
      %v598 = vpop.f32.mrb[0].mxu0
      %v599 = vadd.f32 0.0, %v598
      %600 = vmatprep.mubr.f32.mxu0 0.0
      %601 = vmatmul.mubr.f32.gmra.mrb[0].mxu0 %v500
      %v602 = vpop.f32.mrb[0].mxu0
      %v603 = vadd.f32 0.0, %v602
      %v604 = vpop.f32.mrb[0].mxu0
      %v605 = vadd.f32 0.0, %v604
      %606 = vmatprep.mubr.f32.mxu0 0.0
      %607 = vmatmul.mubr.f32.gmra.mrb[0].mxu0 %v503
      %v608 = vpop.f32.mrb[0].mxu0
      %v609 = vadd.f32 0.0, %v608
      %v610 = vpop.f32.mrb[0].mxu0
      %v611 = vadd.f32 0.0, %v610
      %612 = vmatprep.mubr.f32.mxu0 0.0
      %613 = vmatmul.mubr.f32.gmra.mrb[0].mxu0 %v506
      %v614 = vpop.f32.mrb[0].mxu0
      %v615 = vadd.f32 0.0, %v614
      %v616 = vpop.f32.mrb[0].mxu0
      %v617 = vadd.f32 0.0, %v616
      %618 = vmatprep.mubr.f32.mxu0 0.0
      %619 = vmatmul.mubr.f32.gmra.mrb[0].mxu0 %v509
      %v620 = vpop.f32.mrb[0].mxu0
      %v621 = vadd.f32 0.0, %v620
      %v622 = vpop.f32.mrb[0].mxu0
      %v623 = vadd.f32 0.0, %v622
      %624 = vmatprep.mubr.f32.mxu0 0.0
      %625 = vmatmul.mubr.f32.gmra.mrb[0].mxu0 %v512
      %v626 = vpop.f32.mrb[0].mxu0
      %v627 = vadd.f32 0.0, %v626
      %v628 = vpop.f32.mrb[0].mxu0
      %v629 = vadd.f32 0.0, %v628
      %630 = vdwg.mxu0
      %v631 = vadd.f32 %v432, %v585
      %v632 = vadd.f32 %v434, %v587
      %v633 = vadd.f32 %v438, %v591
      %v634 = vadd.f32 %v440, %v593
      %v635 = vadd.f32 %v444, %v597
      %v636 = vadd.f32 %v446, %v599
      %v637 = vadd.f32 %v450, %v603
      %v638 = vadd.f32 %v452, %v605
      %v639 = vadd.f32 %v456, %v609
      %v640 = vadd.f32 %v458, %v611
      %v641 = vadd.f32 %v462, %v615
      %v642 = vadd.f32 %v464, %v617
      %v643 = vadd.f32 %v468, %v621
      %v644 = vadd.f32 %v470, %v623
      %v645 = vadd.f32 %v474, %v627
      %v646 = vadd.f32 %v476, %v629
      %s647 = scalar_lea.vmem %s165, 16
      %v648 = vld [vmem:[%s647] sm:$0xff]
      %v649 = vld [vmem:[%s647 + $0x10] sm:$0xff]
      %v650 = vld [vmem:[%s647 + $0x20] sm:$0xff]
      %v651 = vld [vmem:[%s647 + $0x30] sm:$0xff]
      %v652 = vld [vmem:[%s647 + $0x40] sm:$0xff]
      %v653 = vld [vmem:[%s647 + $0x50] sm:$0xff]
      %v654 = vld [vmem:[%s647 + $0x60] sm:$0xff]
      %v655 = vld [vmem:[%s647 + $0x70] sm:$0xff]
      %s656 = scalar_lea.vmem %s1, 24
      %v657 = vld [vmem:[%s656] sm:$0xff]
      %v659 = vcombine.high %v657, %v657
      %v661 = vsel %vm192, %v648, 0
      %v664 = vsel %vm192, %v649, 0
      %v667 = vsel %vm192, %v650, 0
      %v670 = vsel %vm192, %v651, 0
      %v673 = vsel %vm192, %v652, 0
      %v676 = vsel %vm192, %v653, 0
      %v679 = vsel %vm192, %v654, 0
      %v682 = vsel %vm192, %v655, 0
      %v684 = vsel %vm217, %v657, 0
      %v686 = vsel %vm217, %v659, 0
      %688 = vmatprep.subr.mxu0 %v686
      %689 = vmatpush1.msra.mxu0 %v684
      %690 = vmatprep.subr.mxu0 0.0
      %691 = vmatpush1.msra.mxu0 0.0
      %692 = vmatprep.subr.mxu0 0.0
      %693 = vmatpush1.msra.mxu0 0.0
      %694 = vmatprep.subr.mxu0 0.0
      %695 = vmatpush1.msra.mxu0 0.0
      %696 = vmatprep.subr.mxu0 0.0
      %697 = vmatpush1.msra.mxu0 0.0
      %698 = vmatprep.subr.mxu0 0.0
      %699 = vmatpush1.msra.mxu0 0.0
      %700 = vmatprep.subr.mxu0 0.0
      %701 = vmatpush1.msra.mxu0 0.0
      %702 = vmatprep.subr.mxu0 0.0
      %703 = vmatpush1.msra.mxu0 0.0
      %704 = vmatprep.subr.mxu0 0.0
      %705 = vmatpush1.msra.mxu0 0.0
      %706 = vmatprep.subr.mxu0 0.0
      %707 = vmatpush1.msra.mxu0 0.0
      %708 = vmatprep.subr.mxu0 0.0
      %709 = vmatpush1.msra.mxu0 0.0
      %710 = vmatprep.subr.mxu0 0.0
      %711 = vmatpush1.msra.mxu0 0.0
      %712 = vmatprep.subr.mxu0 0.0
      %713 = vmatpush1.msra.mxu0 0.0
      %714 = vmatprep.subr.mxu0 0.0
      %715 = vmatpush1.msra.mxu0 0.0
      %716 = vmatprep.subr.mxu0 0.0
      %717 = vmatpush1.msra.mxu0 0.0
      %718 = vmatprep.subr.mxu0 0.0
      %719 = vmatpush1.msra.mxu0 0.0
      %720 = vmatprep.subr.mxu0 0.0
      %721 = vmatpush1.msra.mxu0 0.0
      %722 = vmatprep.subr.mxu0 0.0
      %723 = vmatpush1.msra.mxu0 0.0
      %724 = vmatprep.subr.mxu0 0.0
      %725 = vmatpush1.msra.mxu0 0.0
      %726 = vmatprep.subr.mxu0 0.0
      %727 = vmatpush1.msra.mxu0 0.0
      %728 = vmatprep.subr.mxu0 0.0
      %729 = vmatpush1.msra.mxu0 0.0
      %730 = vmatprep.subr.mxu0 0.0
      %731 = vmatpush1.msra.mxu0 0.0
      %732 = vmatprep.subr.mxu0 0.0
      %733 = vmatpush1.msra.mxu0 0.0
      %734 = vmatprep.subr.mxu0 0.0
      %735 = vmatpush1.msra.mxu0 0.0
      %736 = vmatprep.subr.mxu0 0.0
      %737 = vmatpush1.msra.mxu0 0.0
      %738 = vmatprep.subr.mxu0 0.0
      %739 = vmatpush1.msra.mxu0 0.0
      %740 = vmatprep.subr.mxu0 0.0
      %741 = vmatpush1.msra.mxu0 0.0
      %742 = vmatprep.subr.mxu0 0.0
      %743 = vmatpush1.msra.mxu0 0.0
      %744 = vmatprep.subr.mxu0 0.0
      %745 = vmatpush1.msra.mxu0 0.0
      %746 = vmatprep.subr.mxu0 0.0
      %747 = vmatpush1.msra.mxu0 0.0
      %748 = vmatprep.subr.mxu0 0.0
      %749 = vmatpush1.msra.mxu0 0.0
      %750 = vmatprep.subr.mxu0 0.0
      %751 = vmatpush1.msra.mxu0 0.0
      %752 = vmatprep.mubr.f32.mxu0 0.0
      %753 = vmatmul.mubr.f32.gmra.mrb[0].mxu0 %v661
      %v754 = vpop.f32.mrb[0].mxu0
      %v755 = vadd.f32 0.0, %v754
      %v756 = vpop.f32.mrb[0].mxu0
      %v757 = vadd.f32 0.0, %v756
      %758 = vmatprep.mubr.f32.mxu0 0.0
      %759 = vmatmul.mubr.f32.gmra.mrb[0].mxu0 %v664
      %v760 = vpop.f32.mrb[0].mxu0
      %v761 = vadd.f32 0.0, %v760
      %v762 = vpop.f32.mrb[0].mxu0
      %v763 = vadd.f32 0.0, %v762
      %764 = vmatprep.mubr.f32.mxu0 0.0
      %765 = vmatmul.mubr.f32.gmra.mrb[0].mxu0 %v667
      %v766 = vpop.f32.mrb[0].mxu0
      %v767 = vadd.f32 0.0, %v766
      %v768 = vpop.f32.mrb[0].mxu0
      %v769 = vadd.f32 0.0, %v768
      %770 = vmatprep.mubr.f32.mxu0 0.0
      %771 = vmatmul.mubr.f32.gmra.mrb[0].mxu0 %v670
      %v772 = vpop.f32.mrb[0].mxu0
      %v773 = vadd.f32 0.0, %v772
      %v774 = vpop.f32.mrb[0].mxu0
      %v775 = vadd.f32 0.0, %v774
      %776 = vmatprep.mubr.f32.mxu0 0.0
      %777 = vmatmul.mubr.f32.gmra.mrb[0].mxu0 %v673
      %v778 = vpop.f32.mrb[0].mxu0
      %v779 = vadd.f32 0.0, %v778
      %v780 = vpop.f32.mrb[0].mxu0
      %v781 = vadd.f32 0.0, %v780
      %782 = vmatprep.mubr.f32.mxu0 0.0
      %783 = vmatmul.mubr.f32.gmra.mrb[0].mxu0 %v676
      %v784 = vpop.f32.mrb[0].mxu0
      %v785 = vadd.f32 0.0, %v784
      %v786 = vpop.f32.mrb[0].mxu0
      %v787 = vadd.f32 0.0, %v786
      %788 = vmatprep.mubr.f32.mxu0 0.0
      %789 = vmatmul.mubr.f32.gmra.mrb[0].mxu0 %v679
      %v790 = vpop.f32.mrb[0].mxu0
      %v791 = vadd.f32 0.0, %v790
      %v792 = vpop.f32.mrb[0].mxu0
      %v793 = vadd.f32 0.0, %v792
      %794 = vmatprep.mubr.f32.mxu0 0.0
      %795 = vmatmul.mubr.f32.gmra.mrb[0].mxu0 %v682
      %v796 = vpop.f32.mrb[0].mxu0
      %v797 = vadd.f32 0.0, %v796
      %v798 = vpop.f32.mrb[0].mxu0
      %v799 = vadd.f32 0.0, %v798
      %800 = vdwg.mxu0
      %v801 = vadd.f32 %v631, %v755
      %v802 = vadd.f32 %v632, %v757
      %v803 = vadd.f32 %v633, %v761
      %v804 = vadd.f32 %v634, %v763
      %v805 = vadd.f32 %v635, %v767
      %v806 = vadd.f32 %v636, %v769
      %v807 = vadd.f32 %v637, %v773
      %v808 = vadd.f32 %v638, %v775
      %v809 = vadd.f32 %v639, %v779
      %v810 = vadd.f32 %v640, %v781
      %v811 = vadd.f32 %v641, %v785
      %v812 = vadd.f32 %v642, %v787
      %v813 = vadd.f32 %v643, %v791
      %v814 = vadd.f32 %v644, %v793
      %v815 = vadd.f32 %v645, %v797
      %v816 = vadd.f32 %v646, %v799
      %v817 = vld [vmem:[%s647 + $0x1] sm:$0xff]
      %v818 = vld [vmem:[%s647 + $0x11] sm:$0xff]
      %v819 = vld [vmem:[%s647 + $0x21] sm:$0xff]
      %v820 = vld [vmem:[%s647 + $0x31] sm:$0xff]
      %v821 = vld [vmem:[%s647 + $0x41] sm:$0xff]
      %v822 = vld [vmem:[%s647 + $0x51] sm:$0xff]
      %v823 = vld [vmem:[%s647 + $0x61] sm:$0xff]
      %v824 = vld [vmem:[%s647 + $0x71] sm:$0xff]
      %s825 = scalar_lea.vmem %s1, 32
      %v826 = vld [vmem:[%s825] sm:$0xff]
      %v828 = vcombine.high %v826, %v826
      %v830 = vsel %vm192, %v817, 0
      %v833 = vsel %vm192, %v818, 0
      %v836 = vsel %vm192, %v819, 0
      %v839 = vsel %vm192, %v820, 0
      %v842 = vsel %vm192, %v821, 0
      %v845 = vsel %vm192, %v822, 0
      %v848 = vsel %vm192, %v823, 0
      %v851 = vsel %vm192, %v824, 0
      %v853 = vsel %vm217, %v826, 0
      %v855 = vsel %vm217, %v828, 0
      %857 = vmatprep.subr.mxu0 %v855
      %858 = vmatpush1.msra.mxu0 %v853
      %859 = vmatprep.subr.mxu0 0.0
      %860 = vmatpush1.msra.mxu0 0.0
      %861 = vmatprep.subr.mxu0 0.0
      %862 = vmatpush1.msra.mxu0 0.0
      %863 = vmatprep.subr.mxu0 0.0
      %864 = vmatpush1.msra.mxu0 0.0
      %865 = vmatprep.subr.mxu0 0.0
      %866 = vmatpush1.msra.mxu0 0.0
      %867 = vmatprep.subr.mxu0 0.0
      %868 = vmatpush1.msra.mxu0 0.0
      %869 = vmatprep.subr.mxu0 0.0
      %870 = vmatpush1.msra.mxu0 0.0
      %871 = vmatprep.subr.mxu0 0.0
      %872 = vmatpush1.msra.mxu0 0.0
      %873 = vmatprep.subr.mxu0 0.0
      %874 = vmatpush1.msra.mxu0 0.0
      %875 = vmatprep.subr.mxu0 0.0
      %876 = vmatpush1.msra.mxu0 0.0
      %877 = vmatprep.subr.mxu0 0.0
      %878 = vmatpush1.msra.mxu0 0.0
      %879 = vmatprep.subr.mxu0 0.0
      %880 = vmatpush1.msra.mxu0 0.0
      %881 = vmatprep.subr.mxu0 0.0
      %882 = vmatpush1.msra.mxu0 0.0
      %883 = vmatprep.subr.mxu0 0.0
      %884 = vmatpush1.msra.mxu0 0.0
      %885 = vmatprep.subr.mxu0 0.0
      %886 = vmatpush1.msra.mxu0 0.0
      %887 = vmatprep.subr.mxu0 0.0
      %888 = vmatpush1.msra.mxu0 0.0
      %889 = vmatprep.subr.mxu0 0.0
      %890 = vmatpush1.msra.mxu0 0.0
      %891 = vmatprep.subr.mxu0 0.0
      %892 = vmatpush1.msra.mxu0 0.0
      %893 = vmatprep.subr.mxu0 0.0
      %894 = vmatpush1.msra.mxu0 0.0
      %895 = vmatprep.subr.mxu0 0.0
      %896 = vmatpush1.msra.mxu0 0.0
      %897 = vmatprep.subr.mxu0 0.0
      %898 = vmatpush1.msra.mxu0 0.0
      %899 = vmatprep.subr.mxu0 0.0
      %900 = vmatpush1.msra.mxu0 0.0
      %901 = vmatprep.subr.mxu0 0.0
      %902 = vmatpush1.msra.mxu0 0.0
      %903 = vmatprep.subr.mxu0 0.0
      %904 = vmatpush1.msra.mxu0 0.0
      %905 = vmatprep.subr.mxu0 0.0
      %906 = vmatpush1.msra.mxu0 0.0
      %907 = vmatprep.subr.mxu0 0.0
      %908 = vmatpush1.msra.mxu0 0.0
      %909 = vmatprep.subr.mxu0 0.0
      %910 = vmatpush1.msra.mxu0 0.0
      %911 = vmatprep.subr.mxu0 0.0
      %912 = vmatpush1.msra.mxu0 0.0
      %913 = vmatprep.subr.mxu0 0.0
      %914 = vmatpush1.msra.mxu0 0.0
      %915 = vmatprep.subr.mxu0 0.0
      %916 = vmatpush1.msra.mxu0 0.0
      %917 = vmatprep.subr.mxu0 0.0
      %918 = vmatpush1.msra.mxu0 0.0
      %919 = vmatprep.subr.mxu0 0.0
      %920 = vmatpush1.msra.mxu0 0.0
      %921 = vmatprep.mubr.f32.mxu0 0.0
      %922 = vmatmul.mubr.f32.gmra.mrb[0].mxu0 %v830
      %v923 = vpop.f32.mrb[0].mxu0
      %v924 = vadd.f32 0.0, %v923
      %v925 = vpop.f32.mrb[0].mxu0
      %v926 = vadd.f32 0.0, %v925
      %927 = vmatprep.mubr.f32.mxu0 0.0
      %928 = vmatmul.mubr.f32.gmra.mrb[0].mxu0 %v833
      %v929 = vpop.f32.mrb[0].mxu0
      %v930 = vadd.f32 0.0, %v929
      %v931 = vpop.f32.mrb[0].mxu0
      %v932 = vadd.f32 0.0, %v931
      %933 = vmatprep.mubr.f32.mxu0 0.0
      %934 = vmatmul.mubr.f32.gmra.mrb[0].mxu0 %v836
      %v935 = vpop.f32.mrb[0].mxu0
      %v936 = vadd.f32 0.0, %v935
      %v937 = vpop.f32.mrb[0].mxu0
      %v938 = vadd.f32 0.0, %v937
      %939 = vmatprep.mubr.f32.mxu0 0.0
      %940 = vmatmul.mubr.f32.gmra.mrb[0].mxu0 %v839
      %v941 = vpop.f32.mrb[0].mxu0
      %v942 = vadd.f32 0.0, %v941
      %v943 = vpop.f32.mrb[0].mxu0
      %v944 = vadd.f32 0.0, %v943
      %945 = vmatprep.mubr.f32.mxu0 0.0
      %946 = vmatmul.mubr.f32.gmra.mrb[0].mxu0 %v842
      %v947 = vpop.f32.mrb[0].mxu0
      %v948 = vadd.f32 0.0, %v947
      %v949 = vpop.f32.mrb[0].mxu0
      %v950 = vadd.f32 0.0, %v949
      %951 = vmatprep.mubr.f32.mxu0 0.0
      %952 = vmatmul.mubr.f32.gmra.mrb[0].mxu0 %v845
      %v953 = vpop.f32.mrb[0].mxu0
      %v954 = vadd.f32 0.0, %v953
      %v955 = vpop.f32.mrb[0].mxu0
      %v956 = vadd.f32 0.0, %v955
      %957 = vmatprep.mubr.f32.mxu0 0.0
      %958 = vmatmul.mubr.f32.gmra.mrb[0].mxu0 %v848
      %v959 = vpop.f32.mrb[0].mxu0
      %v960 = vadd.f32 0.0, %v959
      %v961 = vpop.f32.mrb[0].mxu0
      %v962 = vadd.f32 0.0, %v961
      %963 = vmatprep.mubr.f32.mxu0 0.0
      %964 = vmatmul.mubr.f32.gmra.mrb[0].mxu0 %v851
      %v965 = vpop.f32.mrb[0].mxu0
      %v966 = vadd.f32 0.0, %v965
      %v967 = vpop.f32.mrb[0].mxu0
      %v968 = vadd.f32 0.0, %v967
      %969 = vdwg.mxu0
      %v970 = vadd.f32 %v801, %v924
      %v971 = vadd.f32 %v802, %v926
      %v972 = vadd.f32 %v803, %v930
      %v973 = vadd.f32 %v804, %v932
      %v974 = vadd.f32 %v805, %v936
      %v975 = vadd.f32 %v806, %v938
      %v976 = vadd.f32 %v807, %v942
      %v977 = vadd.f32 %v808, %v944
      %v978 = vadd.f32 %v809, %v948
      %v979 = vadd.f32 %v810, %v950
      %v980 = vadd.f32 %v811, %v954
      %v981 = vadd.f32 %v812, %v956
      %v982 = vadd.f32 %v813, %v960
      %v983 = vadd.f32 %v814, %v962
      %v984 = vadd.f32 %v815, %v966
      %v985 = vadd.f32 %v816, %v968
      %v986 = vld [vmem:[%s647 + $0x2] sm:$0xff]
      %v987 = vld [vmem:[%s647 + $0x12] sm:$0xff]
      %v988 = vld [vmem:[%s647 + $0x22] sm:$0xff]
      %v989 = vld [vmem:[%s647 + $0x32] sm:$0xff]
      %v990 = vld [vmem:[%s647 + $0x42] sm:$0xff]
      %v991 = vld [vmem:[%s647 + $0x52] sm:$0xff]
      %v992 = vld [vmem:[%s647 + $0x62] sm:$0xff]
      %v993 = vld [vmem:[%s647 + $0x72] sm:$0xff]
      %s994 = scalar_lea.vmem %s1, 40
      %v995 = vld [vmem:[%s994] sm:$0xff]
      %v997 = vcombine.high %v995, %v995
      %v999 = vsel %vm192, %v986, 0
      %v1002 = vsel %vm192, %v987, 0
      %v1005 = vsel %vm192, %v988, 0
      %v1008 = vsel %vm192, %v989, 0
      %v1011 = vsel %vm192, %v990, 0
      %v1014 = vsel %vm192, %v991, 0
      %v1017 = vsel %vm192, %v992, 0
      %v1020 = vsel %vm192, %v993, 0
      %v1022 = vsel %vm217, %v995, 0
      %v1024 = vsel %vm217, %v997, 0
      %1026 = vmatprep.subr.mxu0 %v1024
      %1027 = vmatpush1.msra.mxu0 %v1022
      %1028 = vmatprep.subr.mxu0 0.0
      %1029 = vmatpush1.msra.mxu0 0.0
      %1030 = vmatprep.subr.mxu0 0.0
      %1031 = vmatpush1.msra.mxu0 0.0
      %1032 = vmatprep.subr.mxu0 0.0
      %1033 = vmatpush1.msra.mxu0 0.0
      %1034 = vmatprep.subr.mxu0 0.0
      %1035 = vmatpush1.msra.mxu0 0.0
      %1036 = vmatprep.subr.mxu0 0.0
      %1037 = vmatpush1.msra.mxu0 0.0
      %1038 = vmatprep.subr.mxu0 0.0
      %1039 = vmatpush1.msra.mxu0 0.0
      %1040 = vmatprep.subr.mxu0 0.0
      %1041 = vmatpush1.msra.mxu0 0.0
      %1042 = vmatprep.subr.mxu0 0.0
      %1043 = vmatpush1.msra.mxu0 0.0
      %1044 = vmatprep.subr.mxu0 0.0
      %1045 = vmatpush1.msra.mxu0 0.0
      %1046 = vmatprep.subr.mxu0 0.0
      %1047 = vmatpush1.msra.mxu0 0.0
      %1048 = vmatprep.subr.mxu0 0.0
      %1049 = vmatpush1.msra.mxu0 0.0
      %1050 = vmatprep.subr.mxu0 0.0
      %1051 = vmatpush1.msra.mxu0 0.0
      %1052 = vmatprep.subr.mxu0 0.0
      %1053 = vmatpush1.msra.mxu0 0.0
      %1054 = vmatprep.subr.mxu0 0.0
      %1055 = vmatpush1.msra.mxu0 0.0
      %1056 = vmatprep.subr.mxu0 0.0
      %1057 = vmatpush1.msra.mxu0 0.0
      %1058 = vmatprep.subr.mxu0 0.0
      %1059 = vmatpush1.msra.mxu0 0.0
      %1060 = vmatprep.subr.mxu0 0.0
      %1061 = vmatpush1.msra.mxu0 0.0
      %1062 = vmatprep.subr.mxu0 0.0
      %1063 = vmatpush1.msra.mxu0 0.0
      %1064 = vmatprep.subr.mxu0 0.0
      %1065 = vmatpush1.msra.mxu0 0.0
      %1066 = vmatprep.subr.mxu0 0.0
      %1067 = vmatpush1.msra.mxu0 0.0
      %1068 = vmatprep.subr.mxu0 0.0
      %1069 = vmatpush1.msra.mxu0 0.0
      %1070 = vmatprep.subr.mxu0 0.0
      %1071 = vmatpush1.msra.mxu0 0.0
      %1072 = vmatprep.subr.mxu0 0.0
      %1073 = vmatpush1.msra.mxu0 0.0
      %1074 = vmatprep.subr.mxu0 0.0
      %1075 = vmatpush1.msra.mxu0 0.0
      %1076 = vmatprep.subr.mxu0 0.0
      %1077 = vmatpush1.msra.mxu0 0.0
      %1078 = vmatprep.subr.mxu0 0.0
      %1079 = vmatpush1.msra.mxu0 0.0
      %1080 = vmatprep.subr.mxu0 0.0
      %1081 = vmatpush1.msra.mxu0 0.0
      %1082 = vmatprep.subr.mxu0 0.0
      %1083 = vmatpush1.msra.mxu0 0.0
      %1084 = vmatprep.subr.mxu0 0.0
      %1085 = vmatpush1.msra.mxu0 0.0
      %1086 = vmatprep.subr.mxu0 0.0
      %1087 = vmatpush1.msra.mxu0 0.0
      %1088 = vmatprep.subr.mxu0 0.0
      %1089 = vmatpush1.msra.mxu0 0.0
      %1090 = vmatprep.mubr.f32.mxu0 0.0
      %1091 = vmatmul.mubr.f32.gmra.mrb[0].mxu0 %v999
      %v1092 = vpop.f32.mrb[0].mxu0
      %v1093 = vadd.f32 0.0, %v1092
      %v1094 = vpop.f32.mrb[0].mxu0
      %v1095 = vadd.f32 0.0, %v1094
      %1096 = vmatprep.mubr.f32.mxu0 0.0
      %1097 = vmatmul.mubr.f32.gmra.mrb[0].mxu0 %v1002
      %v1098 = vpop.f32.mrb[0].mxu0
      %v1099 = vadd.f32 0.0, %v1098
      %v1100 = vpop.f32.mrb[0].mxu0
      %v1101 = vadd.f32 0.0, %v1100
      %1102 = vmatprep.mubr.f32.mxu0 0.0
      %1103 = vmatmul.mubr.f32.gmra.mrb[0].mxu0 %v1005
      %v1104 = vpop.f32.mrb[0].mxu0
      %v1105 = vadd.f32 0.0, %v1104
      %v1106 = vpop.f32.mrb[0].mxu0
      %v1107 = vadd.f32 0.0, %v1106
      %1108 = vmatprep.mubr.f32.mxu0 0.0
      %1109 = vmatmul.mubr.f32.gmra.mrb[0].mxu0 %v1008
      %v1110 = vpop.f32.mrb[0].mxu0
      %v1111 = vadd.f32 0.0, %v1110
      %v1112 = vpop.f32.mrb[0].mxu0
      %v1113 = vadd.f32 0.0, %v1112
      %1114 = vmatprep.mubr.f32.mxu0 0.0
      %1115 = vmatmul.mubr.f32.gmra.mrb[0].mxu0 %v1011
      %v1116 = vpop.f32.mrb[0].mxu0
      %v1117 = vadd.f32 0.0, %v1116
      %v1118 = vpop.f32.mrb[0].mxu0
      %v1119 = vadd.f32 0.0, %v1118
      %1120 = vmatprep.mubr.f32.mxu0 0.0
      %1121 = vmatmul.mubr.f32.gmra.mrb[0].mxu0 %v1014
      %v1122 = vpop.f32.mrb[0].mxu0
      %v1123 = vadd.f32 0.0, %v1122
      %v1124 = vpop.f32.mrb[0].mxu0
      %v1125 = vadd.f32 0.0, %v1124
      %1126 = vmatprep.mubr.f32.mxu0 0.0
      %1127 = vmatmul.mubr.f32.gmra.mrb[0].mxu0 %v1017
      %v1128 = vpop.f32.mrb[0].mxu0
      %v1129 = vadd.f32 0.0, %v1128
      %v1130 = vpop.f32.mrb[0].mxu0
      %v1131 = vadd.f32 0.0, %v1130
      %1132 = vmatprep.mubr.f32.mxu0 0.0
      %1133 = vmatmul.mubr.f32.gmra.mrb[0].mxu0 %v1020
      %v1134 = vpop.f32.mrb[0].mxu0
      %v1135 = vadd.f32 0.0, %v1134
      %v1136 = vpop.f32.mrb[0].mxu0
      %v1137 = vadd.f32 0.0, %v1136
      %1138 = vdwg.mxu0
      %v1139 = vadd.f32 %v970, %v1093
      %v1140 = vadd.f32 %v971, %v1095
      %v1141 = vadd.f32 %v972, %v1099
      %v1142 = vadd.f32 %v973, %v1101
      %v1143 = vadd.f32 %v974, %v1105
      %v1144 = vadd.f32 %v975, %v1107
      %v1145 = vadd.f32 %v976, %v1111
      %v1146 = vadd.f32 %v977, %v1113
      %v1147 = vadd.f32 %v978, %v1117
      %v1148 = vadd.f32 %v979, %v1119
      %v1149 = vadd.f32 %v980, %v1123
      %v1150 = vadd.f32 %v981, %v1125
      %v1151 = vadd.f32 %v982, %v1129
      %v1152 = vadd.f32 %v983, %v1131
      %v1153 = vadd.f32 %v984, %v1135
      %v1154 = vadd.f32 %v985, %v1137
      %s1155 = scalar_lea.vmem %s165, 32
      %v1156 = vld [vmem:[%s1155] sm:$0xff]
      %v1157 = vld [vmem:[%s1155 + $0x10] sm:$0xff]
      %v1158 = vld [vmem:[%s1155 + $0x20] sm:$0xff]
      %v1159 = vld [vmem:[%s1155 + $0x30] sm:$0xff]
      %v1160 = vld [vmem:[%s1155 + $0x40] sm:$0xff]
      %v1161 = vld [vmem:[%s1155 + $0x50] sm:$0xff]
      %v1162 = vld [vmem:[%s1155 + $0x60] sm:$0xff]
      %v1163 = vld [vmem:[%s1155 + $0x70] sm:$0xff]
      %s1164 = scalar_lea.vmem %s1, 48
      %v1165 = vld [vmem:[%s1164] sm:$0xff]
      %v1167 = vcombine.high %v1165, %v1165
      %v1169 = vsel %vm192, %v1156, 0
      %v1172 = vsel %vm192, %v1157, 0
      %v1175 = vsel %vm192, %v1158, 0
      %v1178 = vsel %vm192, %v1159, 0
      %v1181 = vsel %vm192, %v1160, 0
      %v1184 = vsel %vm192, %v1161, 0
      %v1187 = vsel %vm192, %v1162, 0
      %v1190 = vsel %vm192, %v1163, 0
      %v1192 = vsel %vm217, %v1165, 0
      %v1194 = vsel %vm217, %v1167, 0
      %1196 = vmatprep.subr.mxu0 %v1194
      %1197 = vmatpush1.msra.mxu0 %v1192
      %1198 = vmatprep.subr.mxu0 0.0
      %1199 = vmatpush1.msra.mxu0 0.0
      %1200 = vmatprep.subr.mxu0 0.0
      %1201 = vmatpush1.msra.mxu0 0.0
      %1202 = vmatprep.subr.mxu0 0.0
      %1203 = vmatpush1.msra.mxu0 0.0
      %1204 = vmatprep.subr.mxu0 0.0
      %1205 = vmatpush1.msra.mxu0 0.0
      %1206 = vmatprep.subr.mxu0 0.0
      %1207 = vmatpush1.msra.mxu0 0.0
      %1208 = vmatprep.subr.mxu0 0.0
      %1209 = vmatpush1.msra.mxu0 0.0
      %1210 = vmatprep.subr.mxu0 0.0
      %1211 = vmatpush1.msra.mxu0 0.0
      %1212 = vmatprep.subr.mxu0 0.0
      %1213 = vmatpush1.msra.mxu0 0.0
      %1214 = vmatprep.subr.mxu0 0.0
      %1215 = vmatpush1.msra.mxu0 0.0
      %1216 = vmatprep.subr.mxu0 0.0
      %1217 = vmatpush1.msra.mxu0 0.0
      %1218 = vmatprep.subr.mxu0 0.0
      %1219 = vmatpush1.msra.mxu0 0.0
      %1220 = vmatprep.subr.mxu0 0.0
      %1221 = vmatpush1.msra.mxu0 0.0
      %1222 = vmatprep.subr.mxu0 0.0
      %1223 = vmatpush1.msra.mxu0 0.0
      %1224 = vmatprep.subr.mxu0 0.0
      %1225 = vmatpush1.msra.mxu0 0.0
      %1226 = vmatprep.subr.mxu0 0.0
      %1227 = vmatpush1.msra.mxu0 0.0
      %1228 = vmatprep.subr.mxu0 0.0
      %1229 = vmatpush1.msra.mxu0 0.0
      %1230 = vmatprep.subr.mxu0 0.0
      %1231 = vmatpush1.msra.mxu0 0.0
      %1232 = vmatprep.subr.mxu0 0.0
      %1233 = vmatpush1.msra.mxu0 0.0
      %1234 = vmatprep.subr.mxu0 0.0
      %1235 = vmatpush1.msra.mxu0 0.0
      %1236 = vmatprep.subr.mxu0 0.0
      %1237 = vmatpush1.msra.mxu0 0.0
      %1238 = vmatprep.subr.mxu0 0.0
      %1239 = vmatpush1.msra.mxu0 0.0
      %1240 = vmatprep.subr.mxu0 0.0
      %1241 = vmatpush1.msra.mxu0 0.0
      %1242 = vmatprep.subr.mxu0 0.0
      %1243 = vmatpush1.msra.mxu0 0.0
      %1244 = vmatprep.subr.mxu0 0.0
      %1245 = vmatpush1.msra.mxu0 0.0
      %1246 = vmatprep.subr.mxu0 0.0
      %1247 = vmatpush1.msra.mxu0 0.0
      %1248 = vmatprep.subr.mxu0 0.0
      %1249 = vmatpush1.msra.mxu0 0.0
      %1250 = vmatprep.subr.mxu0 0.0
      %1251 = vmatpush1.msra.mxu0 0.0
      %1252 = vmatprep.subr.mxu0 0.0
      %1253 = vmatpush1.msra.mxu0 0.0
      %1254 = vmatprep.subr.mxu0 0.0
      %1255 = vmatpush1.msra.mxu0 0.0
      %1256 = vmatprep.subr.mxu0 0.0
      %1257 = vmatpush1.msra.mxu0 0.0
      %1258 = vmatprep.subr.mxu0 0.0
      %1259 = vmatpush1.msra.mxu0 0.0
      %1260 = vmatprep.mubr.f32.mxu0 0.0
      %1261 = vmatmul.mubr.f32.gmra.mrb[0].mxu0 %v1169
      %v1262 = vpop.f32.mrb[0].mxu0
      %v1263 = vadd.f32 0.0, %v1262
      %v1264 = vpop.f32.mrb[0].mxu0
      %v1265 = vadd.f32 0.0, %v1264
      %1266 = vmatprep.mubr.f32.mxu0 0.0
      %1267 = vmatmul.mubr.f32.gmra.mrb[0].mxu0 %v1172
      %v1268 = vpop.f32.mrb[0].mxu0
      %v1269 = vadd.f32 0.0, %v1268
      %v1270 = vpop.f32.mrb[0].mxu0
      %v1271 = vadd.f32 0.0, %v1270
      %1272 = vmatprep.mubr.f32.mxu0 0.0
      %1273 = vmatmul.mubr.f32.gmra.mrb[0].mxu0 %v1175
      %v1274 = vpop.f32.mrb[0].mxu0
      %v1275 = vadd.f32 0.0, %v1274
      %v1276 = vpop.f32.mrb[0].mxu0
      %v1277 = vadd.f32 0.0, %v1276
      %1278 = vmatprep.mubr.f32.mxu0 0.0
      %1279 = vmatmul.mubr.f32.gmra.mrb[0].mxu0 %v1178
      %v1280 = vpop.f32.mrb[0].mxu0
      %v1281 = vadd.f32 0.0, %v1280
      %v1282 = vpop.f32.mrb[0].mxu0
      %v1283 = vadd.f32 0.0, %v1282
      %1284 = vmatprep.mubr.f32.mxu0 0.0
      %1285 = vmatmul.mubr.f32.gmra.mrb[0].mxu0 %v1181
      %v1286 = vpop.f32.mrb[0].mxu0
      %v1287 = vadd.f32 0.0, %v1286
      %v1288 = vpop.f32.mrb[0].mxu0
      %v1289 = vadd.f32 0.0, %v1288
      %1290 = vmatprep.mubr.f32.mxu0 0.0
      %1291 = vmatmul.mubr.f32.gmra.mrb[0].mxu0 %v1184
      %v1292 = vpop.f32.mrb[0].mxu0
      %v1293 = vadd.f32 0.0, %v1292
      %v1294 = vpop.f32.mrb[0].mxu0
      %v1295 = vadd.f32 0.0, %v1294
      %1296 = vmatprep.mubr.f32.mxu0 0.0
      %1297 = vmatmul.mubr.f32.gmra.mrb[0].mxu0 %v1187
      %v1298 = vpop.f32.mrb[0].mxu0
      %v1299 = vadd.f32 0.0, %v1298
      %v1300 = vpop.f32.mrb[0].mxu0
      %v1301 = vadd.f32 0.0, %v1300
      %1302 = vmatprep.mubr.f32.mxu0 0.0
      %1303 = vmatmul.mubr.f32.gmra.mrb[0].mxu0 %v1190
      %v1304 = vpop.f32.mrb[0].mxu0
      %v1305 = vadd.f32 0.0, %v1304
      %v1306 = vpop.f32.mrb[0].mxu0
      %v1307 = vadd.f32 0.0, %v1306
      %1308 = vdwg.mxu0
      %v1309 = vadd.f32 %v1139, %v1263
      %v1310 = vadd.f32 %v1140, %v1265
      %v1311 = vadd.f32 %v1141, %v1269
      %v1312 = vadd.f32 %v1142, %v1271
      %v1313 = vadd.f32 %v1143, %v1275
      %v1314 = vadd.f32 %v1144, %v1277
      %v1315 = vadd.f32 %v1145, %v1281
      %v1316 = vadd.f32 %v1146, %v1283
      %v1317 = vadd.f32 %v1147, %v1287
      %v1318 = vadd.f32 %v1148, %v1289
      %v1319 = vadd.f32 %v1149, %v1293
      %v1320 = vadd.f32 %v1150, %v1295
      %v1321 = vadd.f32 %v1151, %v1299
      %v1322 = vadd.f32 %v1152, %v1301
      %v1323 = vadd.f32 %v1153, %v1305
      %v1324 = vadd.f32 %v1154, %v1307
      %v1325 = vld [vmem:[%s1155 + $0x1] sm:$0xff]
      %v1326 = vld [vmem:[%s1155 + $0x11] sm:$0xff]
      %v1327 = vld [vmem:[%s1155 + $0x21] sm:$0xff]
      %v1328 = vld [vmem:[%s1155 + $0x31] sm:$0xff]
      %v1329 = vld [vmem:[%s1155 + $0x41] sm:$0xff]
      %v1330 = vld [vmem:[%s1155 + $0x51] sm:$0xff]
      %v1331 = vld [vmem:[%s1155 + $0x61] sm:$0xff]
      %v1332 = vld [vmem:[%s1155 + $0x71] sm:$0xff]
      %s1333 = scalar_lea.vmem %s1, 56
      %v1334 = vld [vmem:[%s1333] sm:$0xff]
      %v1336 = vcombine.high %v1334, %v1334
      %v1338 = vsel %vm192, %v1325, 0
      %v1341 = vsel %vm192, %v1326, 0
      %v1344 = vsel %vm192, %v1327, 0
      %v1347 = vsel %vm192, %v1328, 0
      %v1350 = vsel %vm192, %v1329, 0
      %v1353 = vsel %vm192, %v1330, 0
      %v1356 = vsel %vm192, %v1331, 0
      %v1359 = vsel %vm192, %v1332, 0
      %v1361 = vsel %vm217, %v1334, 0
      %v1363 = vsel %vm217, %v1336, 0
      %1365 = vmatprep.subr.mxu0 %v1363
      %1366 = vmatpush1.msra.mxu0 %v1361
      %1367 = vmatprep.subr.mxu0 0.0
      %1368 = vmatpush1.msra.mxu0 0.0
      %1369 = vmatprep.subr.mxu0 0.0
      %1370 = vmatpush1.msra.mxu0 0.0
      %1371 = vmatprep.subr.mxu0 0.0
      %1372 = vmatpush1.msra.mxu0 0.0
      %1373 = vmatprep.subr.mxu0 0.0
      %1374 = vmatpush1.msra.mxu0 0.0
      %1375 = vmatprep.subr.mxu0 0.0
      %1376 = vmatpush1.msra.mxu0 0.0
      %1377 = vmatprep.subr.mxu0 0.0
      %1378 = vmatpush1.msra.mxu0 0.0
      %1379 = vmatprep.subr.mxu0 0.0
      %1380 = vmatpush1.msra.mxu0 0.0
      %1381 = vmatprep.subr.mxu0 0.0
      %1382 = vmatpush1.msra.mxu0 0.0
      %1383 = vmatprep.subr.mxu0 0.0
      %1384 = vmatpush1.msra.mxu0 0.0
      %1385 = vmatprep.subr.mxu0 0.0
      %1386 = vmatpush1.msra.mxu0 0.0
      %1387 = vmatprep.subr.mxu0 0.0
      %1388 = vmatpush1.msra.mxu0 0.0
      %1389 = vmatprep.subr.mxu0 0.0
      %1390 = vmatpush1.msra.mxu0 0.0
      %1391 = vmatprep.subr.mxu0 0.0
      %1392 = vmatpush1.msra.mxu0 0.0
      %1393 = vmatprep.subr.mxu0 0.0
      %1394 = vmatpush1.msra.mxu0 0.0
      %1395 = vmatprep.subr.mxu0 0.0
      %1396 = vmatpush1.msra.mxu0 0.0
      %1397 = vmatprep.subr.mxu0 0.0
      %1398 = vmatpush1.msra.mxu0 0.0
      %1399 = vmatprep.subr.mxu0 0.0
      %1400 = vmatpush1.msra.mxu0 0.0
      %1401 = vmatprep.subr.mxu0 0.0
      %1402 = vmatpush1.msra.mxu0 0.0
      %1403 = vmatprep.subr.mxu0 0.0
      %1404 = vmatpush1.msra.mxu0 0.0
      %1405 = vmatprep.subr.mxu0 0.0
      %1406 = vmatpush1.msra.mxu0 0.0
      %1407 = vmatprep.subr.mxu0 0.0
      %1408 = vmatpush1.msra.mxu0 0.0
      %1409 = vmatprep.subr.mxu0 0.0
      %1410 = vmatpush1.msra.mxu0 0.0
      %1411 = vmatprep.subr.mxu0 0.0
      %1412 = vmatpush1.msra.mxu0 0.0
      %1413 = vmatprep.subr.mxu0 0.0
      %1414 = vmatpush1.msra.mxu0 0.0
      %1415 = vmatprep.subr.mxu0 0.0
      %1416 = vmatpush1.msra.mxu0 0.0
      %1417 = vmatprep.subr.mxu0 0.0
      %1418 = vmatpush1.msra.mxu0 0.0
      %1419 = vmatprep.subr.mxu0 0.0
      %1420 = vmatpush1.msra.mxu0 0.0
      %1421 = vmatprep.subr.mxu0 0.0
      %1422 = vmatpush1.msra.mxu0 0.0
      %1423 = vmatprep.subr.mxu0 0.0
      %1424 = vmatpush1.msra.mxu0 0.0
      %1425 = vmatprep.subr.mxu0 0.0
      %1426 = vmatpush1.msra.mxu0 0.0
      %1427 = vmatprep.subr.mxu0 0.0
      %1428 = vmatpush1.msra.mxu0 0.0
      %1429 = vmatprep.mubr.f32.mxu0 0.0
      %1430 = vmatmul.mubr.f32.gmra.mrb[0].mxu0 %v1338
      %v1431 = vpop.f32.mrb[0].mxu0
      %v1432 = vadd.f32 0.0, %v1431
      %v1433 = vpop.f32.mrb[0].mxu0
      %v1434 = vadd.f32 0.0, %v1433
      %1435 = vmatprep.mubr.f32.mxu0 0.0
      %1436 = vmatmul.mubr.f32.gmra.mrb[0].mxu0 %v1341
      %v1437 = vpop.f32.mrb[0].mxu0
      %v1438 = vadd.f32 0.0, %v1437
      %v1439 = vpop.f32.mrb[0].mxu0
      %v1440 = vadd.f32 0.0, %v1439
      %1441 = vmatprep.mubr.f32.mxu0 0.0
      %1442 = vmatmul.mubr.f32.gmra.mrb[0].mxu0 %v1344
      %v1443 = vpop.f32.mrb[0].mxu0
      %v1444 = vadd.f32 0.0, %v1443
      %v1445 = vpop.f32.mrb[0].mxu0
      %v1446 = vadd.f32 0.0, %v1445
      %1447 = vmatprep.mubr.f32.mxu0 0.0
      %1448 = vmatmul.mubr.f32.gmra.mrb[0].mxu0 %v1347
      %v1449 = vpop.f32.mrb[0].mxu0
      %v1450 = vadd.f32 0.0, %v1449
      %v1451 = vpop.f32.mrb[0].mxu0
      %v1452 = vadd.f32 0.0, %v1451
      %1453 = vmatprep.mubr.f32.mxu0 0.0
      %1454 = vmatmul.mubr.f32.gmra.mrb[0].mxu0 %v1350
      %v1455 = vpop.f32.mrb[0].mxu0
      %v1456 = vadd.f32 0.0, %v1455
      %v1457 = vpop.f32.mrb[0].mxu0
      %v1458 = vadd.f32 0.0, %v1457
      %1459 = vmatprep.mubr.f32.mxu0 0.0
      %1460 = vmatmul.mubr.f32.gmra.mrb[0].mxu0 %v1353
      %v1461 = vpop.f32.mrb[0].mxu0
      %v1462 = vadd.f32 0.0, %v1461
      %v1463 = vpop.f32.mrb[0].mxu0
      %v1464 = vadd.f32 0.0, %v1463
      %1465 = vmatprep.mubr.f32.mxu0 0.0
      %1466 = vmatmul.mubr.f32.gmra.mrb[0].mxu0 %v1356
      %v1467 = vpop.f32.mrb[0].mxu0
      %v1468 = vadd.f32 0.0, %v1467
      %v1469 = vpop.f32.mrb[0].mxu0
      %v1470 = vadd.f32 0.0, %v1469
      %1471 = vmatprep.mubr.f32.mxu0 0.0
      %1472 = vmatmul.mubr.f32.gmra.mrb[0].mxu0 %v1359
      %v1473 = vpop.f32.mrb[0].mxu0
      %v1474 = vadd.f32 0.0, %v1473
      %v1475 = vpop.f32.mrb[0].mxu0
      %v1476 = vadd.f32 0.0, %v1475
      %1477 = vdwg.mxu0
      %v1478 = vadd.f32 %v1309, %v1432
      %v1479 = vadd.f32 %v1310, %v1434
      %v1480 = vadd.f32 %v1311, %v1438
      %v1481 = vadd.f32 %v1312, %v1440
      %v1482 = vadd.f32 %v1313, %v1444
      %v1483 = vadd.f32 %v1314, %v1446
      %v1484 = vadd.f32 %v1315, %v1450
      %v1485 = vadd.f32 %v1316, %v1452
      %v1486 = vadd.f32 %v1317, %v1456
      %v1487 = vadd.f32 %v1318, %v1458
      %v1488 = vadd.f32 %v1319, %v1462
      %v1489 = vadd.f32 %v1320, %v1464
      %v1490 = vadd.f32 %v1321, %v1468
      %v1491 = vadd.f32 %v1322, %v1470
      %v1492 = vadd.f32 %v1323, %v1474
      %v1493 = vadd.f32 %v1324, %v1476
      %v1494 = vld [vmem:[%s1155 + $0x2] sm:$0xff]
      %v1495 = vld [vmem:[%s1155 + $0x12] sm:$0xff]
      %v1496 = vld [vmem:[%s1155 + $0x22] sm:$0xff]
      %v1497 = vld [vmem:[%s1155 + $0x32] sm:$0xff]
      %v1498 = vld [vmem:[%s1155 + $0x42] sm:$0xff]
      %v1499 = vld [vmem:[%s1155 + $0x52] sm:$0xff]
      %v1500 = vld [vmem:[%s1155 + $0x62] sm:$0xff]
      %v1501 = vld [vmem:[%s1155 + $0x72] sm:$0xff]
      %s1502 = scalar_lea.vmem %s1, 64
      %v1503 = vld [vmem:[%s1502] sm:$0xff]
      %v1505 = vcombine.high %v1503, %v1503
      %v1507 = vsel %vm192, %v1494, 0
      %v1510 = vsel %vm192, %v1495, 0
      %v1513 = vsel %vm192, %v1496, 0
      %v1516 = vsel %vm192, %v1497, 0
      %v1519 = vsel %vm192, %v1498, 0
      %v1522 = vsel %vm192, %v1499, 0
      %v1525 = vsel %vm192, %v1500, 0
      %v1528 = vsel %vm192, %v1501, 0
      %v1530 = vsel %vm217, %v1503, 0
      %v1532 = vsel %vm217, %v1505, 0
      %1534 = vmatprep.subr.mxu0 %v1532
      %1535 = vmatpush1.msra.mxu0 %v1530
      %1536 = vmatprep.subr.mxu0 0.0
      %1537 = vmatpush1.msra.mxu0 0.0
      %1538 = vmatprep.subr.mxu0 0.0
      %1539 = vmatpush1.msra.mxu0 0.0
      %1540 = vmatprep.subr.mxu0 0.0
      %1541 = vmatpush1.msra.mxu0 0.0
      %1542 = vmatprep.subr.mxu0 0.0
      %1543 = vmatpush1.msra.mxu0 0.0
      %1544 = vmatprep.subr.mxu0 0.0
      %1545 = vmatpush1.msra.mxu0 0.0
      %1546 = vmatprep.subr.mxu0 0.0
      %1547 = vmatpush1.msra.mxu0 0.0
      %1548 = vmatprep.subr.mxu0 0.0
      %1549 = vmatpush1.msra.mxu0 0.0
      %1550 = vmatprep.subr.mxu0 0.0
      %1551 = vmatpush1.msra.mxu0 0.0
      %1552 = vmatprep.subr.mxu0 0.0
      %1553 = vmatpush1.msra.mxu0 0.0
      %1554 = vmatprep.subr.mxu0 0.0
      %1555 = vmatpush1.msra.mxu0 0.0
      %1556 = vmatprep.subr.mxu0 0.0
      %1557 = vmatpush1.msra.mxu0 0.0
      %1558 = vmatprep.subr.mxu0 0.0
      %1559 = vmatpush1.msra.mxu0 0.0
      %1560 = vmatprep.subr.mxu0 0.0
      %1561 = vmatpush1.msra.mxu0 0.0
      %1562 = vmatprep.subr.mxu0 0.0
      %1563 = vmatpush1.msra.mxu0 0.0
      %1564 = vmatprep.subr.mxu0 0.0
      %1565 = vmatpush1.msra.mxu0 0.0
      %1566 = vmatprep.subr.mxu0 0.0
      %1567 = vmatpush1.msra.mxu0 0.0
      %1568 = vmatprep.subr.mxu0 0.0
      %1569 = vmatpush1.msra.mxu0 0.0
      %1570 = vmatprep.subr.mxu0 0.0
      %1571 = vmatpush1.msra.mxu0 0.0
      %1572 = vmatprep.subr.mxu0 0.0
      %1573 = vmatpush1.msra.mxu0 0.0
      %1574 = vmatprep.subr.mxu0 0.0
      %1575 = vmatpush1.msra.mxu0 0.0
      %1576 = vmatprep.subr.mxu0 0.0
      %1577 = vmatpush1.msra.mxu0 0.0
      %1578 = vmatprep.subr.mxu0 0.0
      %1579 = vmatpush1.msra.mxu0 0.0
      %1580 = vmatprep.subr.mxu0 0.0
      %1581 = vmatpush1.msra.mxu0 0.0
      %1582 = vmatprep.subr.mxu0 0.0
      %1583 = vmatpush1.msra.mxu0 0.0
      %1584 = vmatprep.subr.mxu0 0.0
      %1585 = vmatpush1.msra.mxu0 0.0
      %1586 = vmatprep.subr.mxu0 0.0
      %1587 = vmatpush1.msra.mxu0 0.0
      %1588 = vmatprep.subr.mxu0 0.0
      %1589 = vmatpush1.msra.mxu0 0.0
      %1590 = vmatprep.subr.mxu0 0.0
      %1591 = vmatpush1.msra.mxu0 0.0
      %1592 = vmatprep.subr.mxu0 0.0
      %1593 = vmatpush1.msra.mxu0 0.0
      %1594 = vmatprep.subr.mxu0 0.0
      %1595 = vmatpush1.msra.mxu0 0.0
      %1596 = vmatprep.subr.mxu0 0.0
      %1597 = vmatpush1.msra.mxu0 0.0
      %1598 = vmatprep.mubr.f32.mxu0 0.0
      %1599 = vmatmul.mubr.f32.gmra.mrb[0].mxu0 %v1507
      %v1600 = vpop.f32.mrb[0].mxu0
      %v1601 = vadd.f32 0.0, %v1600
      %v1602 = vpop.f32.mrb[0].mxu0
      %v1603 = vadd.f32 0.0, %v1602
      %1604 = vmatprep.mubr.f32.mxu0 0.0
      %1605 = vmatmul.mubr.f32.gmra.mrb[0].mxu0 %v1510
      %v1606 = vpop.f32.mrb[0].mxu0
      %v1607 = vadd.f32 0.0, %v1606
      %v1608 = vpop.f32.mrb[0].mxu0
      %v1609 = vadd.f32 0.0, %v1608
      %1610 = vmatprep.mubr.f32.mxu0 0.0
      %1611 = vmatmul.mubr.f32.gmra.mrb[0].mxu0 %v1513
      %v1612 = vpop.f32.mrb[0].mxu0
      %v1613 = vadd.f32 0.0, %v1612
      %v1614 = vpop.f32.mrb[0].mxu0
      %v1615 = vadd.f32 0.0, %v1614
      %1616 = vmatprep.mubr.f32.mxu0 0.0
      %1617 = vmatmul.mubr.f32.gmra.mrb[0].mxu0 %v1516
      %v1618 = vpop.f32.mrb[0].mxu0
      %v1619 = vadd.f32 0.0, %v1618
      %v1620 = vpop.f32.mrb[0].mxu0
      %v1621 = vadd.f32 0.0, %v1620
      %1622 = vmatprep.mubr.f32.mxu0 0.0
      %1623 = vmatmul.mubr.f32.gmra.mrb[0].mxu0 %v1519
      %v1624 = vpop.f32.mrb[0].mxu0
      %v1625 = vadd.f32 0.0, %v1624
      %v1626 = vpop.f32.mrb[0].mxu0
      %v1627 = vadd.f32 0.0, %v1626
      %1628 = vmatprep.mubr.f32.mxu0 0.0
      %1629 = vmatmul.mubr.f32.gmra.mrb[0].mxu0 %v1522
      %v1630 = vpop.f32.mrb[0].mxu0
      %v1631 = vadd.f32 0.0, %v1630
      %v1632 = vpop.f32.mrb[0].mxu0
      %v1633 = vadd.f32 0.0, %v1632
      %1634 = vmatprep.mubr.f32.mxu0 0.0
      %1635 = vmatmul.mubr.f32.gmra.mrb[0].mxu0 %v1525
      %v1636 = vpop.f32.mrb[0].mxu0
      %v1637 = vadd.f32 0.0, %v1636
      %v1638 = vpop.f32.mrb[0].mxu0
      %v1639 = vadd.f32 0.0, %v1638
      %1640 = vmatprep.mubr.f32.mxu0 0.0
      %1641 = vmatmul.mubr.f32.gmra.mrb[0].mxu0 %v1528
      %v1642 = vpop.f32.mrb[0].mxu0
      %v1643 = vadd.f32 0.0, %v1642
      %v1644 = vpop.f32.mrb[0].mxu0
      %v1645 = vadd.f32 0.0, %v1644
      %1646 = vdwg.mxu0
      %v1647 = vadd.f32 %v1478, %v1601
      %v1648 = vadd.f32 %v1479, %v1603
      %v1649 = vadd.f32 %v1480, %v1607
      %v1650 = vadd.f32 %v1481, %v1609
      %v1651 = vadd.f32 %v1482, %v1613
      %v1652 = vadd.f32 %v1483, %v1615
      %v1653 = vadd.f32 %v1484, %v1619
      %v1654 = vadd.f32 %v1485, %v1621
      %v1655 = vadd.f32 %v1486, %v1625
      %v1656 = vadd.f32 %v1487, %v1627
      %v1657 = vadd.f32 %v1488, %v1631
      %v1658 = vadd.f32 %v1489, %v1633
      %v1659 = vadd.f32 %v1490, %v1637
      %v1660 = vadd.f32 %v1491, %v1639
      %v1661 = vadd.f32 %v1492, %v1643
      %v1662 = vadd.f32 %v1493, %v1645
      %v1663 = vmax.f32 %v1647, 0.0
      %v1664 = vmax.f32 %v1648, 0.0
      %v1665 = vmax.f32 %v1649, 0.0
      %v1666 = vmax.f32 %v1650, 0.0
      %v1667 = vmax.f32 %v1651, 0.0
      %v1668 = vmax.f32 %v1652, 0.0
      %v1669 = vmax.f32 %v1653, 0.0
      %v1670 = vmax.f32 %v1654, 0.0
      %v1671 = vmax.f32 %v1655, 0.0
      %v1672 = vmax.f32 %v1656, 0.0
      %v1673 = vmax.f32 %v1657, 0.0
      %v1674 = vmax.f32 %v1658, 0.0
      %v1675 = vmax.f32 %v1659, 0.0
      %v1676 = vmax.f32 %v1660, 0.0
      %v1677 = vmax.f32 %v1661, 0.0
      %v1678 = vmax.f32 %v1662, 0.0
      %1679 = vst [vmem:[#allocation2] sm:$0xff] 0.0
      %1680 = vst [vmem:[#allocation2 + $0x8] sm:$0xff] 0.0
      %1681 = vst [vmem:[#allocation2 + $0x10] sm:$0x3] 0.0
      %1682 = vst [vmem:[#allocation2 + $0x18] sm:$0x3] 0.0
      %1683 = vst [vmem:[#allocation2 + $0x20] sm:$0xff] 0.0
      %1684 = vst [vmem:[#allocation2 + $0x28] sm:$0xff] 0.0
      %1685 = vst [vmem:[#allocation2 + $0x30] sm:$0x3] 0.0
      %1686 = vst [vmem:[#allocation2 + $0x38] sm:$0x3] 0.0
      %1687 = vst [vmem:[#allocation2 + $0x40] sm:$0xff] 0.0
      %1688 = vst [vmem:[#allocation2 + $0x48] sm:$0xff] 0.0
      %1689 = vst [vmem:[#allocation2 + $0x50] sm:$0x3] 0.0
      %1690 = vst [vmem:[#allocation2 + $0x58] sm:$0x3] 0.0
      %1691 = vst [vmem:[#allocation2 + $0x60] sm:$0xff] 0.0
      %1692 = vst [vmem:[#allocation2 + $0x68] sm:$0xff] 0.0
      %1693 = vst [vmem:[#allocation2 + $0x70] sm:$0x3] 0.0
      %1694 = vst [vmem:[#allocation2 + $0x78] sm:$0x3] 0.0
      %1695 = vst [vmem:[#allocation2 + $0x80] sm:$0xff] 0.0
      %1696 = vst [vmem:[#allocation2 + $0x88] sm:$0xff] 0.0
      %1697 = vst [vmem:[#allocation2 + $0x90] sm:$0x3] 0.0
      %1698 = vst [vmem:[#allocation2 + $0x98] sm:$0x3] 0.0
      %1699 = vst [vmem:[#allocation2 + $0xa0] sm:$0xff] 0.0
      %1700 = vst [vmem:[#allocation2 + $0xa8] sm:$0xff] 0.0
      %1701 = vst [vmem:[#allocation2 + $0xb0] sm:$0x3] 0.0
      %1702 = vst [vmem:[#allocation2 + $0xb8] sm:$0x3] 0.0
      %1703 = vst [vmem:[#allocation2 + $0xc0] sm:$0xff] 0.0
      %1704 = vst [vmem:[#allocation2 + $0xc8] sm:$0xff] 0.0
      %1705 = vst [vmem:[#allocation2 + $0xd0] sm:$0x3] 0.0
      %1706 = vst [vmem:[#allocation2 + $0xd8] sm:$0x3] 0.0
      %1707 = vst [vmem:[#allocation2 + $0xe0] sm:$0xff] 0.0
      %1708 = vst [vmem:[#allocation2 + $0xe8] sm:$0xff] 0.0
      %1709 = vst [vmem:[#allocation2 + $0xf0] sm:$0x3] 0.0
      %1710 = vst [vmem:[#allocation2 + $0xf8] sm:$0x3] 0.0
      %1711 = vst [vmem:[#allocation2 + $0x100] sm:$0xff] 0.0
      %1712 = vst [vmem:[#allocation2 + $0x108] sm:$0xff] 0.0
      %1713 = vst [vmem:[#allocation2 + $0x110] sm:$0x3] 0.0
      %1714 = vst [vmem:[#allocation2 + $0x118] sm:$0x3] 0.0
      %1715 = vst [vmem:[#allocation2 + $0x120] sm:$0xff] 0.0
      %1716 = vst [vmem:[#allocation2 + $0x128] sm:$0xff] 0.0
      %1717 = vst [vmem:[#allocation2 + $0x130] sm:$0x3] 0.0
      %1718 = vst [vmem:[#allocation2 + $0x138] sm:$0x3] 0.0
      %v1735 = vrot.slane %v1663, 7
      %v1736 = vrot.slane %v1664, 7
      %v1737 = vrot.slane %v1665, 7
      %v1738 = vrot.slane %v1666, 7
      %v1739 = vrot.slane %v1667, 7
      %v1740 = vrot.slane %v1668, 7
      %v1741 = vrot.slane %v1669, 7
      %v1742 = vrot.slane %v1670, 7
      %v1743 = vrot.slane %v1671, 7
      %v1744 = vrot.slane %v1672, 7
      %v1745 = vrot.slane %v1673, 7
      %v1746 = vrot.slane %v1674, 7
      %v1747 = vrot.slane %v1675, 7
      %v1748 = vrot.slane %v1676, 7
      %v1749 = vrot.slane %v1677, 7
      %v1750 = vrot.slane %v1678, 7
      %s1767 = scalar_lea.vmem [#allocation2], 32
      %1768 = vst [vmem:[%s1767] sm:$0xfe] %v1735
      %1769 = vst [vmem:[%s1767 + $0x8] sm:$0xfe] %v1736
      %1770 = vst [vmem:[%s1767 + $0x10] sm:$0x1] %v1735
      %1771 = vst [vmem:[%s1767 + $0x18] sm:$0x1] %v1736
      %1772 = vst [vmem:[%s1767 + $0x20] sm:$0xfe] %v1737
      %1773 = vst [vmem:[%s1767 + $0x28] sm:$0xfe] %v1738
      %1774 = vst [vmem:[%s1767 + $0x30] sm:$0x1] %v1737
      %1775 = vst [vmem:[%s1767 + $0x38] sm:$0x1] %v1738
      %1776 = vst [vmem:[%s1767 + $0x40] sm:$0xfe] %v1739
      %1777 = vst [vmem:[%s1767 + $0x48] sm:$0xfe] %v1740
      %1778 = vst [vmem:[%s1767 + $0x50] sm:$0x1] %v1739
      %1779 = vst [vmem:[%s1767 + $0x58] sm:$0x1] %v1740
      %1780 = vst [vmem:[%s1767 + $0x60] sm:$0xfe] %v1741
      %1781 = vst [vmem:[%s1767 + $0x68] sm:$0xfe] %v1742
      %1782 = vst [vmem:[%s1767 + $0x70] sm:$0x1] %v1741
      %1783 = vst [vmem:[%s1767 + $0x78] sm:$0x1] %v1742
      %1784 = vst [vmem:[%s1767 + $0x80] sm:$0xfe] %v1743
      %1785 = vst [vmem:[%s1767 + $0x88] sm:$0xfe] %v1744
      %1786 = vst [vmem:[%s1767 + $0x90] sm:$0x1] %v1743
      %1787 = vst [vmem:[%s1767 + $0x98] sm:$0x1] %v1744
      %1788 = vst [vmem:[%s1767 + $0xa0] sm:$0xfe] %v1745
      %1789 = vst [vmem:[%s1767 + $0xa8] sm:$0xfe] %v1746
      %1790 = vst [vmem:[%s1767 + $0xb0] sm:$0x1] %v1745
      %1791 = vst [vmem:[%s1767 + $0xb8] sm:$0x1] %v1746
      %1792 = vst [vmem:[%s1767 + $0xc0] sm:$0xfe] %v1747
      %1793 = vst [vmem:[%s1767 + $0xc8] sm:$0xfe] %v1748
      %1794 = vst [vmem:[%s1767 + $0xd0] sm:$0x1] %v1747
      %1795 = vst [vmem:[%s1767 + $0xd8] sm:$0x1] %v1748
      %1796 = vst [vmem:[%s1767 + $0xe0] sm:$0xfe] %v1749
      %1797 = vst [vmem:[%s1767 + $0xe8] sm:$0xfe] %v1750
      %1798 = vst [vmem:[%s1767 + $0xf0] sm:$0x1] %v1749
      %1799 = vst [vmem:[%s1767 + $0xf8] sm:$0x1] %v1750
      %v1800 = vld [vmem:[#allocation2] sm:$0xff]
      %v1801 = vld [vmem:[#allocation2 + $0x8] sm:$0xff]
      %v1802 = vld [vmem:[#allocation2 + $0x20] sm:$0xff]
      %v1803 = vld [vmem:[#allocation2 + $0x28] sm:$0xff]
      %v1804 = vld [vmem:[#allocation2 + $0x40] sm:$0xff]
      %v1805 = vld [vmem:[#allocation2 + $0x48] sm:$0xff]
      %v1806 = vld [vmem:[#allocation2 + $0x60] sm:$0xff]
      %v1807 = vld [vmem:[#allocation2 + $0x68] sm:$0xff]
      %v1808 = vld [vmem:[#allocation2 + $0x80] sm:$0xff]
      %v1809 = vld [vmem:[#allocation2 + $0x88] sm:$0xff]
      %v1810 = vld [vmem:[#allocation2 + $0xa0] sm:$0xff]
      %v1811 = vld [vmem:[#allocation2 + $0xa8] sm:$0xff]
      %v1812 = vld [vmem:[#allocation2 + $0xc0] sm:$0xff]
      %v1813 = vld [vmem:[#allocation2 + $0xc8] sm:$0xff]
      %v1814 = vld [vmem:[#allocation2 + $0xe0] sm:$0xff]
      %v1815 = vld [vmem:[#allocation2 + $0xe8] sm:$0xff]
      %v1816 = vld [vmem:[%s2] sm:$0xff]
      %v1817 = vld [vmem:[%s2 + $0x8] sm:$0xff]
      %v1818 = vld [vmem:[%s2 + $0x10] sm:$0xff]
      %v1819 = vld [vmem:[%s2 + $0x18] sm:$0xff]
      %v1820 = vld [vmem:[%s2 + $0x20] sm:$0xff]
      %v1821 = vld [vmem:[%s2 + $0x28] sm:$0xff]
      %v1822 = vld [vmem:[%s2 + $0x30] sm:$0xff]
      %v1823 = vld [vmem:[%s2 + $0x38] sm:$0xff]
      %v1824 = vld [vmem:[%s2 + $0x40] sm:$0xff]
      %v1825 = vld [vmem:[%s2 + $0x48] sm:$0xff]
      %v1826 = vld [vmem:[%s2 + $0x50] sm:$0xff]
      %v1827 = vld [vmem:[%s2 + $0x58] sm:$0xff]
      %v1828 = vld [vmem:[%s2 + $0x60] sm:$0xff]
      %v1829 = vld [vmem:[%s2 + $0x68] sm:$0xff]
      %v1830 = vld [vmem:[%s2 + $0x70] sm:$0xff]
      %v1831 = vld [vmem:[%s2 + $0x78] sm:$0xff]
      %v1832 = vld [vmem:[%s2 + $0x80] sm:$0xff]
      %v1833 = vld [vmem:[%s2 + $0x88] sm:$0xff]
      %v1834 = vld [vmem:[%s2 + $0x90] sm:$0xff]
      %v1835 = vld [vmem:[%s2 + $0x98] sm:$0xff]
      %v1836 = vld [vmem:[%s2 + $0xa0] sm:$0xff]
      %v1837 = vld [vmem:[%s2 + $0xa8] sm:$0xff]
      %v1838 = vld [vmem:[%s2 + $0xb0] sm:$0xff]
      %v1839 = vld [vmem:[%s2 + $0xb8] sm:$0xff]
      %v1840 = vld [vmem:[%s2 + $0xc0] sm:$0xff]
      %v1841 = vld [vmem:[%s2 + $0xc8] sm:$0xff]
      %v1842 = vld [vmem:[%s2 + $0xd0] sm:$0xff]
      %v1843 = vld [vmem:[%s2 + $0xd8] sm:$0xff]
      %v1844 = vld [vmem:[%s2 + $0xe0] sm:$0xff]
      %v1845 = vld [vmem:[%s2 + $0xe8] sm:$0xff]
      %v1846 = vld [vmem:[%s2 + $0xf0] sm:$0xff]
      %v1847 = vld [vmem:[%s2 + $0xf8] sm:$0xff]
      %v1848 = vld [vmem:[#allocation2] sm:$0xfe]
      %v1849 = vld [vmem:[#allocation2 + $0x8] sm:$0xfe]
      %v1850 = vld [vmem:[#allocation2 + $0x10] sm:$0x1]
      %v1851 = vld [vmem:[#allocation2 + $0x18] sm:$0x1]
      %v1852 = vld [vmem:[#allocation2 + $0x20] sm:$0xfe]
      %v1853 = vld [vmem:[#allocation2 + $0x28] sm:$0xfe]
      %v1854 = vld [vmem:[#allocation2 + $0x30] sm:$0x1]
      %v1855 = vld [vmem:[#allocation2 + $0x38] sm:$0x1]
      %v1856 = vld [vmem:[#allocation2 + $0x40] sm:$0xfe]
      %v1857 = vld [vmem:[#allocation2 + $0x48] sm:$0xfe]
      %v1858 = vld [vmem:[#allocation2 + $0x50] sm:$0x1]
      %v1859 = vld [vmem:[#allocation2 + $0x58] sm:$0x1]
      %v1860 = vld [vmem:[#allocation2 + $0x60] sm:$0xfe]
      %v1861 = vld [vmem:[#allocation2 + $0x68] sm:$0xfe]
      %v1862 = vld [vmem:[#allocation2 + $0x70] sm:$0x1]
      %v1863 = vld [vmem:[#allocation2 + $0x78] sm:$0x1]
      %v1864 = vld [vmem:[#allocation2 + $0x80] sm:$0xfe]
      %v1865 = vld [vmem:[#allocation2 + $0x88] sm:$0xfe]
      %v1866 = vld [vmem:[#allocation2 + $0x90] sm:$0x1]
      %v1867 = vld [vmem:[#allocation2 + $0x98] sm:$0x1]
      %v1868 = vld [vmem:[#allocation2 + $0xa0] sm:$0xfe]
      %v1869 = vld [vmem:[#allocation2 + $0xa8] sm:$0xfe]
      %v1870 = vld [vmem:[#allocation2 + $0xb0] sm:$0x1]
      %v1871 = vld [vmem:[#allocation2 + $0xb8] sm:$0x1]
      %v1872 = vld [vmem:[#allocation2 + $0xc0] sm:$0xfe]
      %v1873 = vld [vmem:[#allocation2 + $0xc8] sm:$0xfe]
      %v1874 = vld [vmem:[#allocation2 + $0xd0] sm:$0x1]
      %v1875 = vld [vmem:[#allocation2 + $0xd8] sm:$0x1]
      %v1876 = vld [vmem:[#allocation2 + $0xe0] sm:$0xfe]
      %v1877 = vld [vmem:[#allocation2 + $0xe8] sm:$0xfe]
      %v1878 = vld [vmem:[#allocation2 + $0xf0] sm:$0x1]
      %v1879 = vld [vmem:[#allocation2 + $0xf8] sm:$0x1]
      %vm1912 = vcmask 1046528
      %v1913 = vrot.slane %v1848, 1
      %v1914 = vrot.slane %v1850, 1
      %v1915 = vsel %vm1912, %v1913, %v1914
      %v1916 = vrot.slane %v1849, 1
      %v1917 = vrot.slane %v1851, 1
      %v1918 = vsel %vm1912, %v1916, %v1917
      %v1919 = vrot.slane %v1852, 1
      %v1920 = vrot.slane %v1854, 1
      %v1921 = vsel %vm1912, %v1919, %v1920
      %v1922 = vrot.slane %v1853, 1
      %v1923 = vrot.slane %v1855, 1
      %v1924 = vsel %vm1912, %v1922, %v1923
      %v1925 = vrot.slane %v1856, 1
      %v1926 = vrot.slane %v1858, 1
      %v1927 = vsel %vm1912, %v1925, %v1926
      %v1928 = vrot.slane %v1857, 1
      %v1929 = vrot.slane %v1859, 1
      %v1930 = vsel %vm1912, %v1928, %v1929
      %v1931 = vrot.slane %v1860, 1
      %v1932 = vrot.slane %v1862, 1
      %v1933 = vsel %vm1912, %v1931, %v1932
      %v1934 = vrot.slane %v1861, 1
      %v1935 = vrot.slane %v1863, 1
      %v1936 = vsel %vm1912, %v1934, %v1935
      %v1937 = vrot.slane %v1864, 1
      %v1938 = vrot.slane %v1866, 1
      %v1939 = vsel %vm1912, %v1937, %v1938
      %v1940 = vrot.slane %v1865, 1
      %v1941 = vrot.slane %v1867, 1
      %v1942 = vsel %vm1912, %v1940, %v1941
      %v1943 = vrot.slane %v1868, 1
      %v1944 = vrot.slane %v1870, 1
      %v1945 = vsel %vm1912, %v1943, %v1944
      %v1946 = vrot.slane %v1869, 1
      %v1947 = vrot.slane %v1871, 1
      %v1948 = vsel %vm1912, %v1946, %v1947
      %v1949 = vrot.slane %v1872, 1
      %v1950 = vrot.slane %v1874, 1
      %v1951 = vsel %vm1912, %v1949, %v1950
      %v1952 = vrot.slane %v1873, 1
      %v1953 = vrot.slane %v1875, 1
      %v1954 = vsel %vm1912, %v1952, %v1953
      %v1955 = vrot.slane %v1876, 1
      %v1956 = vrot.slane %v1878, 1
      %v1957 = vsel %vm1912, %v1955, %v1956
      %v1958 = vrot.slane %v1877, 1
      %v1959 = vrot.slane %v1879, 1
      %v1960 = vsel %vm1912, %v1958, %v1959
      %s1977 = scalar_lea.vmem %s2, 256
      %v1978 = vld [vmem:[%s1977] sm:$0xff]
      %v1979 = vld [vmem:[%s1977 + $0x8] sm:$0xff]
      %v1980 = vld [vmem:[%s1977 + $0x10] sm:$0xff]
      %v1981 = vld [vmem:[%s1977 + $0x18] sm:$0xff]
      %v1982 = vld [vmem:[%s1977 + $0x20] sm:$0xff]
      %v1983 = vld [vmem:[%s1977 + $0x28] sm:$0xff]
      %v1984 = vld [vmem:[%s1977 + $0x30] sm:$0xff]
      %v1985 = vld [vmem:[%s1977 + $0x38] sm:$0xff]
      %v1986 = vld [vmem:[%s1977 + $0x40] sm:$0xff]
      %v1987 = vld [vmem:[%s1977 + $0x48] sm:$0xff]
      %v1988 = vld [vmem:[%s1977 + $0x50] sm:$0xff]
      %v1989 = vld [vmem:[%s1977 + $0x58] sm:$0xff]
      %v1990 = vld [vmem:[%s1977 + $0x60] sm:$0xff]
      %v1991 = vld [vmem:[%s1977 + $0x68] sm:$0xff]
      %v1992 = vld [vmem:[%s1977 + $0x70] sm:$0xff]
      %v1993 = vld [vmem:[%s1977 + $0x78] sm:$0xff]
      %v1994 = vld [vmem:[%s1977 + $0x80] sm:$0xff]
      %v1995 = vld [vmem:[%s1977 + $0x88] sm:$0xff]
      %v1996 = vld [vmem:[%s1977 + $0x90] sm:$0xff]
      %v1997 = vld [vmem:[%s1977 + $0x98] sm:$0xff]
      %v1998 = vld [vmem:[%s1977 + $0xa0] sm:$0xff]
      %v1999 = vld [vmem:[%s1977 + $0xa8] sm:$0xff]
      %v2000 = vld [vmem:[%s1977 + $0xb0] sm:$0xff]
      %v2001 = vld [vmem:[%s1977 + $0xb8] sm:$0xff]
      %v2002 = vld [vmem:[%s1977 + $0xc0] sm:$0xff]
      %v2003 = vld [vmem:[%s1977 + $0xc8] sm:$0xff]
      %v2004 = vld [vmem:[%s1977 + $0xd0] sm:$0xff]
      %v2005 = vld [vmem:[%s1977 + $0xd8] sm:$0xff]
      %v2006 = vld [vmem:[%s1977 + $0xe0] sm:$0xff]
      %v2007 = vld [vmem:[%s1977 + $0xe8] sm:$0xff]
      %v2008 = vld [vmem:[%s1977 + $0xf0] sm:$0xff]
      %v2009 = vld [vmem:[%s1977 + $0xf8] sm:$0xff]
      %2010 = vmatprep.subr.mxu0 0.0
      %2011 = vmatpush1.msra.mxu0 %v1978
      %2012 = vmatprep.subr.mxu0 0.0
      %2013 = vmatpush1.msra.mxu0 %v1979
      %2014 = vmatprep.subr.mxu0 0.0
      %2015 = vmatpush1.msra.mxu0 %v1980
      %2016 = vmatprep.subr.mxu0 0.0
      %2017 = vmatpush1.msra.mxu0 %v1981
      %2018 = vmatprep.subr.mxu0 0.0
      %2019 = vmatpush1.msra.mxu0 %v1982
      %2020 = vmatprep.subr.mxu0 0.0
      %2021 = vmatpush1.msra.mxu0 %v1983
      %2022 = vmatprep.subr.mxu0 0.0
      %2023 = vmatpush1.msra.mxu0 %v1984
      %2024 = vmatprep.subr.mxu0 0.0
      %2025 = vmatpush1.msra.mxu0 %v1985
      %2026 = vmatprep.subr.mxu0 0.0
      %2027 = vmatpush1.msra.mxu0 %v1986
      %2028 = vmatprep.subr.mxu0 0.0
      %2029 = vmatpush1.msra.mxu0 %v1987
      %2030 = vmatprep.subr.mxu0 0.0
      %2031 = vmatpush1.msra.mxu0 %v1988
      %2032 = vmatprep.subr.mxu0 0.0
      %2033 = vmatpush1.msra.mxu0 %v1989
      %2034 = vmatprep.subr.mxu0 0.0
      %2035 = vmatpush1.msra.mxu0 %v1990
      %2036 = vmatprep.subr.mxu0 0.0
      %2037 = vmatpush1.msra.mxu0 %v1991
      %2038 = vmatprep.subr.mxu0 0.0
      %2039 = vmatpush1.msra.mxu0 %v1992
      %2040 = vmatprep.subr.mxu0 0.0
      %2041 = vmatpush1.msra.mxu0 %v1993
      %2042 = vmatprep.subr.mxu0 0.0
      %2043 = vmatpush1.msra.mxu0 %v1994
      %2044 = vmatprep.subr.mxu0 0.0
      %2045 = vmatpush1.msra.mxu0 %v1995
      %2046 = vmatprep.subr.mxu0 0.0
      %2047 = vmatpush1.msra.mxu0 %v1996
      %2048 = vmatprep.subr.mxu0 0.0
      %2049 = vmatpush1.msra.mxu0 %v1997
      %2050 = vmatprep.subr.mxu0 0.0
      %2051 = vmatpush1.msra.mxu0 %v1998
      %2052 = vmatprep.subr.mxu0 0.0
      %2053 = vmatpush1.msra.mxu0 %v1999
      %2054 = vmatprep.subr.mxu0 0.0
      %2055 = vmatpush1.msra.mxu0 %v2000
      %2056 = vmatprep.subr.mxu0 0.0
      %2057 = vmatpush1.msra.mxu0 %v2001
      %2058 = vmatprep.subr.mxu0 0.0
      %2059 = vmatpush1.msra.mxu0 %v2002
      %2060 = vmatprep.subr.mxu0 0.0
      %2061 = vmatpush1.msra.mxu0 %v2003
      %2062 = vmatprep.subr.mxu0 0.0
      %2063 = vmatpush1.msra.mxu0 %v2004
      %2064 = vmatprep.subr.mxu0 0.0
      %2065 = vmatpush1.msra.mxu0 %v2005
      %2066 = vmatprep.subr.mxu0 0.0
      %2067 = vmatpush1.msra.mxu0 %v2006
      %2068 = vmatprep.subr.mxu0 0.0
      %2069 = vmatpush1.msra.mxu0 %v2007
      %2070 = vmatprep.subr.mxu0 0.0
      %2071 = vmatpush1.msra.mxu0 %v2008
      %2072 = vmatprep.subr.mxu0 0.0
      %2073 = vmatpush1.msra.mxu0 %v2009
      %2074 = vmatprep.mubr.f32.mxu0 %v1918
      %2075 = vmatmul.mubr.f32.gmra.mrb[0].mxu0 %v1915
      %v2076 = vpop.f32.mrb[0].mxu0
      %v2077 = vadd.f32 0.0, %v2076
      %v2078 = vpop.f32.mrb[0].mxu0
      %2079 = vmatprep.mubr.f32.mxu0 %v1924
      %2080 = vmatmul.mubr.f32.gmra.mrb[0].mxu0 %v1921
      %v2081 = vpop.f32.mrb[0].mxu0
      %v2082 = vadd.f32 0.0, %v2081
      %v2083 = vpop.f32.mrb[0].mxu0
      %2084 = vmatprep.mubr.f32.mxu0 %v1930
      %2085 = vmatmul.mubr.f32.gmra.mrb[0].mxu0 %v1927
      %v2086 = vpop.f32.mrb[0].mxu0
      %v2087 = vadd.f32 0.0, %v2086
      %v2088 = vpop.f32.mrb[0].mxu0
      %2089 = vmatprep.mubr.f32.mxu0 %v1936
      %2090 = vmatmul.mubr.f32.gmra.mrb[0].mxu0 %v1933
      %v2091 = vpop.f32.mrb[0].mxu0
      %v2092 = vadd.f32 0.0, %v2091
      %v2093 = vpop.f32.mrb[0].mxu0
      %2094 = vmatprep.mubr.f32.mxu0 %v1942
      %2095 = vmatmul.mubr.f32.gmra.mrb[0].mxu0 %v1939
      %v2096 = vpop.f32.mrb[0].mxu0
      %v2097 = vadd.f32 0.0, %v2096
      %v2098 = vpop.f32.mrb[0].mxu0
      %2099 = vmatprep.mubr.f32.mxu0 %v1948
      %2100 = vmatmul.mubr.f32.gmra.mrb[0].mxu0 %v1945
      %v2101 = vpop.f32.mrb[0].mxu0
      %v2102 = vadd.f32 0.0, %v2101
      %v2103 = vpop.f32.mrb[0].mxu0
      %2104 = vmatprep.mubr.f32.mxu0 %v1954
      %2105 = vmatmul.mubr.f32.gmra.mrb[0].mxu0 %v1951
      %v2106 = vpop.f32.mrb[0].mxu0
      %v2107 = vadd.f32 0.0, %v2106
      %v2108 = vpop.f32.mrb[0].mxu0
      %2109 = vmatprep.mubr.f32.mxu0 %v1960
      %2110 = vmatmul.mubr.f32.gmra.mrb[0].mxu0 %v1957
      %v2111 = vpop.f32.mrb[0].mxu0
      %v2112 = vadd.f32 0.0, %v2111
      %v2113 = vpop.f32.mrb[0].mxu0
      %2114 = vdwg.mxu0
      %2115 = vmatprep.subr.mxu0 0.0
      %2116 = vmatpush1.msra.mxu0 %v1816
      %2117 = vmatprep.subr.mxu0 0.0
      %2118 = vmatpush1.msra.mxu0 %v1817
      %2119 = vmatprep.subr.mxu0 0.0
      %2120 = vmatpush1.msra.mxu0 %v1818
      %2121 = vmatprep.subr.mxu0 0.0
      %2122 = vmatpush1.msra.mxu0 %v1819
      %2123 = vmatprep.subr.mxu0 0.0
      %2124 = vmatpush1.msra.mxu0 %v1820
      %2125 = vmatprep.subr.mxu0 0.0
      %2126 = vmatpush1.msra.mxu0 %v1821
      %2127 = vmatprep.subr.mxu0 0.0
      %2128 = vmatpush1.msra.mxu0 %v1822
      %2129 = vmatprep.subr.mxu0 0.0
      %2130 = vmatpush1.msra.mxu0 %v1823
      %2131 = vmatprep.subr.mxu0 0.0
      %2132 = vmatpush1.msra.mxu0 %v1824
      %2133 = vmatprep.subr.mxu0 0.0
      %2134 = vmatpush1.msra.mxu0 %v1825
      %2135 = vmatprep.subr.mxu0 0.0
      %2136 = vmatpush1.msra.mxu0 %v1826
      %2137 = vmatprep.subr.mxu0 0.0
      %2138 = vmatpush1.msra.mxu0 %v1827
      %2139 = vmatprep.subr.mxu0 0.0
      %2140 = vmatpush1.msra.mxu0 %v1828
      %2141 = vmatprep.subr.mxu0 0.0
      %2142 = vmatpush1.msra.mxu0 %v1829
      %2143 = vmatprep.subr.mxu0 0.0
      %2144 = vmatpush1.msra.mxu0 %v1830
      %2145 = vmatprep.subr.mxu0 0.0
      %2146 = vmatpush1.msra.mxu0 %v1831
      %2147 = vmatprep.subr.mxu0 0.0
      %2148 = vmatpush1.msra.mxu0 %v1832
      %2149 = vmatprep.subr.mxu0 0.0
      %2150 = vmatpush1.msra.mxu0 %v1833
      %2151 = vmatprep.subr.mxu0 0.0
      %2152 = vmatpush1.msra.mxu0 %v1834
      %2153 = vmatprep.subr.mxu0 0.0
      %2154 = vmatpush1.msra.mxu0 %v1835
      %2155 = vmatprep.subr.mxu0 0.0
      %2156 = vmatpush1.msra.mxu0 %v1836
      %2157 = vmatprep.subr.mxu0 0.0
      %2158 = vmatpush1.msra.mxu0 %v1837
      %2159 = vmatprep.subr.mxu0 0.0
      %2160 = vmatpush1.msra.mxu0 %v1838
      %2161 = vmatprep.subr.mxu0 0.0
      %2162 = vmatpush1.msra.mxu0 %v1839
      %2163 = vmatprep.subr.mxu0 0.0
      %2164 = vmatpush1.msra.mxu0 %v1840
      %2165 = vmatprep.subr.mxu0 0.0
      %2166 = vmatpush1.msra.mxu0 %v1841
      %2167 = vmatprep.subr.mxu0 0.0
      %2168 = vmatpush1.msra.mxu0 %v1842
      %2169 = vmatprep.subr.mxu0 0.0
      %2170 = vmatpush1.msra.mxu0 %v1843
      %2171 = vmatprep.subr.mxu0 0.0
      %2172 = vmatpush1.msra.mxu0 %v1844
      %2173 = vmatprep.subr.mxu0 0.0
      %2174 = vmatpush1.msra.mxu0 %v1845
      %2175 = vmatprep.subr.mxu0 0.0
      %2176 = vmatpush1.msra.mxu0 %v1846
      %2177 = vmatprep.subr.mxu0 0.0
      %2178 = vmatpush1.msra.mxu0 %v1847
      %2179 = vmatprep.mubr.f32.mxu0 %v1801
      %2180 = vmatmul.mubr.f32.gmra.mrb[0].mxu0 %v1800
      %v2181 = vpop.f32.mrb[0].mxu0
      %v2182 = vadd.f32 %v2077, %v2181
      %v2183 = vpop.f32.mrb[0].mxu0
      %2184 = vmatprep.mubr.f32.mxu0 %v1803
      %2185 = vmatmul.mubr.f32.gmra.mrb[0].mxu0 %v1802
      %v2186 = vpop.f32.mrb[0].mxu0
      %v2187 = vadd.f32 %v2082, %v2186
      %v2188 = vpop.f32.mrb[0].mxu0
      %2189 = vmatprep.mubr.f32.mxu0 %v1805
      %2190 = vmatmul.mubr.f32.gmra.mrb[0].mxu0 %v1804
      %v2191 = vpop.f32.mrb[0].mxu0
      %v2192 = vadd.f32 %v2087, %v2191
      %v2193 = vpop.f32.mrb[0].mxu0
      %2194 = vmatprep.mubr.f32.mxu0 %v1807
      %2195 = vmatmul.mubr.f32.gmra.mrb[0].mxu0 %v1806
      %v2196 = vpop.f32.mrb[0].mxu0
      %v2197 = vadd.f32 %v2092, %v2196
      %v2198 = vpop.f32.mrb[0].mxu0
      %2199 = vmatprep.mubr.f32.mxu0 %v1809
      %2200 = vmatmul.mubr.f32.gmra.mrb[0].mxu0 %v1808
      %v2201 = vpop.f32.mrb[0].mxu0
      %v2202 = vadd.f32 %v2097, %v2201
      %v2203 = vpop.f32.mrb[0].mxu0
      %2204 = vmatprep.mubr.f32.mxu0 %v1811
      %2205 = vmatmul.mubr.f32.gmra.mrb[0].mxu0 %v1810
      %v2206 = vpop.f32.mrb[0].mxu0
      %v2207 = vadd.f32 %v2102, %v2206
      %v2208 = vpop.f32.mrb[0].mxu0
      %2209 = vmatprep.mubr.f32.mxu0 %v1813
      %2210 = vmatmul.mubr.f32.gmra.mrb[0].mxu0 %v1812
      %v2211 = vpop.f32.mrb[0].mxu0
      %v2212 = vadd.f32 %v2107, %v2211
      %v2213 = vpop.f32.mrb[0].mxu0
      %2214 = vmatprep.mubr.f32.mxu0 %v1815
      %2215 = vmatmul.mubr.f32.gmra.mrb[0].mxu0 %v1814
      %v2216 = vpop.f32.mrb[0].mxu0
      %v2217 = vadd.f32 %v2112, %v2216
      %v2218 = vpop.f32.mrb[0].mxu0
      %2219 = vdwg.mxu0
      %v2220 = vld [vmem:[#allocation2] sm:$0xfc]
      %v2221 = vld [vmem:[#allocation2 + $0x8] sm:$0xfc]
      %v2222 = vld [vmem:[#allocation2 + $0x10] sm:$0x3]
      %v2223 = vld [vmem:[#allocation2 + $0x18] sm:$0x3]
      %v2224 = vld [vmem:[#allocation2 + $0x20] sm:$0xfc]
      %v2225 = vld [vmem:[#allocation2 + $0x28] sm:$0xfc]
      %v2226 = vld [vmem:[#allocation2 + $0x30] sm:$0x3]
      %v2227 = vld [vmem:[#allocation2 + $0x38] sm:$0x3]
      %v2228 = vld [vmem:[#allocation2 + $0x40] sm:$0xfc]
      %v2229 = vld [vmem:[#allocation2 + $0x48] sm:$0xfc]
      %v2230 = vld [vmem:[#allocation2 + $0x50] sm:$0x3]
      %v2231 = vld [vmem:[#allocation2 + $0x58] sm:$0x3]
      %v2232 = vld [vmem:[#allocation2 + $0x60] sm:$0xfc]
      %v2233 = vld [vmem:[#allocation2 + $0x68] sm:$0xfc]
      %v2234 = vld [vmem:[#allocation2 + $0x70] sm:$0x3]
      %v2235 = vld [vmem:[#allocation2 + $0x78] sm:$0x3]
      %v2236 = vld [vmem:[#allocation2 + $0x80] sm:$0xfc]
      %v2237 = vld [vmem:[#allocation2 + $0x88] sm:$0xfc]
      %v2238 = vld [vmem:[#allocation2 + $0x90] sm:$0x3]
      %v2239 = vld [vmem:[#allocation2 + $0x98] sm:$0x3]
      %v2240 = vld [vmem:[#allocation2 + $0xa0] sm:$0xfc]
      %v2241 = vld [vmem:[#allocation2 + $0xa8] sm:$0xfc]
      %v2242 = vld [vmem:[#allocation2 + $0xb0] sm:$0x3]
      %v2243 = vld [vmem:[#allocation2 + $0xb8] sm:$0x3]
      %v2244 = vld [vmem:[#allocation2 + $0xc0] sm:$0xfc]
      %v2245 = vld [vmem:[#allocation2 + $0xc8] sm:$0xfc]
      %v2246 = vld [vmem:[#allocation2 + $0xd0] sm:$0x3]
      %v2247 = vld [vmem:[#allocation2 + $0xd8] sm:$0x3]
      %v2248 = vld [vmem:[#allocation2 + $0xe0] sm:$0xfc]
      %v2249 = vld [vmem:[#allocation2 + $0xe8] sm:$0xfc]
      %v2250 = vld [vmem:[#allocation2 + $0xf0] sm:$0x3]
      %v2251 = vld [vmem:[#allocation2 + $0xf8] sm:$0x3]
      %vm2284 = vcmask 1045504
      %v2285 = vrot.slane %v2220, 2
      %v2286 = vrot.slane %v2222, 2
      %v2287 = vsel %vm2284, %v2285, %v2286
      %v2288 = vrot.slane %v2221, 2
      %v2289 = vrot.slane %v2223, 2
      %v2290 = vsel %vm2284, %v2288, %v2289
      %v2291 = vrot.slane %v2224, 2
      %v2292 = vrot.slane %v2226, 2
      %v2293 = vsel %vm2284, %v2291, %v2292
      %v2294 = vrot.slane %v2225, 2
      %v2295 = vrot.slane %v2227, 2
      %v2296 = vsel %vm2284, %v2294, %v2295
      %v2297 = vrot.slane %v2228, 2
      %v2298 = vrot.slane %v2230, 2
      %v2299 = vsel %vm2284, %v2297, %v2298
      %v2300 = vrot.slane %v2229, 2
      %v2301 = vrot.slane %v2231, 2
      %v2302 = vsel %vm2284, %v2300, %v2301
      %v2303 = vrot.slane %v2232, 2
      %v2304 = vrot.slane %v2234, 2
      %v2305 = vsel %vm2284, %v2303, %v2304
      %v2306 = vrot.slane %v2233, 2
      %v2307 = vrot.slane %v2235, 2
      %v2308 = vsel %vm2284, %v2306, %v2307
      %v2309 = vrot.slane %v2236, 2
      %v2310 = vrot.slane %v2238, 2
      %v2311 = vsel %vm2284, %v2309, %v2310
      %v2312 = vrot.slane %v2237, 2
      %v2313 = vrot.slane %v2239, 2
      %v2314 = vsel %vm2284, %v2312, %v2313
      %v2315 = vrot.slane %v2240, 2
      %v2316 = vrot.slane %v2242, 2
      %v2317 = vsel %vm2284, %v2315, %v2316
      %v2318 = vrot.slane %v2241, 2
      %v2319 = vrot.slane %v2243, 2
      %v2320 = vsel %vm2284, %v2318, %v2319
      %v2321 = vrot.slane %v2244, 2
      %v2322 = vrot.slane %v2246, 2
      %v2323 = vsel %vm2284, %v2321, %v2322
      %v2324 = vrot.slane %v2245, 2
      %v2325 = vrot.slane %v2247, 2
      %v2326 = vsel %vm2284, %v2324, %v2325
      %v2327 = vrot.slane %v2248, 2
      %v2328 = vrot.slane %v2250, 2
      %v2329 = vsel %vm2284, %v2327, %v2328
      %v2330 = vrot.slane %v2249, 2
      %v2331 = vrot.slane %v2251, 2
      %v2332 = vsel %vm2284, %v2330, %v2331
      %s2349 = scalar_lea.vmem %s2, 512
      %v2350 = vld [vmem:[%s2349] sm:$0xff]
      %v2351 = vld [vmem:[%s2349 + $0x8] sm:$0xff]
      %v2352 = vld [vmem:[%s2349 + $0x10] sm:$0xff]
      %v2353 = vld [vmem:[%s2349 + $0x18] sm:$0xff]
      %v2354 = vld [vmem:[%s2349 + $0x20] sm:$0xff]
      %v2355 = vld [vmem:[%s2349 + $0x28] sm:$0xff]
      %v2356 = vld [vmem:[%s2349 + $0x30] sm:$0xff]
      %v2357 = vld [vmem:[%s2349 + $0x38] sm:$0xff]
      %v2358 = vld [vmem:[%s2349 + $0x40] sm:$0xff]
      %v2359 = vld [vmem:[%s2349 + $0x48] sm:$0xff]
      %v2360 = vld [vmem:[%s2349 + $0x50] sm:$0xff]
      %v2361 = vld [vmem:[%s2349 + $0x58] sm:$0xff]
      %v2362 = vld [vmem:[%s2349 + $0x60] sm:$0xff]
      %v2363 = vld [vmem:[%s2349 + $0x68] sm:$0xff]
      %v2364 = vld [vmem:[%s2349 + $0x70] sm:$0xff]
      %v2365 = vld [vmem:[%s2349 + $0x78] sm:$0xff]
      %v2366 = vld [vmem:[%s2349 + $0x80] sm:$0xff]
      %v2367 = vld [vmem:[%s2349 + $0x88] sm:$0xff]
      %v2368 = vld [vmem:[%s2349 + $0x90] sm:$0xff]
      %v2369 = vld [vmem:[%s2349 + $0x98] sm:$0xff]
      %v2370 = vld [vmem:[%s2349 + $0xa0] sm:$0xff]
      %v2371 = vld [vmem:[%s2349 + $0xa8] sm:$0xff]
      %v2372 = vld [vmem:[%s2349 + $0xb0] sm:$0xff]
      %v2373 = vld [vmem:[%s2349 + $0xb8] sm:$0xff]
      %v2374 = vld [vmem:[%s2349 + $0xc0] sm:$0xff]
      %v2375 = vld [vmem:[%s2349 + $0xc8] sm:$0xff]
      %v2376 = vld [vmem:[%s2349 + $0xd0] sm:$0xff]
      %v2377 = vld [vmem:[%s2349 + $0xd8] sm:$0xff]
      %v2378 = vld [vmem:[%s2349 + $0xe0] sm:$0xff]
      %v2379 = vld [vmem:[%s2349 + $0xe8] sm:$0xff]
      %v2380 = vld [vmem:[%s2349 + $0xf0] sm:$0xff]
      %v2381 = vld [vmem:[%s2349 + $0xf8] sm:$0xff]
      %2382 = vmatprep.subr.mxu0 0.0
      %2383 = vmatpush1.msra.mxu0 %v2350
      %2384 = vmatprep.subr.mxu0 0.0
      %2385 = vmatpush1.msra.mxu0 %v2351
      %2386 = vmatprep.subr.mxu0 0.0
      %2387 = vmatpush1.msra.mxu0 %v2352
      %2388 = vmatprep.subr.mxu0 0.0
      %2389 = vmatpush1.msra.mxu0 %v2353
      %2390 = vmatprep.subr.mxu0 0.0
      %2391 = vmatpush1.msra.mxu0 %v2354
      %2392 = vmatprep.subr.mxu0 0.0
      %2393 = vmatpush1.msra.mxu0 %v2355
      %2394 = vmatprep.subr.mxu0 0.0
      %2395 = vmatpush1.msra.mxu0 %v2356
      %2396 = vmatprep.subr.mxu0 0.0
      %2397 = vmatpush1.msra.mxu0 %v2357
      %2398 = vmatprep.subr.mxu0 0.0
      %2399 = vmatpush1.msra.mxu0 %v2358
      %2400 = vmatprep.subr.mxu0 0.0
      %2401 = vmatpush1.msra.mxu0 %v2359
      %2402 = vmatprep.subr.mxu0 0.0
      %2403 = vmatpush1.msra.mxu0 %v2360
      %2404 = vmatprep.subr.mxu0 0.0
      %2405 = vmatpush1.msra.mxu0 %v2361
      %2406 = vmatprep.subr.mxu0 0.0
      %2407 = vmatpush1.msra.mxu0 %v2362
      %2408 = vmatprep.subr.mxu0 0.0
      %2409 = vmatpush1.msra.mxu0 %v2363
      %2410 = vmatprep.subr.mxu0 0.0
      %2411 = vmatpush1.msra.mxu0 %v2364
      %2412 = vmatprep.subr.mxu0 0.0
      %2413 = vmatpush1.msra.mxu0 %v2365
      %2414 = vmatprep.subr.mxu0 0.0
      %2415 = vmatpush1.msra.mxu0 %v2366
      %2416 = vmatprep.subr.mxu0 0.0
      %2417 = vmatpush1.msra.mxu0 %v2367
      %2418 = vmatprep.subr.mxu0 0.0
      %2419 = vmatpush1.msra.mxu0 %v2368
      %2420 = vmatprep.subr.mxu0 0.0
      %2421 = vmatpush1.msra.mxu0 %v2369
      %2422 = vmatprep.subr.mxu0 0.0
      %2423 = vmatpush1.msra.mxu0 %v2370
      %2424 = vmatprep.subr.mxu0 0.0
      %2425 = vmatpush1.msra.mxu0 %v2371
      %2426 = vmatprep.subr.mxu0 0.0
      %2427 = vmatpush1.msra.mxu0 %v2372
      %2428 = vmatprep.subr.mxu0 0.0
      %2429 = vmatpush1.msra.mxu0 %v2373
      %2430 = vmatprep.subr.mxu0 0.0
      %2431 = vmatpush1.msra.mxu0 %v2374
      %2432 = vmatprep.subr.mxu0 0.0
      %2433 = vmatpush1.msra.mxu0 %v2375
      %2434 = vmatprep.subr.mxu0 0.0
      %2435 = vmatpush1.msra.mxu0 %v2376
      %2436 = vmatprep.subr.mxu0 0.0
      %2437 = vmatpush1.msra.mxu0 %v2377
      %2438 = vmatprep.subr.mxu0 0.0
      %2439 = vmatpush1.msra.mxu0 %v2378
      %2440 = vmatprep.subr.mxu0 0.0
      %2441 = vmatpush1.msra.mxu0 %v2379
      %2442 = vmatprep.subr.mxu0 0.0
      %2443 = vmatpush1.msra.mxu0 %v2380
      %2444 = vmatprep.subr.mxu0 0.0
      %2445 = vmatpush1.msra.mxu0 %v2381
      %2446 = vmatprep.mubr.f32.mxu0 %v2290
      %2447 = vmatmul.mubr.f32.gmra.mrb[0].mxu0 %v2287
      %v2448 = vpop.f32.mrb[0].mxu0
      %v2449 = vadd.f32 0.0, %v2448
      %v2450 = vpop.f32.mrb[0].mxu0
      %2451 = vmatprep.mubr.f32.mxu0 %v2296
      %2452 = vmatmul.mubr.f32.gmra.mrb[0].mxu0 %v2293
      %v2453 = vpop.f32.mrb[0].mxu0
      %v2454 = vadd.f32 0.0, %v2453
      %v2455 = vpop.f32.mrb[0].mxu0
      %2456 = vmatprep.mubr.f32.mxu0 %v2302
      %2457 = vmatmul.mubr.f32.gmra.mrb[0].mxu0 %v2299
      %v2458 = vpop.f32.mrb[0].mxu0
      %v2459 = vadd.f32 0.0, %v2458
      %v2460 = vpop.f32.mrb[0].mxu0
      %2461 = vmatprep.mubr.f32.mxu0 %v2308
      %2462 = vmatmul.mubr.f32.gmra.mrb[0].mxu0 %v2305
      %v2463 = vpop.f32.mrb[0].mxu0
      %v2464 = vadd.f32 0.0, %v2463
      %v2465 = vpop.f32.mrb[0].mxu0
      %2466 = vmatprep.mubr.f32.mxu0 %v2314
      %2467 = vmatmul.mubr.f32.gmra.mrb[0].mxu0 %v2311
      %v2468 = vpop.f32.mrb[0].mxu0
      %v2469 = vadd.f32 0.0, %v2468
      %v2470 = vpop.f32.mrb[0].mxu0
      %2471 = vmatprep.mubr.f32.mxu0 %v2320
      %2472 = vmatmul.mubr.f32.gmra.mrb[0].mxu0 %v2317
      %v2473 = vpop.f32.mrb[0].mxu0
      %v2474 = vadd.f32 0.0, %v2473
      %v2475 = vpop.f32.mrb[0].mxu0
      %2476 = vmatprep.mubr.f32.mxu0 %v2326
      %2477 = vmatmul.mubr.f32.gmra.mrb[0].mxu0 %v2323
      %v2478 = vpop.f32.mrb[0].mxu0
      %v2479 = vadd.f32 0.0, %v2478
      %v2480 = vpop.f32.mrb[0].mxu0
      %2481 = vmatprep.mubr.f32.mxu0 %v2332
      %2482 = vmatmul.mubr.f32.gmra.mrb[0].mxu0 %v2329
      %v2483 = vpop.f32.mrb[0].mxu0
      %v2484 = vadd.f32 0.0, %v2483
      %v2485 = vpop.f32.mrb[0].mxu0
      %2486 = vdwg.mxu0
      %v2487 = vadd.f32 %v2182, %v2449
      %v2488 = vadd.f32 %v2187, %v2454
      %v2489 = vadd.f32 %v2192, %v2459
      %v2490 = vadd.f32 %v2197, %v2464
      %v2491 = vadd.f32 %v2202, %v2469
      %v2492 = vadd.f32 %v2207, %v2474
      %v2493 = vadd.f32 %v2212, %v2479
      %v2494 = vadd.f32 %v2217, %v2484
      %v2495 = vld [vmem:[%s1767] sm:$0xff]
      %v2496 = vld [vmem:[%s1767 + $0x8] sm:$0xff]
      %v2497 = vld [vmem:[%s1767 + $0x20] sm:$0xff]
      %v2498 = vld [vmem:[%s1767 + $0x28] sm:$0xff]
      %v2499 = vld [vmem:[%s1767 + $0x40] sm:$0xff]
      %v2500 = vld [vmem:[%s1767 + $0x48] sm:$0xff]
      %v2501 = vld [vmem:[%s1767 + $0x60] sm:$0xff]
      %v2502 = vld [vmem:[%s1767 + $0x68] sm:$0xff]
      %v2503 = vld [vmem:[%s1767 + $0x80] sm:$0xff]
      %v2504 = vld [vmem:[%s1767 + $0x88] sm:$0xff]
      %v2505 = vld [vmem:[%s1767 + $0xa0] sm:$0xff]
      %v2506 = vld [vmem:[%s1767 + $0xa8] sm:$0xff]
      %v2507 = vld [vmem:[%s1767 + $0xc0] sm:$0xff]
      %v2508 = vld [vmem:[%s1767 + $0xc8] sm:$0xff]
      %v2509 = vld [vmem:[%s1767 + $0xe0] sm:$0xff]
      %v2510 = vld [vmem:[%s1767 + $0xe8] sm:$0xff]
      %s2511 = scalar_lea.vmem %s2, 768
      %v2512 = vld [vmem:[%s2511] sm:$0xff]
      %v2513 = vld [vmem:[%s2511 + $0x8] sm:$0xff]
      %v2514 = vld [vmem:[%s2511 + $0x10] sm:$0xff]
      %v2515 = vld [vmem:[%s2511 + $0x18] sm:$0xff]
      %v2516 = vld [vmem:[%s2511 + $0x20] sm:$0xff]
      %v2517 = vld [vmem:[%s2511 + $0x28] sm:$0xff]
      %v2518 = vld [vmem:[%s2511 + $0x30] sm:$0xff]
      %v2519 = vld [vmem:[%s2511 + $0x38] sm:$0xff]
      %v2520 = vld [vmem:[%s2511 + $0x40] sm:$0xff]
      %v2521 = vld [vmem:[%s2511 + $0x48] sm:$0xff]
      %v2522 = vld [vmem:[%s2511 + $0x50] sm:$0xff]
      %v2523 = vld [vmem:[%s2511 + $0x58] sm:$0xff]
      %v2524 = vld [vmem:[%s2511 + $0x60] sm:$0xff]
      %v2525 = vld [vmem:[%s2511 + $0x68] sm:$0xff]
      %v2526 = vld [vmem:[%s2511 + $0x70] sm:$0xff]
      %v2527 = vld [vmem:[%s2511 + $0x78] sm:$0xff]
      %v2528 = vld [vmem:[%s2511 + $0x80] sm:$0xff]
      %v2529 = vld [vmem:[%s2511 + $0x88] sm:$0xff]
      %v2530 = vld [vmem:[%s2511 + $0x90] sm:$0xff]
      %v2531 = vld [vmem:[%s2511 + $0x98] sm:$0xff]
      %v2532 = vld [vmem:[%s2511 + $0xa0] sm:$0xff]
      %v2533 = vld [vmem:[%s2511 + $0xa8] sm:$0xff]
      %v2534 = vld [vmem:[%s2511 + $0xb0] sm:$0xff]
      %v2535 = vld [vmem:[%s2511 + $0xb8] sm:$0xff]
      %v2536 = vld [vmem:[%s2511 + $0xc0] sm:$0xff]
      %v2537 = vld [vmem:[%s2511 + $0xc8] sm:$0xff]
      %v2538 = vld [vmem:[%s2511 + $0xd0] sm:$0xff]
      %v2539 = vld [vmem:[%s2511 + $0xd8] sm:$0xff]
      %v2540 = vld [vmem:[%s2511 + $0xe0] sm:$0xff]
      %v2541 = vld [vmem:[%s2511 + $0xe8] sm:$0xff]
      %v2542 = vld [vmem:[%s2511 + $0xf0] sm:$0xff]
      %v2543 = vld [vmem:[%s2511 + $0xf8] sm:$0xff]
      %2544 = vmatprep.subr.mxu0 0.0
      %2545 = vmatpush1.msra.mxu0 %v2512
      %2546 = vmatprep.subr.mxu0 0.0
      %2547 = vmatpush1.msra.mxu0 %v2513
      %2548 = vmatprep.subr.mxu0 0.0
      %2549 = vmatpush1.msra.mxu0 %v2514
      %2550 = vmatprep.subr.mxu0 0.0
      %2551 = vmatpush1.msra.mxu0 %v2515
      %2552 = vmatprep.subr.mxu0 0.0
      %2553 = vmatpush1.msra.mxu0 %v2516
      %2554 = vmatprep.subr.mxu0 0.0
      %2555 = vmatpush1.msra.mxu0 %v2517
      %2556 = vmatprep.subr.mxu0 0.0
      %2557 = vmatpush1.msra.mxu0 %v2518
      %2558 = vmatprep.subr.mxu0 0.0
      %2559 = vmatpush1.msra.mxu0 %v2519
      %2560 = vmatprep.subr.mxu0 0.0
      %2561 = vmatpush1.msra.mxu0 %v2520
      %2562 = vmatprep.subr.mxu0 0.0
      %2563 = vmatpush1.msra.mxu0 %v2521
      %2564 = vmatprep.subr.mxu0 0.0
      %2565 = vmatpush1.msra.mxu0 %v2522
      %2566 = vmatprep.subr.mxu0 0.0
      %2567 = vmatpush1.msra.mxu0 %v2523
      %2568 = vmatprep.subr.mxu0 0.0
      %2569 = vmatpush1.msra.mxu0 %v2524
      %2570 = vmatprep.subr.mxu0 0.0
      %2571 = vmatpush1.msra.mxu0 %v2525
      %2572 = vmatprep.subr.mxu0 0.0
      %2573 = vmatpush1.msra.mxu0 %v2526
      %2574 = vmatprep.subr.mxu0 0.0
      %2575 = vmatpush1.msra.mxu0 %v2527
      %2576 = vmatprep.subr.mxu0 0.0
      %2577 = vmatpush1.msra.mxu0 %v2528
      %2578 = vmatprep.subr.mxu0 0.0
      %2579 = vmatpush1.msra.mxu0 %v2529
      %2580 = vmatprep.subr.mxu0 0.0
      %2581 = vmatpush1.msra.mxu0 %v2530
      %2582 = vmatprep.subr.mxu0 0.0
      %2583 = vmatpush1.msra.mxu0 %v2531
      %2584 = vmatprep.subr.mxu0 0.0
      %2585 = vmatpush1.msra.mxu0 %v2532
      %2586 = vmatprep.subr.mxu0 0.0
      %2587 = vmatpush1.msra.mxu0 %v2533
      %2588 = vmatprep.subr.mxu0 0.0
      %2589 = vmatpush1.msra.mxu0 %v2534
      %2590 = vmatprep.subr.mxu0 0.0
      %2591 = vmatpush1.msra.mxu0 %v2535
      %2592 = vmatprep.subr.mxu0 0.0
      %2593 = vmatpush1.msra.mxu0 %v2536
      %2594 = vmatprep.subr.mxu0 0.0
      %2595 = vmatpush1.msra.mxu0 %v2537
      %2596 = vmatprep.subr.mxu0 0.0
      %2597 = vmatpush1.msra.mxu0 %v2538
      %2598 = vmatprep.subr.mxu0 0.0
      %2599 = vmatpush1.msra.mxu0 %v2539
      %2600 = vmatprep.subr.mxu0 0.0
      %2601 = vmatpush1.msra.mxu0 %v2540
      %2602 = vmatprep.subr.mxu0 0.0
      %2603 = vmatpush1.msra.mxu0 %v2541
      %2604 = vmatprep.subr.mxu0 0.0
      %2605 = vmatpush1.msra.mxu0 %v2542
      %2606 = vmatprep.subr.mxu0 0.0
      %2607 = vmatpush1.msra.mxu0 %v2543
      %2608 = vmatprep.mubr.f32.mxu0 %v2496
      %2609 = vmatmul.mubr.f32.gmra.mrb[0].mxu0 %v2495
      %v2610 = vpop.f32.mrb[0].mxu0
      %v2611 = vadd.f32 0.0, %v2610
      %v2612 = vpop.f32.mrb[0].mxu0
      %2613 = vmatprep.mubr.f32.mxu0 %v2498
      %2614 = vmatmul.mubr.f32.gmra.mrb[0].mxu0 %v2497
      %v2615 = vpop.f32.mrb[0].mxu0
      %v2616 = vadd.f32 0.0, %v2615
      %v2617 = vpop.f32.mrb[0].mxu0
      %2618 = vmatprep.mubr.f32.mxu0 %v2500
      %2619 = vmatmul.mubr.f32.gmra.mrb[0].mxu0 %v2499
      %v2620 = vpop.f32.mrb[0].mxu0
      %v2621 = vadd.f32 0.0, %v2620
      %v2622 = vpop.f32.mrb[0].mxu0
      %2623 = vmatprep.mubr.f32.mxu0 %v2502
      %2624 = vmatmul.mubr.f32.gmra.mrb[0].mxu0 %v2501
      %v2625 = vpop.f32.mrb[0].mxu0
      %v2626 = vadd.f32 0.0, %v2625
      %v2627 = vpop.f32.mrb[0].mxu0
      %2628 = vmatprep.mubr.f32.mxu0 %v2504
      %2629 = vmatmul.mubr.f32.gmra.mrb[0].mxu0 %v2503
      %v2630 = vpop.f32.mrb[0].mxu0
      %v2631 = vadd.f32 0.0, %v2630
      %v2632 = vpop.f32.mrb[0].mxu0
      %2633 = vmatprep.mubr.f32.mxu0 %v2506
      %2634 = vmatmul.mubr.f32.gmra.mrb[0].mxu0 %v2505
      %v2635 = vpop.f32.mrb[0].mxu0
      %v2636 = vadd.f32 0.0, %v2635
      %v2637 = vpop.f32.mrb[0].mxu0
      %2638 = vmatprep.mubr.f32.mxu0 %v2508
      %2639 = vmatmul.mubr.f32.gmra.mrb[0].mxu0 %v2507
      %v2640 = vpop.f32.mrb[0].mxu0
      %v2641 = vadd.f32 0.0, %v2640
      %v2642 = vpop.f32.mrb[0].mxu0
      %2643 = vmatprep.mubr.f32.mxu0 %v2510
      %2644 = vmatmul.mubr.f32.gmra.mrb[0].mxu0 %v2509
      %v2645 = vpop.f32.mrb[0].mxu0
      %v2646 = vadd.f32 0.0, %v2645
      %v2647 = vpop.f32.mrb[0].mxu0
      %2648 = vdwg.mxu0
      %v2649 = vadd.f32 %v2487, %v2611
      %v2650 = vadd.f32 %v2488, %v2616
      %v2651 = vadd.f32 %v2489, %v2621
      %v2652 = vadd.f32 %v2490, %v2626
      %v2653 = vadd.f32 %v2491, %v2631
      %v2654 = vadd.f32 %v2492, %v2636
      %v2655 = vadd.f32 %v2493, %v2641
      %v2656 = vadd.f32 %v2494, %v2646
      %v2657 = vld [vmem:[%s1767] sm:$0xfe]
      %v2658 = vld [vmem:[%s1767 + $0x8] sm:$0xfe]
      %v2659 = vld [vmem:[%s1767 + $0x10] sm:$0x1]
      %v2660 = vld [vmem:[%s1767 + $0x18] sm:$0x1]
      %v2661 = vld [vmem:[%s1767 + $0x20] sm:$0xfe]
      %v2662 = vld [vmem:[%s1767 + $0x28] sm:$0xfe]
      %v2663 = vld [vmem:[%s1767 + $0x30] sm:$0x1]
      %v2664 = vld [vmem:[%s1767 + $0x38] sm:$0x1]
      %v2665 = vld [vmem:[%s1767 + $0x40] sm:$0xfe]
      %v2666 = vld [vmem:[%s1767 + $0x48] sm:$0xfe]
      %v2667 = vld [vmem:[%s1767 + $0x50] sm:$0x1]
      %v2668 = vld [vmem:[%s1767 + $0x58] sm:$0x1]
      %v2669 = vld [vmem:[%s1767 + $0x60] sm:$0xfe]
      %v2670 = vld [vmem:[%s1767 + $0x68] sm:$0xfe]
      %v2671 = vld [vmem:[%s1767 + $0x70] sm:$0x1]
      %v2672 = vld [vmem:[%s1767 + $0x78] sm:$0x1]
      %v2673 = vld [vmem:[%s1767 + $0x80] sm:$0xfe]
      %v2674 = vld [vmem:[%s1767 + $0x88] sm:$0xfe]
      %v2675 = vld [vmem:[%s1767 + $0x90] sm:$0x1]
      %v2676 = vld [vmem:[%s1767 + $0x98] sm:$0x1]
      %v2677 = vld [vmem:[%s1767 + $0xa0] sm:$0xfe]
      %v2678 = vld [vmem:[%s1767 + $0xa8] sm:$0xfe]
      %v2679 = vld [vmem:[%s1767 + $0xb0] sm:$0x1]
      %v2680 = vld [vmem:[%s1767 + $0xb8] sm:$0x1]
      %v2681 = vld [vmem:[%s1767 + $0xc0] sm:$0xfe]
      %v2682 = vld [vmem:[%s1767 + $0xc8] sm:$0xfe]
      %v2683 = vld [vmem:[%s1767 + $0xd0] sm:$0x1]
      %v2684 = vld [vmem:[%s1767 + $0xd8] sm:$0x1]
      %v2685 = vld [vmem:[%s1767 + $0xe0] sm:$0xfe]
      %v2686 = vld [vmem:[%s1767 + $0xe8] sm:$0xfe]
      %v2687 = vld [vmem:[%s1767 + $0xf0] sm:$0x1]
      %v2688 = vld [vmem:[%s1767 + $0xf8] sm:$0x1]
      %v2721 = vrot.slane %v2657, 1
      %v2722 = vrot.slane %v2659, 1
      %v2723 = vsel %vm1912, %v2721, %v2722
      %v2724 = vrot.slane %v2658, 1
      %v2725 = vrot.slane %v2660, 1
      %v2726 = vsel %vm1912, %v2724, %v2725
      %v2727 = vrot.slane %v2661, 1
      %v2728 = vrot.slane %v2663, 1
      %v2729 = vsel %vm1912, %v2727, %v2728
      %v2730 = vrot.slane %v2662, 1
      %v2731 = vrot.slane %v2664, 1
      %v2732 = vsel %vm1912, %v2730, %v2731
      %v2733 = vrot.slane %v2665, 1
      %v2734 = vrot.slane %v2667, 1
      %v2735 = vsel %vm1912, %v2733, %v2734
      %v2736 = vrot.slane %v2666, 1
      %v2737 = vrot.slane %v2668, 1
      %v2738 = vsel %vm1912, %v2736, %v2737
      %v2739 = vrot.slane %v2669, 1
      %v2740 = vrot.slane %v2671, 1
      %v2741 = vsel %vm1912, %v2739, %v2740
      %v2742 = vrot.slane %v2670, 1
      %v2743 = vrot.slane %v2672, 1
      %v2744 = vsel %vm1912, %v2742, %v2743
      %v2745 = vrot.slane %v2673, 1
      %v2746 = vrot.slane %v2675, 1
      %v2747 = vsel %vm1912, %v2745, %v2746
      %v2748 = vrot.slane %v2674, 1
      %v2749 = vrot.slane %v2676, 1
      %v2750 = vsel %vm1912, %v2748, %v2749
      %v2751 = vrot.slane %v2677, 1
      %v2752 = vrot.slane %v2679, 1
      %v2753 = vsel %vm1912, %v2751, %v2752
      %v2754 = vrot.slane %v2678, 1
      %v2755 = vrot.slane %v2680, 1
      %v2756 = vsel %vm1912, %v2754, %v2755
      %v2757 = vrot.slane %v2681, 1
      %v2758 = vrot.slane %v2683, 1
      %v2759 = vsel %vm1912, %v2757, %v2758
      %v2760 = vrot.slane %v2682, 1
      %v2761 = vrot.slane %v2684, 1
      %v2762 = vsel %vm1912, %v2760, %v2761
      %v2763 = vrot.slane %v2685, 1
      %v2764 = vrot.slane %v2687, 1
      %v2765 = vsel %vm1912, %v2763, %v2764
      %v2766 = vrot.slane %v2686, 1
      %v2767 = vrot.slane %v2688, 1
      %v2768 = vsel %vm1912, %v2766, %v2767
      %s2785 = scalar_lea.vmem %s2, 1024
      %v2786 = vld [vmem:[%s2785] sm:$0xff]
      %v2787 = vld [vmem:[%s2785 + $0x8] sm:$0xff]
      %v2788 = vld [vmem:[%s2785 + $0x10] sm:$0xff]
      %v2789 = vld [vmem:[%s2785 + $0x18] sm:$0xff]
      %v2790 = vld [vmem:[%s2785 + $0x20] sm:$0xff]
      %v2791 = vld [vmem:[%s2785 + $0x28] sm:$0xff]
      %v2792 = vld [vmem:[%s2785 + $0x30] sm:$0xff]
      %v2793 = vld [vmem:[%s2785 + $0x38] sm:$0xff]
      %v2794 = vld [vmem:[%s2785 + $0x40] sm:$0xff]
      %v2795 = vld [vmem:[%s2785 + $0x48] sm:$0xff]
      %v2796 = vld [vmem:[%s2785 + $0x50] sm:$0xff]
      %v2797 = vld [vmem:[%s2785 + $0x58] sm:$0xff]
      %v2798 = vld [vmem:[%s2785 + $0x60] sm:$0xff]
      %v2799 = vld [vmem:[%s2785 + $0x68] sm:$0xff]
      %v2800 = vld [vmem:[%s2785 + $0x70] sm:$0xff]
      %v2801 = vld [vmem:[%s2785 + $0x78] sm:$0xff]
      %v2802 = vld [vmem:[%s2785 + $0x80] sm:$0xff]
      %v2803 = vld [vmem:[%s2785 + $0x88] sm:$0xff]
      %v2804 = vld [vmem:[%s2785 + $0x90] sm:$0xff]
      %v2805 = vld [vmem:[%s2785 + $0x98] sm:$0xff]
      %v2806 = vld [vmem:[%s2785 + $0xa0] sm:$0xff]
      %v2807 = vld [vmem:[%s2785 + $0xa8] sm:$0xff]
      %v2808 = vld [vmem:[%s2785 + $0xb0] sm:$0xff]
      %v2809 = vld [vmem:[%s2785 + $0xb8] sm:$0xff]
      %v2810 = vld [vmem:[%s2785 + $0xc0] sm:$0xff]
      %v2811 = vld [vmem:[%s2785 + $0xc8] sm:$0xff]
      %v2812 = vld [vmem:[%s2785 + $0xd0] sm:$0xff]
      %v2813 = vld [vmem:[%s2785 + $0xd8] sm:$0xff]
      %v2814 = vld [vmem:[%s2785 + $0xe0] sm:$0xff]
      %v2815 = vld [vmem:[%s2785 + $0xe8] sm:$0xff]
      %v2816 = vld [vmem:[%s2785 + $0xf0] sm:$0xff]
      %v2817 = vld [vmem:[%s2785 + $0xf8] sm:$0xff]
      %2818 = vmatprep.subr.mxu0 0.0
      %2819 = vmatpush1.msra.mxu0 %v2786
      %2820 = vmatprep.subr.mxu0 0.0
      %2821 = vmatpush1.msra.mxu0 %v2787
      %2822 = vmatprep.subr.mxu0 0.0
      %2823 = vmatpush1.msra.mxu0 %v2788
      %2824 = vmatprep.subr.mxu0 0.0
      %2825 = vmatpush1.msra.mxu0 %v2789
      %2826 = vmatprep.subr.mxu0 0.0
      %2827 = vmatpush1.msra.mxu0 %v2790
      %2828 = vmatprep.subr.mxu0 0.0
      %2829 = vmatpush1.msra.mxu0 %v2791
      %2830 = vmatprep.subr.mxu0 0.0
      %2831 = vmatpush1.msra.mxu0 %v2792
      %2832 = vmatprep.subr.mxu0 0.0
      %2833 = vmatpush1.msra.mxu0 %v2793
      %2834 = vmatprep.subr.mxu0 0.0
      %2835 = vmatpush1.msra.mxu0 %v2794
      %2836 = vmatprep.subr.mxu0 0.0
      %2837 = vmatpush1.msra.mxu0 %v2795
      %2838 = vmatprep.subr.mxu0 0.0
      %2839 = vmatpush1.msra.mxu0 %v2796
      %2840 = vmatprep.subr.mxu0 0.0
      %2841 = vmatpush1.msra.mxu0 %v2797
      %2842 = vmatprep.subr.mxu0 0.0
      %2843 = vmatpush1.msra.mxu0 %v2798
      %2844 = vmatprep.subr.mxu0 0.0
      %2845 = vmatpush1.msra.mxu0 %v2799
      %2846 = vmatprep.subr.mxu0 0.0
      %2847 = vmatpush1.msra.mxu0 %v2800
      %2848 = vmatprep.subr.mxu0 0.0
      %2849 = vmatpush1.msra.mxu0 %v2801
      %2850 = vmatprep.subr.mxu0 0.0
      %2851 = vmatpush1.msra.mxu0 %v2802
      %2852 = vmatprep.subr.mxu0 0.0
      %2853 = vmatpush1.msra.mxu0 %v2803
      %2854 = vmatprep.subr.mxu0 0.0
      %2855 = vmatpush1.msra.mxu0 %v2804
      %2856 = vmatprep.subr.mxu0 0.0
      %2857 = vmatpush1.msra.mxu0 %v2805
      %2858 = vmatprep.subr.mxu0 0.0
      %2859 = vmatpush1.msra.mxu0 %v2806
      %2860 = vmatprep.subr.mxu0 0.0
      %2861 = vmatpush1.msra.mxu0 %v2807
      %2862 = vmatprep.subr.mxu0 0.0
      %2863 = vmatpush1.msra.mxu0 %v2808
      %2864 = vmatprep.subr.mxu0 0.0
      %2865 = vmatpush1.msra.mxu0 %v2809
      %2866 = vmatprep.subr.mxu0 0.0
      %2867 = vmatpush1.msra.mxu0 %v2810
      %2868 = vmatprep.subr.mxu0 0.0
      %2869 = vmatpush1.msra.mxu0 %v2811
      %2870 = vmatprep.subr.mxu0 0.0
      %2871 = vmatpush1.msra.mxu0 %v2812
      %2872 = vmatprep.subr.mxu0 0.0
      %2873 = vmatpush1.msra.mxu0 %v2813
      %2874 = vmatprep.subr.mxu0 0.0
      %2875 = vmatpush1.msra.mxu0 %v2814
      %2876 = vmatprep.subr.mxu0 0.0
      %2877 = vmatpush1.msra.mxu0 %v2815
      %2878 = vmatprep.subr.mxu0 0.0
      %2879 = vmatpush1.msra.mxu0 %v2816
      %2880 = vmatprep.subr.mxu0 0.0
      %2881 = vmatpush1.msra.mxu0 %v2817
      %2882 = vmatprep.mubr.f32.mxu0 %v2726
      %2883 = vmatmul.mubr.f32.gmra.mrb[0].mxu0 %v2723
      %v2884 = vpop.f32.mrb[0].mxu0
      %v2885 = vadd.f32 0.0, %v2884
      %v2886 = vpop.f32.mrb[0].mxu0
      %2887 = vmatprep.mubr.f32.mxu0 %v2732
      %2888 = vmatmul.mubr.f32.gmra.mrb[0].mxu0 %v2729
      %v2889 = vpop.f32.mrb[0].mxu0
      %v2890 = vadd.f32 0.0, %v2889
      %v2891 = vpop.f32.mrb[0].mxu0
      %2892 = vmatprep.mubr.f32.mxu0 %v2738
      %2893 = vmatmul.mubr.f32.gmra.mrb[0].mxu0 %v2735
      %v2894 = vpop.f32.mrb[0].mxu0
      %v2895 = vadd.f32 0.0, %v2894
      %v2896 = vpop.f32.mrb[0].mxu0
      %2897 = vmatprep.mubr.f32.mxu0 %v2744
      %2898 = vmatmul.mubr.f32.gmra.mrb[0].mxu0 %v2741
      %v2899 = vpop.f32.mrb[0].mxu0
      %v2900 = vadd.f32 0.0, %v2899
      %v2901 = vpop.f32.mrb[0].mxu0
      %2902 = vmatprep.mubr.f32.mxu0 %v2750
      %2903 = vmatmul.mubr.f32.gmra.mrb[0].mxu0 %v2747
      %v2904 = vpop.f32.mrb[0].mxu0
      %v2905 = vadd.f32 0.0, %v2904
      %v2906 = vpop.f32.mrb[0].mxu0
      %2907 = vmatprep.mubr.f32.mxu0 %v2756
      %2908 = vmatmul.mubr.f32.gmra.mrb[0].mxu0 %v2753
      %v2909 = vpop.f32.mrb[0].mxu0
      %v2910 = vadd.f32 0.0, %v2909
      %v2911 = vpop.f32.mrb[0].mxu0
      %2912 = vmatprep.mubr.f32.mxu0 %v2762
      %2913 = vmatmul.mubr.f32.gmra.mrb[0].mxu0 %v2759
      %v2914 = vpop.f32.mrb[0].mxu0
      %v2915 = vadd.f32 0.0, %v2914
      %v2916 = vpop.f32.mrb[0].mxu0
      %2917 = vmatprep.mubr.f32.mxu0 %v2768
      %2918 = vmatmul.mubr.f32.gmra.mrb[0].mxu0 %v2765
      %v2919 = vpop.f32.mrb[0].mxu0
      %v2920 = vadd.f32 0.0, %v2919
      %v2921 = vpop.f32.mrb[0].mxu0
      %2922 = vdwg.mxu0
      %v2923 = vadd.f32 %v2649, %v2885
      %v2924 = vadd.f32 %v2650, %v2890
      %v2925 = vadd.f32 %v2651, %v2895
      %v2926 = vadd.f32 %v2652, %v2900
      %v2927 = vadd.f32 %v2653, %v2905
      %v2928 = vadd.f32 %v2654, %v2910
      %v2929 = vadd.f32 %v2655, %v2915
      %v2930 = vadd.f32 %v2656, %v2920
      %v2931 = vld [vmem:[%s1767] sm:$0xfc]
      %v2932 = vld [vmem:[%s1767 + $0x8] sm:$0xfc]
      %v2933 = vld [vmem:[%s1767 + $0x10] sm:$0x3]
      %v2934 = vld [vmem:[%s1767 + $0x18] sm:$0x3]
      %v2935 = vld [vmem:[%s1767 + $0x20] sm:$0xfc]
      %v2936 = vld [vmem:[%s1767 + $0x28] sm:$0xfc]
      %v2937 = vld [vmem:[%s1767 + $0x30] sm:$0x3]
      %v2938 = vld [vmem:[%s1767 + $0x38] sm:$0x3]
      %v2939 = vld [vmem:[%s1767 + $0x40] sm:$0xfc]
      %v2940 = vld [vmem:[%s1767 + $0x48] sm:$0xfc]
      %v2941 = vld [vmem:[%s1767 + $0x50] sm:$0x3]
      %v2942 = vld [vmem:[%s1767 + $0x58] sm:$0x3]
      %v2943 = vld [vmem:[%s1767 + $0x60] sm:$0xfc]
      %v2944 = vld [vmem:[%s1767 + $0x68] sm:$0xfc]
      %v2945 = vld [vmem:[%s1767 + $0x70] sm:$0x3]
      %v2946 = vld [vmem:[%s1767 + $0x78] sm:$0x3]
      %v2947 = vld [vmem:[%s1767 + $0x80] sm:$0xfc]
      %v2948 = vld [vmem:[%s1767 + $0x88] sm:$0xfc]
      %v2949 = vld [vmem:[%s1767 + $0x90] sm:$0x3]
      %v2950 = vld [vmem:[%s1767 + $0x98] sm:$0x3]
      %v2951 = vld [vmem:[%s1767 + $0xa0] sm:$0xfc]
      %v2952 = vld [vmem:[%s1767 + $0xa8] sm:$0xfc]
      %v2953 = vld [vmem:[%s1767 + $0xb0] sm:$0x3]
      %v2954 = vld [vmem:[%s1767 + $0xb8] sm:$0x3]
      %v2955 = vld [vmem:[%s1767 + $0xc0] sm:$0xfc]
      %v2956 = vld [vmem:[%s1767 + $0xc8] sm:$0xfc]
      %v2957 = vld [vmem:[%s1767 + $0xd0] sm:$0x3]
      %v2958 = vld [vmem:[%s1767 + $0xd8] sm:$0x3]
      %v2959 = vld [vmem:[%s1767 + $0xe0] sm:$0xfc]
      %v2960 = vld [vmem:[%s1767 + $0xe8] sm:$0xfc]
      %v2961 = vld [vmem:[%s1767 + $0xf0] sm:$0x3]
      %v2962 = vld [vmem:[%s1767 + $0xf8] sm:$0x3]
      %v2995 = vrot.slane %v2931, 2
      %v2996 = vrot.slane %v2933, 2
      %v2997 = vsel %vm2284, %v2995, %v2996
      %v2998 = vrot.slane %v2932, 2
      %v2999 = vrot.slane %v2934, 2
      %v3000 = vsel %vm2284, %v2998, %v2999
      %v3001 = vrot.slane %v2935, 2
      %v3002 = vrot.slane %v2937, 2
      %v3003 = vsel %vm2284, %v3001, %v3002
      %v3004 = vrot.slane %v2936, 2
      %v3005 = vrot.slane %v2938, 2
      %v3006 = vsel %vm2284, %v3004, %v3005
      %v3007 = vrot.slane %v2939, 2
      %v3008 = vrot.slane %v2941, 2
      %v3009 = vsel %vm2284, %v3007, %v3008
      %v3010 = vrot.slane %v2940, 2
      %v3011 = vrot.slane %v2942, 2
      %v3012 = vsel %vm2284, %v3010, %v3011
      %v3013 = vrot.slane %v2943, 2
      %v3014 = vrot.slane %v2945, 2
      %v3015 = vsel %vm2284, %v3013, %v3014
      %v3016 = vrot.slane %v2944, 2
      %v3017 = vrot.slane %v2946, 2
      %v3018 = vsel %vm2284, %v3016, %v3017
      %v3019 = vrot.slane %v2947, 2
      %v3020 = vrot.slane %v2949, 2
      %v3021 = vsel %vm2284, %v3019, %v3020
      %v3022 = vrot.slane %v2948, 2
      %v3023 = vrot.slane %v2950, 2
      %v3024 = vsel %vm2284, %v3022, %v3023
      %v3025 = vrot.slane %v2951, 2
      %v3026 = vrot.slane %v2953, 2
      %v3027 = vsel %vm2284, %v3025, %v3026
      %v3028 = vrot.slane %v2952, 2
      %v3029 = vrot.slane %v2954, 2
      %v3030 = vsel %vm2284, %v3028, %v3029
      %v3031 = vrot.slane %v2955, 2
      %v3032 = vrot.slane %v2957, 2
      %v3033 = vsel %vm2284, %v3031, %v3032
      %v3034 = vrot.slane %v2956, 2
      %v3035 = vrot.slane %v2958, 2
      %v3036 = vsel %vm2284, %v3034, %v3035
      %v3037 = vrot.slane %v2959, 2
      %v3038 = vrot.slane %v2961, 2
      %v3039 = vsel %vm2284, %v3037, %v3038
      %v3040 = vrot.slane %v2960, 2
      %v3041 = vrot.slane %v2962, 2
      %v3042 = vsel %vm2284, %v3040, %v3041
      %s3059 = scalar_lea.vmem %s2, 1280
      %v3060 = vld [vmem:[%s3059] sm:$0xff]
      %v3061 = vld [vmem:[%s3059 + $0x8] sm:$0xff]
      %v3062 = vld [vmem:[%s3059 + $0x10] sm:$0xff]
      %v3063 = vld [vmem:[%s3059 + $0x18] sm:$0xff]
      %v3064 = vld [vmem:[%s3059 + $0x20] sm:$0xff]
      %v3065 = vld [vmem:[%s3059 + $0x28] sm:$0xff]
      %v3066 = vld [vmem:[%s3059 + $0x30] sm:$0xff]
      %v3067 = vld [vmem:[%s3059 + $0x38] sm:$0xff]
      %v3068 = vld [vmem:[%s3059 + $0x40] sm:$0xff]
      %v3069 = vld [vmem:[%s3059 + $0x48] sm:$0xff]
      %v3070 = vld [vmem:[%s3059 + $0x50] sm:$0xff]
      %v3071 = vld [vmem:[%s3059 + $0x58] sm:$0xff]
      %v3072 = vld [vmem:[%s3059 + $0x60] sm:$0xff]
      %v3073 = vld [vmem:[%s3059 + $0x68] sm:$0xff]
      %v3074 = vld [vmem:[%s3059 + $0x70] sm:$0xff]
      %v3075 = vld [vmem:[%s3059 + $0x78] sm:$0xff]
      %v3076 = vld [vmem:[%s3059 + $0x80] sm:$0xff]
      %v3077 = vld [vmem:[%s3059 + $0x88] sm:$0xff]
      %v3078 = vld [vmem:[%s3059 + $0x90] sm:$0xff]
      %v3079 = vld [vmem:[%s3059 + $0x98] sm:$0xff]
      %v3080 = vld [vmem:[%s3059 + $0xa0] sm:$0xff]
      %v3081 = vld [vmem:[%s3059 + $0xa8] sm:$0xff]
      %v3082 = vld [vmem:[%s3059 + $0xb0] sm:$0xff]
      %v3083 = vld [vmem:[%s3059 + $0xb8] sm:$0xff]
      %v3084 = vld [vmem:[%s3059 + $0xc0] sm:$0xff]
      %v3085 = vld [vmem:[%s3059 + $0xc8] sm:$0xff]
      %v3086 = vld [vmem:[%s3059 + $0xd0] sm:$0xff]
      %v3087 = vld [vmem:[%s3059 + $0xd8] sm:$0xff]
      %v3088 = vld [vmem:[%s3059 + $0xe0] sm:$0xff]
      %v3089 = vld [vmem:[%s3059 + $0xe8] sm:$0xff]
      %v3090 = vld [vmem:[%s3059 + $0xf0] sm:$0xff]
      %v3091 = vld [vmem:[%s3059 + $0xf8] sm:$0xff]
      %3092 = vmatprep.subr.mxu0 0.0
      %3093 = vmatpush1.msra.mxu0 %v3060
      %3094 = vmatprep.subr.mxu0 0.0
      %3095 = vmatpush1.msra.mxu0 %v3061
      %3096 = vmatprep.subr.mxu0 0.0
      %3097 = vmatpush1.msra.mxu0 %v3062
      %3098 = vmatprep.subr.mxu0 0.0
      %3099 = vmatpush1.msra.mxu0 %v3063
      %3100 = vmatprep.subr.mxu0 0.0
      %3101 = vmatpush1.msra.mxu0 %v3064
      %3102 = vmatprep.subr.mxu0 0.0
      %3103 = vmatpush1.msra.mxu0 %v3065
      %3104 = vmatprep.subr.mxu0 0.0
      %3105 = vmatpush1.msra.mxu0 %v3066
      %3106 = vmatprep.subr.mxu0 0.0
      %3107 = vmatpush1.msra.mxu0 %v3067
      %3108 = vmatprep.subr.mxu0 0.0
      %3109 = vmatpush1.msra.mxu0 %v3068
      %3110 = vmatprep.subr.mxu0 0.0
      %3111 = vmatpush1.msra.mxu0 %v3069
      %3112 = vmatprep.subr.mxu0 0.0
      %3113 = vmatpush1.msra.mxu0 %v3070
      %3114 = vmatprep.subr.mxu0 0.0
      %3115 = vmatpush1.msra.mxu0 %v3071
      %3116 = vmatprep.subr.mxu0 0.0
      %3117 = vmatpush1.msra.mxu0 %v3072
      %3118 = vmatprep.subr.mxu0 0.0
      %3119 = vmatpush1.msra.mxu0 %v3073
      %3120 = vmatprep.subr.mxu0 0.0
      %3121 = vmatpush1.msra.mxu0 %v3074
      %3122 = vmatprep.subr.mxu0 0.0
      %3123 = vmatpush1.msra.mxu0 %v3075
      %3124 = vmatprep.subr.mxu0 0.0
      %3125 = vmatpush1.msra.mxu0 %v3076
      %3126 = vmatprep.subr.mxu0 0.0
      %3127 = vmatpush1.msra.mxu0 %v3077
      %3128 = vmatprep.subr.mxu0 0.0
      %3129 = vmatpush1.msra.mxu0 %v3078
      %3130 = vmatprep.subr.mxu0 0.0
      %3131 = vmatpush1.msra.mxu0 %v3079
      %3132 = vmatprep.subr.mxu0 0.0
      %3133 = vmatpush1.msra.mxu0 %v3080
      %3134 = vmatprep.subr.mxu0 0.0
      %3135 = vmatpush1.msra.mxu0 %v3081
      %3136 = vmatprep.subr.mxu0 0.0
      %3137 = vmatpush1.msra.mxu0 %v3082
      %3138 = vmatprep.subr.mxu0 0.0
      %3139 = vmatpush1.msra.mxu0 %v3083
      %3140 = vmatprep.subr.mxu0 0.0
      %3141 = vmatpush1.msra.mxu0 %v3084
      %3142 = vmatprep.subr.mxu0 0.0
      %3143 = vmatpush1.msra.mxu0 %v3085
      %3144 = vmatprep.subr.mxu0 0.0
      %3145 = vmatpush1.msra.mxu0 %v3086
      %3146 = vmatprep.subr.mxu0 0.0
      %3147 = vmatpush1.msra.mxu0 %v3087
      %3148 = vmatprep.subr.mxu0 0.0
      %3149 = vmatpush1.msra.mxu0 %v3088
      %3150 = vmatprep.subr.mxu0 0.0
      %3151 = vmatpush1.msra.mxu0 %v3089
      %3152 = vmatprep.subr.mxu0 0.0
      %3153 = vmatpush1.msra.mxu0 %v3090
      %3154 = vmatprep.subr.mxu0 0.0
      %3155 = vmatpush1.msra.mxu0 %v3091
      %3156 = vmatprep.mubr.f32.mxu0 %v3000
      %3157 = vmatmul.mubr.f32.gmra.mrb[0].mxu0 %v2997
      %v3158 = vpop.f32.mrb[0].mxu0
      %v3159 = vadd.f32 0.0, %v3158
      %v3160 = vpop.f32.mrb[0].mxu0
      %3161 = vmatprep.mubr.f32.mxu0 %v3006
      %3162 = vmatmul.mubr.f32.gmra.mrb[0].mxu0 %v3003
      %v3163 = vpop.f32.mrb[0].mxu0
      %v3164 = vadd.f32 0.0, %v3163
      %v3165 = vpop.f32.mrb[0].mxu0
      %3166 = vmatprep.mubr.f32.mxu0 %v3012
      %3167 = vmatmul.mubr.f32.gmra.mrb[0].mxu0 %v3009
      %v3168 = vpop.f32.mrb[0].mxu0
      %v3169 = vadd.f32 0.0, %v3168
      %v3170 = vpop.f32.mrb[0].mxu0
      %3171 = vmatprep.mubr.f32.mxu0 %v3018
      %3172 = vmatmul.mubr.f32.gmra.mrb[0].mxu0 %v3015
      %v3173 = vpop.f32.mrb[0].mxu0
      %v3174 = vadd.f32 0.0, %v3173
      %v3175 = vpop.f32.mrb[0].mxu0
      %3176 = vmatprep.mubr.f32.mxu0 %v3024
      %3177 = vmatmul.mubr.f32.gmra.mrb[0].mxu0 %v3021
      %v3178 = vpop.f32.mrb[0].mxu0
      %v3179 = vadd.f32 0.0, %v3178
      %v3180 = vpop.f32.mrb[0].mxu0
      %3181 = vmatprep.mubr.f32.mxu0 %v3030
      %3182 = vmatmul.mubr.f32.gmra.mrb[0].mxu0 %v3027
      %v3183 = vpop.f32.mrb[0].mxu0
      %v3184 = vadd.f32 0.0, %v3183
      %v3185 = vpop.f32.mrb[0].mxu0
      %3186 = vmatprep.mubr.f32.mxu0 %v3036
      %3187 = vmatmul.mubr.f32.gmra.mrb[0].mxu0 %v3033
      %v3188 = vpop.f32.mrb[0].mxu0
      %v3189 = vadd.f32 0.0, %v3188
      %v3190 = vpop.f32.mrb[0].mxu0
      %3191 = vmatprep.mubr.f32.mxu0 %v3042
      %3192 = vmatmul.mubr.f32.gmra.mrb[0].mxu0 %v3039
      %v3193 = vpop.f32.mrb[0].mxu0
      %v3194 = vadd.f32 0.0, %v3193
      %v3195 = vpop.f32.mrb[0].mxu0
      %3196 = vdwg.mxu0
      %v3197 = vadd.f32 %v2923, %v3159
      %v3198 = vadd.f32 %v2924, %v3164
      %v3199 = vadd.f32 %v2925, %v3169
      %v3200 = vadd.f32 %v2926, %v3174
      %v3201 = vadd.f32 %v2927, %v3179
      %v3202 = vadd.f32 %v2928, %v3184
      %v3203 = vadd.f32 %v2929, %v3189
      %v3204 = vadd.f32 %v2930, %v3194
      %s3205 = scalar_lea.vmem [#allocation2], 64
      %v3206 = vld [vmem:[%s3205] sm:$0xff]
      %v3207 = vld [vmem:[%s3205 + $0x8] sm:$0xff]
      %v3208 = vld [vmem:[%s3205 + $0x20] sm:$0xff]
      %v3209 = vld [vmem:[%s3205 + $0x28] sm:$0xff]
      %v3210 = vld [vmem:[%s3205 + $0x40] sm:$0xff]
      %v3211 = vld [vmem:[%s3205 + $0x48] sm:$0xff]
      %v3212 = vld [vmem:[%s3205 + $0x60] sm:$0xff]
      %v3213 = vld [vmem:[%s3205 + $0x68] sm:$0xff]
      %v3214 = vld [vmem:[%s3205 + $0x80] sm:$0xff]
      %v3215 = vld [vmem:[%s3205 + $0x88] sm:$0xff]
      %v3216 = vld [vmem:[%s3205 + $0xa0] sm:$0xff]
      %v3217 = vld [vmem:[%s3205 + $0xa8] sm:$0xff]
      %v3218 = vld [vmem:[%s3205 + $0xc0] sm:$0xff]
      %v3219 = vld [vmem:[%s3205 + $0xc8] sm:$0xff]
      %v3220 = vld [vmem:[%s3205 + $0xe0] sm:$0xff]
      %v3221 = vld [vmem:[%s3205 + $0xe8] sm:$0xff]
      %s3222 = scalar_lea.vmem %s2, 1536
      %v3223 = vld [vmem:[%s3222] sm:$0xff]
      %v3224 = vld [vmem:[%s3222 + $0x8] sm:$0xff]
      %v3225 = vld [vmem:[%s3222 + $0x10] sm:$0xff]
      %v3226 = vld [vmem:[%s3222 + $0x18] sm:$0xff]
      %v3227 = vld [vmem:[%s3222 + $0x20] sm:$0xff]
      %v3228 = vld [vmem:[%s3222 + $0x28] sm:$0xff]
      %v3229 = vld [vmem:[%s3222 + $0x30] sm:$0xff]
      %v3230 = vld [vmem:[%s3222 + $0x38] sm:$0xff]
      %v3231 = vld [vmem:[%s3222 + $0x40] sm:$0xff]
      %v3232 = vld [vmem:[%s3222 + $0x48] sm:$0xff]
      %v3233 = vld [vmem:[%s3222 + $0x50] sm:$0xff]
      %v3234 = vld [vmem:[%s3222 + $0x58] sm:$0xff]
      %v3235 = vld [vmem:[%s3222 + $0x60] sm:$0xff]
      %v3236 = vld [vmem:[%s3222 + $0x68] sm:$0xff]
      %v3237 = vld [vmem:[%s3222 + $0x70] sm:$0xff]
      %v3238 = vld [vmem:[%s3222 + $0x78] sm:$0xff]
      %v3239 = vld [vmem:[%s3222 + $0x80] sm:$0xff]
      %v3240 = vld [vmem:[%s3222 + $0x88] sm:$0xff]
      %v3241 = vld [vmem:[%s3222 + $0x90] sm:$0xff]
      %v3242 = vld [vmem:[%s3222 + $0x98] sm:$0xff]
      %v3243 = vld [vmem:[%s3222 + $0xa0] sm:$0xff]
      %v3244 = vld [vmem:[%s3222 + $0xa8] sm:$0xff]
      %v3245 = vld [vmem:[%s3222 + $0xb0] sm:$0xff]
      %v3246 = vld [vmem:[%s3222 + $0xb8] sm:$0xff]
      %v3247 = vld [vmem:[%s3222 + $0xc0] sm:$0xff]
      %v3248 = vld [vmem:[%s3222 + $0xc8] sm:$0xff]
      %v3249 = vld [vmem:[%s3222 + $0xd0] sm:$0xff]
      %v3250 = vld [vmem:[%s3222 + $0xd8] sm:$0xff]
      %v3251 = vld [vmem:[%s3222 + $0xe0] sm:$0xff]
      %v3252 = vld [vmem:[%s3222 + $0xe8] sm:$0xff]
      %v3253 = vld [vmem:[%s3222 + $0xf0] sm:$0xff]
      %v3254 = vld [vmem:[%s3222 + $0xf8] sm:$0xff]
      %3255 = vmatprep.subr.mxu0 0.0
      %3256 = vmatpush1.msra.mxu0 %v3223
      %3257 = vmatprep.subr.mxu0 0.0
      %3258 = vmatpush1.msra.mxu0 %v3224
      %3259 = vmatprep.subr.mxu0 0.0
      %3260 = vmatpush1.msra.mxu0 %v3225
      %3261 = vmatprep.subr.mxu0 0.0
      %3262 = vmatpush1.msra.mxu0 %v3226
      %3263 = vmatprep.subr.mxu0 0.0
      %3264 = vmatpush1.msra.mxu0 %v3227
      %3265 = vmatprep.subr.mxu0 0.0
      %3266 = vmatpush1.msra.mxu0 %v3228
      %3267 = vmatprep.subr.mxu0 0.0
      %3268 = vmatpush1.msra.mxu0 %v3229
      %3269 = vmatprep.subr.mxu0 0.0
      %3270 = vmatpush1.msra.mxu0 %v3230
      %3271 = vmatprep.subr.mxu0 0.0
      %3272 = vmatpush1.msra.mxu0 %v3231
      %3273 = vmatprep.subr.mxu0 0.0
      %3274 = vmatpush1.msra.mxu0 %v3232
      %3275 = vmatprep.subr.mxu0 0.0
      %3276 = vmatpush1.msra.mxu0 %v3233
      %3277 = vmatprep.subr.mxu0 0.0
      %3278 = vmatpush1.msra.mxu0 %v3234
      %3279 = vmatprep.subr.mxu0 0.0
      %3280 = vmatpush1.msra.mxu0 %v3235
      %3281 = vmatprep.subr.mxu0 0.0
      %3282 = vmatpush1.msra.mxu0 %v3236
      %3283 = vmatprep.subr.mxu0 0.0
      %3284 = vmatpush1.msra.mxu0 %v3237
      %3285 = vmatprep.subr.mxu0 0.0
      %3286 = vmatpush1.msra.mxu0 %v3238
      %3287 = vmatprep.subr.mxu0 0.0
      %3288 = vmatpush1.msra.mxu0 %v3239
      %3289 = vmatprep.subr.mxu0 0.0
      %3290 = vmatpush1.msra.mxu0 %v3240
      %3291 = vmatprep.subr.mxu0 0.0
      %3292 = vmatpush1.msra.mxu0 %v3241
      %3293 = vmatprep.subr.mxu0 0.0
      %3294 = vmatpush1.msra.mxu0 %v3242
      %3295 = vmatprep.subr.mxu0 0.0
      %3296 = vmatpush1.msra.mxu0 %v3243
      %3297 = vmatprep.subr.mxu0 0.0
      %3298 = vmatpush1.msra.mxu0 %v3244
      %3299 = vmatprep.subr.mxu0 0.0
      %3300 = vmatpush1.msra.mxu0 %v3245
      %3301 = vmatprep.subr.mxu0 0.0
      %3302 = vmatpush1.msra.mxu0 %v3246
      %3303 = vmatprep.subr.mxu0 0.0
      %3304 = vmatpush1.msra.mxu0 %v3247
      %3305 = vmatprep.subr.mxu0 0.0
      %3306 = vmatpush1.msra.mxu0 %v3248
      %3307 = vmatprep.subr.mxu0 0.0
      %3308 = vmatpush1.msra.mxu0 %v3249
      %3309 = vmatprep.subr.mxu0 0.0
      %3310 = vmatpush1.msra.mxu0 %v3250
      %3311 = vmatprep.subr.mxu0 0.0
      %3312 = vmatpush1.msra.mxu0 %v3251
      %3313 = vmatprep.subr.mxu0 0.0
      %3314 = vmatpush1.msra.mxu0 %v3252
      %3315 = vmatprep.subr.mxu0 0.0
      %3316 = vmatpush1.msra.mxu0 %v3253
      %3317 = vmatprep.subr.mxu0 0.0
      %3318 = vmatpush1.msra.mxu0 %v3254
      %3319 = vmatprep.mubr.f32.mxu0 %v3207
      %3320 = vmatmul.mubr.f32.gmra.mrb[0].mxu0 %v3206
      %v3321 = vpop.f32.mrb[0].mxu0
      %v3322 = vadd.f32 0.0, %v3321
      %v3323 = vpop.f32.mrb[0].mxu0
      %3324 = vmatprep.mubr.f32.mxu0 %v3209
      %3325 = vmatmul.mubr.f32.gmra.mrb[0].mxu0 %v3208
      %v3326 = vpop.f32.mrb[0].mxu0
      %v3327 = vadd.f32 0.0, %v3326
      %v3328 = vpop.f32.mrb[0].mxu0
      %3329 = vmatprep.mubr.f32.mxu0 %v3211
      %3330 = vmatmul.mubr.f32.gmra.mrb[0].mxu0 %v3210
      %v3331 = vpop.f32.mrb[0].mxu0
      %v3332 = vadd.f32 0.0, %v3331
      %v3333 = vpop.f32.mrb[0].mxu0
      %3334 = vmatprep.mubr.f32.mxu0 %v3213
      %3335 = vmatmul.mubr.f32.gmra.mrb[0].mxu0 %v3212
      %v3336 = vpop.f32.mrb[0].mxu0
      %v3337 = vadd.f32 0.0, %v3336
      %v3338 = vpop.f32.mrb[0].mxu0
      %3339 = vmatprep.mubr.f32.mxu0 %v3215
      %3340 = vmatmul.mubr.f32.gmra.mrb[0].mxu0 %v3214
      %v3341 = vpop.f32.mrb[0].mxu0
      %v3342 = vadd.f32 0.0, %v3341
      %v3343 = vpop.f32.mrb[0].mxu0
      %3344 = vmatprep.mubr.f32.mxu0 %v3217
      %3345 = vmatmul.mubr.f32.gmra.mrb[0].mxu0 %v3216
      %v3346 = vpop.f32.mrb[0].mxu0
      %v3347 = vadd.f32 0.0, %v3346
      %v3348 = vpop.f32.mrb[0].mxu0
      %3349 = vmatprep.mubr.f32.mxu0 %v3219
      %3350 = vmatmul.mubr.f32.gmra.mrb[0].mxu0 %v3218
      %v3351 = vpop.f32.mrb[0].mxu0
      %v3352 = vadd.f32 0.0, %v3351
      %v3353 = vpop.f32.mrb[0].mxu0
      %3354 = vmatprep.mubr.f32.mxu0 %v3221
      %3355 = vmatmul.mubr.f32.gmra.mrb[0].mxu0 %v3220
      %v3356 = vpop.f32.mrb[0].mxu0
      %v3357 = vadd.f32 0.0, %v3356
      %v3358 = vpop.f32.mrb[0].mxu0
      %3359 = vdwg.mxu0
      %v3360 = vadd.f32 %v3197, %v3322
      %v3361 = vadd.f32 %v3198, %v3327
      %v3362 = vadd.f32 %v3199, %v3332
      %v3363 = vadd.f32 %v3200, %v3337
      %v3364 = vadd.f32 %v3201, %v3342
      %v3365 = vadd.f32 %v3202, %v3347
      %v3366 = vadd.f32 %v3203, %v3352
      %v3367 = vadd.f32 %v3204, %v3357
      %v3368 = vld [vmem:[%s3205] sm:$0xfe]
      %v3369 = vld [vmem:[%s3205 + $0x8] sm:$0xfe]
      %v3370 = vld [vmem:[%s3205 + $0x10] sm:$0x1]
      %v3371 = vld [vmem:[%s3205 + $0x18] sm:$0x1]
      %v3372 = vld [vmem:[%s3205 + $0x20] sm:$0xfe]
      %v3373 = vld [vmem:[%s3205 + $0x28] sm:$0xfe]
      %v3374 = vld [vmem:[%s3205 + $0x30] sm:$0x1]
      %v3375 = vld [vmem:[%s3205 + $0x38] sm:$0x1]
      %v3376 = vld [vmem:[%s3205 + $0x40] sm:$0xfe]
      %v3377 = vld [vmem:[%s3205 + $0x48] sm:$0xfe]
      %v3378 = vld [vmem:[%s3205 + $0x50] sm:$0x1]
      %v3379 = vld [vmem:[%s3205 + $0x58] sm:$0x1]
      %v3380 = vld [vmem:[%s3205 + $0x60] sm:$0xfe]
      %v3381 = vld [vmem:[%s3205 + $0x68] sm:$0xfe]
      %v3382 = vld [vmem:[%s3205 + $0x70] sm:$0x1]
      %v3383 = vld [vmem:[%s3205 + $0x78] sm:$0x1]
      %v3384 = vld [vmem:[%s3205 + $0x80] sm:$0xfe]
      %v3385 = vld [vmem:[%s3205 + $0x88] sm:$0xfe]
      %v3386 = vld [vmem:[%s3205 + $0x90] sm:$0x1]
      %v3387 = vld [vmem:[%s3205 + $0x98] sm:$0x1]
      %v3388 = vld [vmem:[%s3205 + $0xa0] sm:$0xfe]
      %v3389 = vld [vmem:[%s3205 + $0xa8] sm:$0xfe]
      %v3390 = vld [vmem:[%s3205 + $0xb0] sm:$0x1]
      %v3391 = vld [vmem:[%s3205 + $0xb8] sm:$0x1]
      %v3392 = vld [vmem:[%s3205 + $0xc0] sm:$0xfe]
      %v3393 = vld [vmem:[%s3205 + $0xc8] sm:$0xfe]
      %v3394 = vld [vmem:[%s3205 + $0xd0] sm:$0x1]
      %v3395 = vld [vmem:[%s3205 + $0xd8] sm:$0x1]
      %v3396 = vld [vmem:[%s3205 + $0xe0] sm:$0xfe]
      %v3397 = vld [vmem:[%s3205 + $0xe8] sm:$0xfe]
      %v3398 = vld [vmem:[%s3205 + $0xf0] sm:$0x1]
      %v3399 = vld [vmem:[%s3205 + $0xf8] sm:$0x1]
      %v3432 = vrot.slane %v3368, 1
      %v3433 = vrot.slane %v3370, 1
      %v3434 = vsel %vm1912, %v3432, %v3433
      %v3435 = vrot.slane %v3369, 1
      %v3436 = vrot.slane %v3371, 1
      %v3437 = vsel %vm1912, %v3435, %v3436
      %v3438 = vrot.slane %v3372, 1
      %v3439 = vrot.slane %v3374, 1
      %v3440 = vsel %vm1912, %v3438, %v3439
      %v3441 = vrot.slane %v3373, 1
      %v3442 = vrot.slane %v3375, 1
      %v3443 = vsel %vm1912, %v3441, %v3442
      %v3444 = vrot.slane %v3376, 1
      %v3445 = vrot.slane %v3378, 1
      %v3446 = vsel %vm1912, %v3444, %v3445
      %v3447 = vrot.slane %v3377, 1
      %v3448 = vrot.slane %v3379, 1
      %v3449 = vsel %vm1912, %v3447, %v3448
      %v3450 = vrot.slane %v3380, 1
      %v3451 = vrot.slane %v3382, 1
      %v3452 = vsel %vm1912, %v3450, %v3451
      %v3453 = vrot.slane %v3381, 1
      %v3454 = vrot.slane %v3383, 1
      %v3455 = vsel %vm1912, %v3453, %v3454
      %v3456 = vrot.slane %v3384, 1
      %v3457 = vrot.slane %v3386, 1
      %v3458 = vsel %vm1912, %v3456, %v3457
      %v3459 = vrot.slane %v3385, 1
      %v3460 = vrot.slane %v3387, 1
      %v3461 = vsel %vm1912, %v3459, %v3460
      %v3462 = vrot.slane %v3388, 1
      %v3463 = vrot.slane %v3390, 1
      %v3464 = vsel %vm1912, %v3462, %v3463
      %v3465 = vrot.slane %v3389, 1
      %v3466 = vrot.slane %v3391, 1
      %v3467 = vsel %vm1912, %v3465, %v3466
      %v3468 = vrot.slane %v3392, 1
      %v3469 = vrot.slane %v3394, 1
      %v3470 = vsel %vm1912, %v3468, %v3469
      %v3471 = vrot.slane %v3393, 1
      %v3472 = vrot.slane %v3395, 1
      %v3473 = vsel %vm1912, %v3471, %v3472
      %v3474 = vrot.slane %v3396, 1
      %v3475 = vrot.slane %v3398, 1
      %v3476 = vsel %vm1912, %v3474, %v3475
      %v3477 = vrot.slane %v3397, 1
      %v3478 = vrot.slane %v3399, 1
      %v3479 = vsel %vm1912, %v3477, %v3478
      %s3496 = scalar_lea.vmem %s2, 1792
      %v3497 = vld [vmem:[%s3496] sm:$0xff]
      %v3498 = vld [vmem:[%s3496 + $0x8] sm:$0xff]
      %v3499 = vld [vmem:[%s3496 + $0x10] sm:$0xff]
      %v3500 = vld [vmem:[%s3496 + $0x18] sm:$0xff]
      %v3501 = vld [vmem:[%s3496 + $0x20] sm:$0xff]
      %v3502 = vld [vmem:[%s3496 + $0x28] sm:$0xff]
      %v3503 = vld [vmem:[%s3496 + $0x30] sm:$0xff]
      %v3504 = vld [vmem:[%s3496 + $0x38] sm:$0xff]
      %v3505 = vld [vmem:[%s3496 + $0x40] sm:$0xff]
      %v3506 = vld [vmem:[%s3496 + $0x48] sm:$0xff]
      %v3507 = vld [vmem:[%s3496 + $0x50] sm:$0xff]
      %v3508 = vld [vmem:[%s3496 + $0x58] sm:$0xff]
      %v3509 = vld [vmem:[%s3496 + $0x60] sm:$0xff]
      %v3510 = vld [vmem:[%s3496 + $0x68] sm:$0xff]
      %v3511 = vld [vmem:[%s3496 + $0x70] sm:$0xff]
      %v3512 = vld [vmem:[%s3496 + $0x78] sm:$0xff]
      %v3513 = vld [vmem:[%s3496 + $0x80] sm:$0xff]
      %v3514 = vld [vmem:[%s3496 + $0x88] sm:$0xff]
      %v3515 = vld [vmem:[%s3496 + $0x90] sm:$0xff]
      %v3516 = vld [vmem:[%s3496 + $0x98] sm:$0xff]
      %v3517 = vld [vmem:[%s3496 + $0xa0] sm:$0xff]
      %v3518 = vld [vmem:[%s3496 + $0xa8] sm:$0xff]
      %v3519 = vld [vmem:[%s3496 + $0xb0] sm:$0xff]
      %v3520 = vld [vmem:[%s3496 + $0xb8] sm:$0xff]
      %v3521 = vld [vmem:[%s3496 + $0xc0] sm:$0xff]
      %v3522 = vld [vmem:[%s3496 + $0xc8] sm:$0xff]
      %v3523 = vld [vmem:[%s3496 + $0xd0] sm:$0xff]
      %v3524 = vld [vmem:[%s3496 + $0xd8] sm:$0xff]
      %v3525 = vld [vmem:[%s3496 + $0xe0] sm:$0xff]
      %v3526 = vld [vmem:[%s3496 + $0xe8] sm:$0xff]
      %v3527 = vld [vmem:[%s3496 + $0xf0] sm:$0xff]
      %v3528 = vld [vmem:[%s3496 + $0xf8] sm:$0xff]
      %3529 = vmatprep.subr.mxu0 0.0
      %3530 = vmatpush1.msra.mxu0 %v3497
      %3531 = vmatprep.subr.mxu0 0.0
      %3532 = vmatpush1.msra.mxu0 %v3498
      %3533 = vmatprep.subr.mxu0 0.0
      %3534 = vmatpush1.msra.mxu0 %v3499
      %3535 = vmatprep.subr.mxu0 0.0
      %3536 = vmatpush1.msra.mxu0 %v3500
      %3537 = vmatprep.subr.mxu0 0.0
      %3538 = vmatpush1.msra.mxu0 %v3501
      %3539 = vmatprep.subr.mxu0 0.0
      %3540 = vmatpush1.msra.mxu0 %v3502
      %3541 = vmatprep.subr.mxu0 0.0
      %3542 = vmatpush1.msra.mxu0 %v3503
      %3543 = vmatprep.subr.mxu0 0.0
      %3544 = vmatpush1.msra.mxu0 %v3504
      %3545 = vmatprep.subr.mxu0 0.0
      %3546 = vmatpush1.msra.mxu0 %v3505
      %3547 = vmatprep.subr.mxu0 0.0
      %3548 = vmatpush1.msra.mxu0 %v3506
      %3549 = vmatprep.subr.mxu0 0.0
      %3550 = vmatpush1.msra.mxu0 %v3507
      %3551 = vmatprep.subr.mxu0 0.0
      %3552 = vmatpush1.msra.mxu0 %v3508
      %3553 = vmatprep.subr.mxu0 0.0
      %3554 = vmatpush1.msra.mxu0 %v3509
      %3555 = vmatprep.subr.mxu0 0.0
      %3556 = vmatpush1.msra.mxu0 %v3510
      %3557 = vmatprep.subr.mxu0 0.0
      %3558 = vmatpush1.msra.mxu0 %v3511
      %3559 = vmatprep.subr.mxu0 0.0
      %3560 = vmatpush1.msra.mxu0 %v3512
      %3561 = vmatprep.subr.mxu0 0.0
      %3562 = vmatpush1.msra.mxu0 %v3513
      %3563 = vmatprep.subr.mxu0 0.0
      %3564 = vmatpush1.msra.mxu0 %v3514
      %3565 = vmatprep.subr.mxu0 0.0
      %3566 = vmatpush1.msra.mxu0 %v3515
      %3567 = vmatprep.subr.mxu0 0.0
      %3568 = vmatpush1.msra.mxu0 %v3516
      %3569 = vmatprep.subr.mxu0 0.0
      %3570 = vmatpush1.msra.mxu0 %v3517
      %3571 = vmatprep.subr.mxu0 0.0
      %3572 = vmatpush1.msra.mxu0 %v3518
      %3573 = vmatprep.subr.mxu0 0.0
      %3574 = vmatpush1.msra.mxu0 %v3519
      %3575 = vmatprep.subr.mxu0 0.0
      %3576 = vmatpush1.msra.mxu0 %v3520
      %3577 = vmatprep.subr.mxu0 0.0
      %3578 = vmatpush1.msra.mxu0 %v3521
      %3579 = vmatprep.subr.mxu0 0.0
      %3580 = vmatpush1.msra.mxu0 %v3522
      %3581 = vmatprep.subr.mxu0 0.0
      %3582 = vmatpush1.msra.mxu0 %v3523
      %3583 = vmatprep.subr.mxu0 0.0
      %3584 = vmatpush1.msra.mxu0 %v3524
      %3585 = vmatprep.subr.mxu0 0.0
      %3586 = vmatpush1.msra.mxu0 %v3525
      %3587 = vmatprep.subr.mxu0 0.0
      %3588 = vmatpush1.msra.mxu0 %v3526
      %3589 = vmatprep.subr.mxu0 0.0
      %3590 = vmatpush1.msra.mxu0 %v3527
      %3591 = vmatprep.subr.mxu0 0.0
      %3592 = vmatpush1.msra.mxu0 %v3528
      %3593 = vmatprep.mubr.f32.mxu0 %v3437
      %3594 = vmatmul.mubr.f32.gmra.mrb[0].mxu0 %v3434
      %v3595 = vpop.f32.mrb[0].mxu0
      %v3596 = vadd.f32 0.0, %v3595
      %v3597 = vpop.f32.mrb[0].mxu0
      %3598 = vmatprep.mubr.f32.mxu0 %v3443
      %3599 = vmatmul.mubr.f32.gmra.mrb[0].mxu0 %v3440
      %v3600 = vpop.f32.mrb[0].mxu0
      %v3601 = vadd.f32 0.0, %v3600
      %v3602 = vpop.f32.mrb[0].mxu0
      %3603 = vmatprep.mubr.f32.mxu0 %v3449
      %3604 = vmatmul.mubr.f32.gmra.mrb[0].mxu0 %v3446
      %v3605 = vpop.f32.mrb[0].mxu0
      %v3606 = vadd.f32 0.0, %v3605
      %v3607 = vpop.f32.mrb[0].mxu0
      %3608 = vmatprep.mubr.f32.mxu0 %v3455
      %3609 = vmatmul.mubr.f32.gmra.mrb[0].mxu0 %v3452
      %v3610 = vpop.f32.mrb[0].mxu0
      %v3611 = vadd.f32 0.0, %v3610
      %v3612 = vpop.f32.mrb[0].mxu0
      %3613 = vmatprep.mubr.f32.mxu0 %v3461
      %3614 = vmatmul.mubr.f32.gmra.mrb[0].mxu0 %v3458
      %v3615 = vpop.f32.mrb[0].mxu0
      %v3616 = vadd.f32 0.0, %v3615
      %v3617 = vpop.f32.mrb[0].mxu0
      %3618 = vmatprep.mubr.f32.mxu0 %v3467
      %3619 = vmatmul.mubr.f32.gmra.mrb[0].mxu0 %v3464
      %v3620 = vpop.f32.mrb[0].mxu0
      %v3621 = vadd.f32 0.0, %v3620
      %v3622 = vpop.f32.mrb[0].mxu0
      %3623 = vmatprep.mubr.f32.mxu0 %v3473
      %3624 = vmatmul.mubr.f32.gmra.mrb[0].mxu0 %v3470
      %v3625 = vpop.f32.mrb[0].mxu0
      %v3626 = vadd.f32 0.0, %v3625
      %v3627 = vpop.f32.mrb[0].mxu0
      %3628 = vmatprep.mubr.f32.mxu0 %v3479
      %3629 = vmatmul.mubr.f32.gmra.mrb[0].mxu0 %v3476
      %v3630 = vpop.f32.mrb[0].mxu0
      %v3631 = vadd.f32 0.0, %v3630
      %v3632 = vpop.f32.mrb[0].mxu0
      %3633 = vdwg.mxu0
      %v3634 = vadd.f32 %v3360, %v3596
      %v3635 = vadd.f32 %v3361, %v3601
      %v3636 = vadd.f32 %v3362, %v3606
      %v3637 = vadd.f32 %v3363, %v3611
      %v3638 = vadd.f32 %v3364, %v3616
      %v3639 = vadd.f32 %v3365, %v3621
      %v3640 = vadd.f32 %v3366, %v3626
      %v3641 = vadd.f32 %v3367, %v3631
      %v3642 = vld [vmem:[%s3205] sm:$0xfc]
      %v3643 = vld [vmem:[%s3205 + $0x8] sm:$0xfc]
      %v3644 = vld [vmem:[%s3205 + $0x10] sm:$0x3]
      %v3645 = vld [vmem:[%s3205 + $0x18] sm:$0x3]
      %v3646 = vld [vmem:[%s3205 + $0x20] sm:$0xfc]
      %v3647 = vld [vmem:[%s3205 + $0x28] sm:$0xfc]
      %v3648 = vld [vmem:[%s3205 + $0x30] sm:$0x3]
      %v3649 = vld [vmem:[%s3205 + $0x38] sm:$0x3]
      %v3650 = vld [vmem:[%s3205 + $0x40] sm:$0xfc]
      %v3651 = vld [vmem:[%s3205 + $0x48] sm:$0xfc]
      %v3652 = vld [vmem:[%s3205 + $0x50] sm:$0x3]
      %v3653 = vld [vmem:[%s3205 + $0x58] sm:$0x3]
      %v3654 = vld [vmem:[%s3205 + $0x60] sm:$0xfc]
      %v3655 = vld [vmem:[%s3205 + $0x68] sm:$0xfc]
      %v3656 = vld [vmem:[%s3205 + $0x70] sm:$0x3]
      %v3657 = vld [vmem:[%s3205 + $0x78] sm:$0x3]
      %v3658 = vld [vmem:[%s3205 + $0x80] sm:$0xfc]
      %v3659 = vld [vmem:[%s3205 + $0x88] sm:$0xfc]
      %v3660 = vld [vmem:[%s3205 + $0x90] sm:$0x3]
      %v3661 = vld [vmem:[%s3205 + $0x98] sm:$0x3]
      %v3662 = vld [vmem:[%s3205 + $0xa0] sm:$0xfc]
      %v3663 = vld [vmem:[%s3205 + $0xa8] sm:$0xfc]
      %v3664 = vld [vmem:[%s3205 + $0xb0] sm:$0x3]
      %v3665 = vld [vmem:[%s3205 + $0xb8] sm:$0x3]
      %v3666 = vld [vmem:[%s3205 + $0xc0] sm:$0xfc]
      %v3667 = vld [vmem:[%s3205 + $0xc8] sm:$0xfc]
      %v3668 = vld [vmem:[%s3205 + $0xd0] sm:$0x3]
      %v3669 = vld [vmem:[%s3205 + $0xd8] sm:$0x3]
      %v3670 = vld [vmem:[%s3205 + $0xe0] sm:$0xfc]
      %v3671 = vld [vmem:[%s3205 + $0xe8] sm:$0xfc]
      %v3672 = vld [vmem:[%s3205 + $0xf0] sm:$0x3]
      %v3673 = vld [vmem:[%s3205 + $0xf8] sm:$0x3]
      %v3706 = vrot.slane %v3642, 2
      %v3707 = vrot.slane %v3644, 2
      %v3708 = vsel %vm2284, %v3706, %v3707
      %v3709 = vrot.slane %v3643, 2
      %v3710 = vrot.slane %v3645, 2
      %v3711 = vsel %vm2284, %v3709, %v3710
      %v3712 = vrot.slane %v3646, 2
      %v3713 = vrot.slane %v3648, 2
      %v3714 = vsel %vm2284, %v3712, %v3713
      %v3715 = vrot.slane %v3647, 2
      %v3716 = vrot.slane %v3649, 2
      %v3717 = vsel %vm2284, %v3715, %v3716
      %v3718 = vrot.slane %v3650, 2
      %v3719 = vrot.slane %v3652, 2
      %v3720 = vsel %vm2284, %v3718, %v3719
      %v3721 = vrot.slane %v3651, 2
      %v3722 = vrot.slane %v3653, 2
      %v3723 = vsel %vm2284, %v3721, %v3722
      %v3724 = vrot.slane %v3654, 2
      %v3725 = vrot.slane %v3656, 2
      %v3726 = vsel %vm2284, %v3724, %v3725
      %v3727 = vrot.slane %v3655, 2
      %v3728 = vrot.slane %v3657, 2
      %v3729 = vsel %vm2284, %v3727, %v3728
      %v3730 = vrot.slane %v3658, 2
      %v3731 = vrot.slane %v3660, 2
      %v3732 = vsel %vm2284, %v3730, %v3731
      %v3733 = vrot.slane %v3659, 2
      %v3734 = vrot.slane %v3661, 2
      %v3735 = vsel %vm2284, %v3733, %v3734
      %v3736 = vrot.slane %v3662, 2
      %v3737 = vrot.slane %v3664, 2
      %v3738 = vsel %vm2284, %v3736, %v3737
      %v3739 = vrot.slane %v3663, 2
      %v3740 = vrot.slane %v3665, 2
      %v3741 = vsel %vm2284, %v3739, %v3740
      %v3742 = vrot.slane %v3666, 2
      %v3743 = vrot.slane %v3668, 2
      %v3744 = vsel %vm2284, %v3742, %v3743
      %v3745 = vrot.slane %v3667, 2
      %v3746 = vrot.slane %v3669, 2
      %v3747 = vsel %vm2284, %v3745, %v3746
      %v3748 = vrot.slane %v3670, 2
      %v3749 = vrot.slane %v3672, 2
      %v3750 = vsel %vm2284, %v3748, %v3749
      %v3751 = vrot.slane %v3671, 2
      %v3752 = vrot.slane %v3673, 2
      %v3753 = vsel %vm2284, %v3751, %v3752
      %s3770 = scalar_lea.vmem %s2, 2048
      %v3771 = vld [vmem:[%s3770] sm:$0xff]
      %v3772 = vld [vmem:[%s3770 + $0x8] sm:$0xff]
      %v3773 = vld [vmem:[%s3770 + $0x10] sm:$0xff]
      %v3774 = vld [vmem:[%s3770 + $0x18] sm:$0xff]
      %v3775 = vld [vmem:[%s3770 + $0x20] sm:$0xff]
      %v3776 = vld [vmem:[%s3770 + $0x28] sm:$0xff]
      %v3777 = vld [vmem:[%s3770 + $0x30] sm:$0xff]
      %v3778 = vld [vmem:[%s3770 + $0x38] sm:$0xff]
      %v3779 = vld [vmem:[%s3770 + $0x40] sm:$0xff]
      %v3780 = vld [vmem:[%s3770 + $0x48] sm:$0xff]
      %v3781 = vld [vmem:[%s3770 + $0x50] sm:$0xff]
      %v3782 = vld [vmem:[%s3770 + $0x58] sm:$0xff]
      %v3783 = vld [vmem:[%s3770 + $0x60] sm:$0xff]
      %v3784 = vld [vmem:[%s3770 + $0x68] sm:$0xff]
      %v3785 = vld [vmem:[%s3770 + $0x70] sm:$0xff]
      %v3786 = vld [vmem:[%s3770 + $0x78] sm:$0xff]
      %v3787 = vld [vmem:[%s3770 + $0x80] sm:$0xff]
      %v3788 = vld [vmem:[%s3770 + $0x88] sm:$0xff]
      %v3789 = vld [vmem:[%s3770 + $0x90] sm:$0xff]
      %v3790 = vld [vmem:[%s3770 + $0x98] sm:$0xff]
      %v3791 = vld [vmem:[%s3770 + $0xa0] sm:$0xff]
      %v3792 = vld [vmem:[%s3770 + $0xa8] sm:$0xff]
      %v3793 = vld [vmem:[%s3770 + $0xb0] sm:$0xff]
      %v3794 = vld [vmem:[%s3770 + $0xb8] sm:$0xff]
      %v3795 = vld [vmem:[%s3770 + $0xc0] sm:$0xff]
      %v3796 = vld [vmem:[%s3770 + $0xc8] sm:$0xff]
      %v3797 = vld [vmem:[%s3770 + $0xd0] sm:$0xff]
      %v3798 = vld [vmem:[%s3770 + $0xd8] sm:$0xff]
      %v3799 = vld [vmem:[%s3770 + $0xe0] sm:$0xff]
      %v3800 = vld [vmem:[%s3770 + $0xe8] sm:$0xff]
      %v3801 = vld [vmem:[%s3770 + $0xf0] sm:$0xff]
      %v3802 = vld [vmem:[%s3770 + $0xf8] sm:$0xff]
      %3803 = vmatprep.subr.mxu0 0.0
      %3804 = vmatpush1.msra.mxu0 %v3771
      %3805 = vmatprep.subr.mxu0 0.0
      %3806 = vmatpush1.msra.mxu0 %v3772
      %3807 = vmatprep.subr.mxu0 0.0
      %3808 = vmatpush1.msra.mxu0 %v3773
      %3809 = vmatprep.subr.mxu0 0.0
      %3810 = vmatpush1.msra.mxu0 %v3774
      %3811 = vmatprep.subr.mxu0 0.0
      %3812 = vmatpush1.msra.mxu0 %v3775
      %3813 = vmatprep.subr.mxu0 0.0
      %3814 = vmatpush1.msra.mxu0 %v3776
      %3815 = vmatprep.subr.mxu0 0.0
      %3816 = vmatpush1.msra.mxu0 %v3777
      %3817 = vmatprep.subr.mxu0 0.0
      %3818 = vmatpush1.msra.mxu0 %v3778
      %3819 = vmatprep.subr.mxu0 0.0
      %3820 = vmatpush1.msra.mxu0 %v3779
      %3821 = vmatprep.subr.mxu0 0.0
      %3822 = vmatpush1.msra.mxu0 %v3780
      %3823 = vmatprep.subr.mxu0 0.0
      %3824 = vmatpush1.msra.mxu0 %v3781
      %3825 = vmatprep.subr.mxu0 0.0
      %3826 = vmatpush1.msra.mxu0 %v3782
      %3827 = vmatprep.subr.mxu0 0.0
      %3828 = vmatpush1.msra.mxu0 %v3783
      %3829 = vmatprep.subr.mxu0 0.0
      %3830 = vmatpush1.msra.mxu0 %v3784
      %3831 = vmatprep.subr.mxu0 0.0
      %3832 = vmatpush1.msra.mxu0 %v3785
      %3833 = vmatprep.subr.mxu0 0.0
      %3834 = vmatpush1.msra.mxu0 %v3786
      %3835 = vmatprep.subr.mxu0 0.0
      %3836 = vmatpush1.msra.mxu0 %v3787
      %3837 = vmatprep.subr.mxu0 0.0
      %3838 = vmatpush1.msra.mxu0 %v3788
      %3839 = vmatprep.subr.mxu0 0.0
      %3840 = vmatpush1.msra.mxu0 %v3789
      %3841 = vmatprep.subr.mxu0 0.0
      %3842 = vmatpush1.msra.mxu0 %v3790
      %3843 = vmatprep.subr.mxu0 0.0
      %3844 = vmatpush1.msra.mxu0 %v3791
      %3845 = vmatprep.subr.mxu0 0.0
      %3846 = vmatpush1.msra.mxu0 %v3792
      %3847 = vmatprep.subr.mxu0 0.0
      %3848 = vmatpush1.msra.mxu0 %v3793
      %3849 = vmatprep.subr.mxu0 0.0
      %3850 = vmatpush1.msra.mxu0 %v3794
      %3851 = vmatprep.subr.mxu0 0.0
      %3852 = vmatpush1.msra.mxu0 %v3795
      %3853 = vmatprep.subr.mxu0 0.0
      %3854 = vmatpush1.msra.mxu0 %v3796
      %3855 = vmatprep.subr.mxu0 0.0
      %3856 = vmatpush1.msra.mxu0 %v3797
      %3857 = vmatprep.subr.mxu0 0.0
      %3858 = vmatpush1.msra.mxu0 %v3798
      %3859 = vmatprep.subr.mxu0 0.0
      %3860 = vmatpush1.msra.mxu0 %v3799
      %3861 = vmatprep.subr.mxu0 0.0
      %3862 = vmatpush1.msra.mxu0 %v3800
      %3863 = vmatprep.subr.mxu0 0.0
      %3864 = vmatpush1.msra.mxu0 %v3801
      %3865 = vmatprep.subr.mxu0 0.0
      %3866 = vmatpush1.msra.mxu0 %v3802
      %3867 = vmatprep.mubr.f32.mxu0 %v3711
      %3868 = vmatmul.mubr.f32.gmra.mrb[0].mxu0 %v3708
      %v3869 = vpop.f32.mrb[0].mxu0
      %v3870 = vadd.f32 0.0, %v3869
      %v3871 = vpop.f32.mrb[0].mxu0
      %3872 = vmatprep.mubr.f32.mxu0 %v3717
      %3873 = vmatmul.mubr.f32.gmra.mrb[0].mxu0 %v3714
      %v3874 = vpop.f32.mrb[0].mxu0
      %v3875 = vadd.f32 0.0, %v3874
      %v3876 = vpop.f32.mrb[0].mxu0
      %3877 = vmatprep.mubr.f32.mxu0 %v3723
      %3878 = vmatmul.mubr.f32.gmra.mrb[0].mxu0 %v3720
      %v3879 = vpop.f32.mrb[0].mxu0
      %v3880 = vadd.f32 0.0, %v3879
      %v3881 = vpop.f32.mrb[0].mxu0
      %3882 = vmatprep.mubr.f32.mxu0 %v3729
      %3883 = vmatmul.mubr.f32.gmra.mrb[0].mxu0 %v3726
      %v3884 = vpop.f32.mrb[0].mxu0
      %v3885 = vadd.f32 0.0, %v3884
      %v3886 = vpop.f32.mrb[0].mxu0
      %3887 = vmatprep.mubr.f32.mxu0 %v3735
      %3888 = vmatmul.mubr.f32.gmra.mrb[0].mxu0 %v3732
      %v3889 = vpop.f32.mrb[0].mxu0
      %v3890 = vadd.f32 0.0, %v3889
      %v3891 = vpop.f32.mrb[0].mxu0
      %3892 = vmatprep.mubr.f32.mxu0 %v3741
      %3893 = vmatmul.mubr.f32.gmra.mrb[0].mxu0 %v3738
      %v3894 = vpop.f32.mrb[0].mxu0
      %v3895 = vadd.f32 0.0, %v3894
      %v3896 = vpop.f32.mrb[0].mxu0
      %3897 = vmatprep.mubr.f32.mxu0 %v3747
      %3898 = vmatmul.mubr.f32.gmra.mrb[0].mxu0 %v3744
      %v3899 = vpop.f32.mrb[0].mxu0
      %v3900 = vadd.f32 0.0, %v3899
      %v3901 = vpop.f32.mrb[0].mxu0
      %3902 = vmatprep.mubr.f32.mxu0 %v3753
      %3903 = vmatmul.mubr.f32.gmra.mrb[0].mxu0 %v3750
      %v3904 = vpop.f32.mrb[0].mxu0
      %v3905 = vadd.f32 0.0, %v3904
      %v3906 = vpop.f32.mrb[0].mxu0
      %3907 = vdwg.mxu0
      %v3908 = vadd.f32 %v3634, %v3870
      %v3909 = vadd.f32 %v3635, %v3875
      %v3910 = vadd.f32 %v3636, %v3880
      %v3911 = vadd.f32 %v3637, %v3885
      %v3912 = vadd.f32 %v3638, %v3890
      %v3913 = vadd.f32 %v3639, %v3895
      %v3914 = vadd.f32 %v3640, %v3900
      %v3915 = vadd.f32 %v3641, %v3905
      %v3916 = vmax.f32 %v3908, 0.0
      %v3917 = vmax.f32 %v3909, 0.0
      %v3918 = vmax.f32 %v3910, 0.0
      %v3919 = vmax.f32 %v3911, 0.0
      %v3920 = vmax.f32 %v3912, 0.0
      %v3921 = vmax.f32 %v3913, 0.0
      %v3922 = vmax.f32 %v3914, 0.0
      %v3923 = vmax.f32 %v3915, 0.0
      %3924 = vst.msk [vmem:[%s170] sm:$0xff] %vm192, %v3916
      %3925 = vst.msk [vmem:[%s170 + $0x8] sm:$0xff] %vm192, %v3917
      %3926 = vst.msk [vmem:[%s170 + $0x10] sm:$0xff] %vm192, %v3918
      %3927 = vst.msk [vmem:[%s170 + $0x18] sm:$0xff] %vm192, %v3919
      %3928 = vst.msk [vmem:[%s170 + $0x20] sm:$0xff] %vm192, %v3920
      %3929 = vst.msk [vmem:[%s170 + $0x28] sm:$0xff] %vm192, %v3921
      %3930 = vst.msk [vmem:[%s170 + $0x30] sm:$0xff] %vm192, %v3922
      %3931 = vst.msk [vmem:[%s170 + $0x38] sm:$0xff] %vm192, %v3923
      %p3932 = scmp.lt.s32.totalorder %s14, 1
      %s3933 = scalar_select %p3932, %s14, 1
      %s3934 = smul.addr %s3933, 8
      %s3935 = smul.addr %s3934, 8
      %s3936 = scalar_lea.vmem %s3, %s3935
      // Predicated region
      $region33: #{vae_forward.2} parent=31 // pred_check
        %p3937 = pneg %p100
      $region34: #{vae_forward.2} parent=31 // pred_check_branch
        %3939 = sbr.rel (%p3937) target = $region36
      $region35: #{vae_forward.2} parent=31 // pred_region
        _
      $region36: #{vae_forward.2} parent=31 // pred_fallthru
        _
    $region32: #{vae_forward.2} parent=5 // pred_fallthru
      _
    %p3940 = scmp.le.s32.totalorder 2, %s9
    // Predicated region
    $region37: #{vae_forward.2} parent=5 // pred_check
      %p3941 = pneg %p3940
    $region38: #{vae_forward.2} parent=5 // pred_check_branch
      %3943 = sbr.rel (%p3941) target = $region40
    $region39: #{vae_forward.2} parent=5 // pred_region
      %s3944 = ssub.s32 %s9, 2
      // Predicated region
      $region41: #{vae_forward.2} parent=39 // pred_check
        %p3945 = pneg %p106
      $region42: #{vae_forward.2} parent=39 // pred_check_branch
        %3947 = sbr.rel (%p3945) target = $region44
      $region43: #{vae_forward.2} parent=39 // pred_region
        %p3948 = scmp.lt.s32.totalorder %s15, 1
        %s3949 = scalar_select %p3948, %s15, 1
        %s3950 = smul.addr %s3949, 8
        %s3951 = smul.addr %s3950, 8
        %s3952 = scalar_lea.vmem %s3, %s3951
      $region44: #{vae_forward.2} parent=39 // pred_fallthru
        _
    $region40: #{vae_forward.2} parent=5 // pred_fallthru
      _
  $region6: #{vae_forward.2} parent=0 // loop_footer
    %s13 = sadd.s32 1, %s9
  $region7: #{vae_forward.2} parent=0 // loop_footer_branch
    %8 = sbr.rel target = $region3
  $region8: #{vae_forward.2} parent=0 // loop_exit
    _

</llo_original>
